<compile_context>
chip_gen: v7x
topology: tpu7x:2x2x1
jax: 0.10.0
libtpu: 0.0.40
codegen_flags: <defaults>
</compile_context>

<pallas_src>
import math
from functools import partial

import jax
import jax.numpy as jnp
from jax.experimental import pallas as pl
from jax.experimental.pallas import tpu as pltpu


_VMEM_SPEC = pl.BlockSpec(memory_space=pltpu.MemorySpace.VMEM)


# ---------------------------------------------------------------------------
# Fused kernel
# ---------------------------------------------------------------------------

def _make_decoder_kernel(B, seq_len, n_features, layers_meta, out_meta, n_wbufs):
    """Builds the fused decoder kernel.

    Ref order: x, weight_buf_0 ... weight_buf_{n_wbufs-1}, bias_buf, out.
    All layout metadata (`layers_meta`, `out_meta`) is static Python.
    """
    L = len(layers_meta)
    F = n_features

    def kernel(*refs):
        x_ref = refs[0]
        wrefs = refs[1:1 + n_wbufs]
        b_ref = refs[1 + n_wbufs]
        out_ref = refs[2 + n_wbufs]

        x = x_ref[...]                                        # [B, E] f32

        def wslice(spec):
            bi, row, nrows, _ncols = spec
            # one-time slice + cast, hoisted out of the time loop
            return wrefs[bi][row:row + nrows, :].astype(jnp.bfloat16)

        def bslice(row, width):
            return b_ref[row:row + 1, :width]                 # [1, width] f32

        # ---- one-time weight loads / hoisted precompute ------------------
        layer_w = []
        for m in layers_meta:
            if m["kind"] == "split":          # rnn1 layer 0: x is time-invariant
                w_ih = wslice(m["w_ih"])
                w_hh = wslice(m["w_hh"])
                b = bslice(m["bias_row"], 4 * m["H"])
                xproj = jnp.dot(x.astype(jnp.bfloat16), w_ih,
                                preferred_element_type=jnp.float32) + b
                layer_w.append(("split", m["H"], xproj, w_hh))
            else:                              # fused [W_ih; W_hh] single dot
                w = wslice(m["w"])
                b = bslice(m["bias_row"], 4 * m["H"])
                layer_w.append(("fused", m["H"], w, b))
        w_out = wslice(out_meta["w"])
        b_out = bslice(out_meta["bias_row"], F)

        def lstm_update(gates, h, c, H):
            # i/f/o pre-activations were pre-scaled by 0.5 at init, so a single
            # full-vreg tanh covers all four gates:
            #   sigmoid(z) = 0.5 * (tanh(z/2) + 1)
            t = jnp.tanh(gates)
            i = 0.5 * (t[:, 0 * H:1 * H] + 1.0)
            f = 0.5 * (t[:, 1 * H:2 * H] + 1.0)
            g = t[:, 2 * H:3 * H]
            o = 0.5 * (t[:, 3 * H:4 * H] + 1.0)
            c_new = f * c + i * g
            h_new = o * jnp.tanh(c_new)
            return h_new, c_new

        def run_cell(k, inp, h, c):
            kind = layer_w[k][0]
            if kind == "split":
                _, H, xproj, w_hh = layer_w[k]
                gates = xproj + jnp.dot(h.astype(jnp.bfloat16), w_hh,
                                        preferred_element_type=jnp.float32)
            else:
                _, H, w, b = layer_w[k]
                xh = jnp.concatenate([inp, h], axis=-1).astype(jnp.bfloat16)
                gates = jnp.dot(xh, w, preferred_element_type=jnp.float32) + b
            return lstm_update(gates, h, c, H)

        # Zero initial (h, c) — PyTorch default when no state is passed.
        h = [jnp.zeros((B, m["H"]), jnp.float32) for m in layers_meta]
        c = [jnp.zeros((B, m["H"]), jnp.float32) for m in layers_meta]
        out_prev = [None] * L          # layer k's output at its last timestep

        # ---- wavefront over (layer, time): macro-step s runs layer k at t=s-k
        # All cells within a macro-step are mutually independent.
        for s in range(seq_len + L - 1):
            new_out = list(out_prev)
            for k in range(L):
                t = s - k
                if 0 <= t < seq_len:
                    inp = None if layers_meta[k]["kind"] == "split" else out_prev[k - 1]
                    h[k], c[k] = run_cell(k, inp, h[k], c[k])
                    new_out[k] = h[k]
                    if k == L - 1:
                        # output Linear + direct lane-aligned per-step store
                        y = jnp.dot(h[k].astype(jnp.bfloat16), w_out,
                                    preferred_element_type=jnp.float32) + b_out
                        out_ref[:, t * F:(t + 1) * F] = y
            out_prev = new_out

    return kernel


# ---------------------------------------------------------------------------
# Wrapper
# ---------------------------------------------------------------------------

def recurrent_decoder_forward(packed, x, *, layout, seq_len):
    """packed: (weight_buffers_tuple, bias_buffer); x: [B, E] f32."""
    weight_bufs, bias_buf = packed
    B = x.shape[0]
    F = layout["n_features"]

    kernel = _make_decoder_kernel(B, seq_len, F, layout["layers"], layout["out"],
                                  len(weight_bufs))
    n_in = 1 + len(weight_bufs) + 1
    out_flat = pl.pallas_call(
        kernel,
        out_shape=jax.ShapeDtypeStruct((B, seq_len * F), jnp.float32),
        in_specs=[_VMEM_SPEC] * n_in,
        out_specs=_VMEM_SPEC,
    )(x, *weight_bufs, bias_buf)
    # Row-major [B, S*F] -> [B, S, F] matches the torch output ordering.
    return out_flat.reshape(B, seq_len, F)


# ---------------------------------------------------------------------------
# Parameter construction (PyTorch-style init) and packing
# ---------------------------------------------------------------------------

def _lstm_layer_init(key, in_dim, hid):
    k1, k2, k3, k4 = jax.random.split(key, 4)
    bound = 1.0 / math.sqrt(hid)                  # PyTorch nn.LSTM default init
    w_ih = jax.random.uniform(k1, (in_dim, 4 * hid), jnp.float32, -bound, bound)
    w_hh = jax.random.uniform(k2, (hid, 4 * hid), jnp.float32, -bound, bound)
    b_ih = jax.random.uniform(k3, (4 * hid,), jnp.float32, -bound, bound)
    b_hh = jax.random.uniform(k4, (4 * hid,), jnp.float32, -bound, bound)
    b = (b_ih + b_hh).reshape(1, 4 * hid)         # fuse the two biases once
    return w_ih, w_hh, b


def init_params(key, seq_len, n_features, embedding_dim, n_layers):
    hid1 = embedding_dim
    hid2 = 2 * embedding_dim
    keys = jax.random.split(key, 2 * n_layers + 1)

    rnn1 = []
    for l in range(n_layers):
        in_dim = embedding_dim if l == 0 else hid1
        rnn1.append(_lstm_layer_init(keys[l], in_dim, hid1))

    rnn2 = []
    for l in range(n_layers):
        in_dim = hid1 if l == 0 else hid2
        rnn2.append(_lstm_layer_init(keys[n_layers + l], in_dim, hid2))

    kw, kb = jax.random.split(keys[-1])
    bound = 1.0 / math.sqrt(hid2)                 # PyTorch nn.Linear default init
    w_out = jax.random.uniform(kw, (hid2, n_features), jnp.float32, -bound, bound)
    b_out = jax.random.uniform(kb, (1, n_features), jnp.float32, -bound, bound)

    return {"rnn1": rnn1, "rnn2": rnn2, "out": (w_out, b_out)}


def pack_params(params):
    """Pre-fuse [W_ih; W_hh], pre-scale i/f/o columns by 0.5 (tanh-sigmoid
    identity), and pack everything into a few lane-width-grouped buffers.
    Returns ((weight_buffers, bias_buffer), static_layout)."""
    hid1 = params["rnn1"][0][1].shape[0]
    hid2 = params["rnn2"][0][1].shape[0]
    w_out, b_out = params["out"]
    n_features = int(w_out.shape[1])

    def gate_scale(H):
        # PyTorch gate order i, f, g, o; scale i/f/o by 0.5 (exact power of 2).
        return jnp.concatenate([
            jnp.full((H,), 0.5, jnp.float32), jnp.full((H,), 0.5, jnp.float32),
            jnp.ones((H,), jnp.float32), jnp.full((H,), 0.5, jnp.float32)])

    mats, biases, layers_meta = [], [], []

    def add_mat(a):
        mats.append(a.astype(jnp.float32))
        return len(mats) - 1

    def add_bias(v):
        biases.append(v.astype(jnp.float32))
        return len(biases) - 1

    stacks = [(hid1, params["rnn1"]), (hid2, params["rnn2"])]
    for si, (H, stack) in enumerate(stacks):
        sv = gate_scale(H)
        for l, (w_ih, w_hh, b) in enumerate(stack):
            brow = add_bias(b.reshape(-1) * sv)
            if si == 0 and l == 0:
                layers_meta.append({"kind": "split", "H": H,
                                    "w_ih": add_mat(w_ih * sv),
                                    "w_hh": add_mat(w_hh * sv),
                                    "bias_row": brow})
            else:
                w_cat = jnp.concatenate([w_ih, w_hh], axis=0) * sv
                layers_meta.append({"kind": "fused", "H": H,
                                    "w": add_mat(w_cat), "bias_row": brow})

    out_meta = {"w": add_mat(w_out), "bias_row": add_bias(b_out.reshape(-1))}

    # Group matrices by lane width -> one packed buffer (one DMA) per width.
    widths = []
    for a in mats:
        if int(a.shape[1]) not in widths:
            widths.append(int(a.shape[1]))
    buffers, placement = [], [None] * len(mats)
    for bi, w in enumerate(widths):
        rows, group = 0, []
        for mi, a in enumerate(mats):
            if int(a.shape[1]) == w:
                placement[mi] = (bi, rows, int(a.shape[0]), w)
                rows += int(a.shape[0])
                group.append(a)
        buffers.append(jnp.concatenate(group, axis=0))

    def fix(meta):
        out = dict(meta)
        for key in ("w", "w_ih", "w_hh"):
            if key in out:
                out[key] = placement[out[key]]
        return out

    layers_meta = [fix(m) for m in layers_meta]
    out_meta = fix(out_meta)

    maxw = max(int(b.shape[0]) for b in biases)
    bias_buf = jnp.stack([jnp.pad(b, (0, maxw - int(b.shape[0]))) for b in biases])

    layout = {"layers": layers_meta, "out": out_meta, "n_features": n_features}
    return (tuple(buffers), bias_buf), layout


# ---------------------------------------------------------------------------
# Pure-JAX reference (lax.scan) for correctness checks
# ---------------------------------------------------------------------------

def reference_forward(params, x, seq_len, mm_dtype=jnp.float32):
    B, E = x.shape

    def mdot(a, w):
        return jnp.dot(a.astype(mm_dtype), w.astype(mm_dtype),
                       preferred_element_type=jnp.float32)

    def run_stacked_lstm(layers, seq):            # seq: [B, S, D]
        for (w_ih, w_hh, b) in layers:
            H = w_hh.shape[0]

            def step(carry, xt):
                h, c = carry
                gates = mdot(xt, w_ih) + mdot(h, w_hh) + b
                i = jax.nn.sigmoid(gates[:, :H])
                f = jax.nn.sigmoid(gates[:, H:2 * H])
                g = jnp.tanh(gates[:, 2 * H:3 * H])
                o = jax.nn.sigmoid(gates[:, 3 * H:])
                c = f * c + i * g
                h = o * jnp.tanh(c)
                return (h, c), h

            init = (jnp.zeros((B, H), jnp.float32), jnp.zeros((B, H), jnp.float32))
            _, outs = jax.lax.scan(step, init, jnp.swapaxes(seq, 0, 1))
            seq = jnp.swapaxes(outs, 0, 1)
        return seq

    seq = jnp.broadcast_to(x[:, None, :], (B, seq_len, E))
    h1 = run_stacked_lstm(params["rnn1"], seq)
    h2 = run_stacked_lstm(params["rnn2"], h1)
    w_out, b_out = params["out"]
    return mdot(h2, w_out) + b_out


# ---------------------------------------------------------------------------
# Main
# ---------------------------------------------------------------------------

if __name__ == "__main__":
    seq_len, n_features, embedding_dim, n_layers = 8, 32, 8, 2
    batch = 8

    key = jax.random.PRNGKey(0)
    k_params, k_x = jax.random.split(key)

    params = init_params(k_params, seq_len, n_features, embedding_dim, n_layers)
    x = jax.random.normal(k_x, (batch, embedding_dim), jnp.float32)

    packed, layout = pack_params(params)

    fwd = jax.jit(partial(recurrent_decoder_forward, layout=layout, seq_len=seq_len))
    out = fwd(packed, x)
    jax.block_until_ready(out)

    assert out.shape == (batch, seq_len, n_features)
    assert bool(jnp.all(jnp.isfinite(out)))

    # (1) Tight check vs a reference using the same bf16 MXU operands
    #     (isolates structural correctness from bf16 rounding).
    ref_bf16 = reference_forward(params, x, seq_len, mm_dtype=jnp.bfloat16)
    assert jnp.allclose(out, ref_bf16, rtol=5e-3, atol=5e-3), \
        "mismatch vs bf16-matmul reference"

    # (2) Check vs the full-f32 module semantics; tolerance widened because the
    #     kernel uses bf16 matmul operands (per perf review) and the recurrence
    #     compounds rounding over 8 steps.  Structural bugs give O(0.1+) errors
    #     so this still catches them.
    ref_f32 = reference_forward(params, x, seq_len, mm_dtype=jnp.float32)
    assert jnp.allclose(out, ref_f32, rtol=3e-2, atol=3e-2), \
        "mismatch vs f32 reference"

    print("KERNEL_OK")
</pallas_src>

<mosaic_0001>
module attributes {stable_mosaic.version = 11 : i64} {
  func.func @kernel(%arg0: memref<8x8xf32, #tpu.memory_space<vmem>>, %arg1: memref<48x32xf32, #tpu.memory_space<vmem>>, %arg2: memref<56x64xf32, #tpu.memory_space<vmem>>, %arg3: memref<5x64xf32, #tpu.memory_space<vmem>>, %arg4: memref<8x256xf32, #tpu.memory_space<vmem>>) attributes {dimension_semantics = [], scalar_prefetch = 0 : i64, scratch_operands = 0 : i64, tpu.core_type = #tpu.core_type<tc>} {
    %c0 = arith.constant 0 : index
    %c0_0 = arith.constant 0 : index
    %0 = vector.load %arg0[%c0, %c0_0] : memref<8x8xf32, #tpu.memory_space<vmem>>, vector<8x8xf32>
    %c0_1 = arith.constant 0 : index
    %c0_2 = arith.constant 0 : index
    %1 = vector.load %arg1[%c0_1, %c0_2] : memref<48x32xf32, #tpu.memory_space<vmem>>, vector<8x32xf32>
    %2 = arith.truncf %1 : vector<8x32xf32> to vector<8x32xbf16>
    %c8 = arith.constant 8 : index
    %c0_3 = arith.constant 0 : index
    %3 = vector.load %arg1[%c8, %c0_3] : memref<48x32xf32, #tpu.memory_space<vmem>>, vector<8x32xf32>
    %4 = arith.truncf %3 : vector<8x32xf32> to vector<8x32xbf16>
    %c0_4 = arith.constant 0 : index
    %c0_5 = arith.constant 0 : index
    %5 = vector.load %arg3[%c0_4, %c0_5] : memref<5x64xf32, #tpu.memory_space<vmem>>, vector<1x32xf32>
    %6 = arith.truncf %0 : vector<8x8xf32> to vector<8x8xbf16>
    %cst = arith.constant dense<0.000000e+00> : vector<8x32xf32>
    %7 = tpu.matmul %6, %2, %cst {dimension_numbers = #tpu.dot_dimension_numbers<[1], [0], [0], [1], [0, 0, 1, 1], [], []>} : vector<8x8xbf16>, vector<8x32xbf16>, vector<8x32xf32> -> vector<8x32xf32>
    %8 = vector.broadcast %5 : vector<1x32xf32> to vector<8x32xf32>
    %9 = arith.addf %7, %8 : vector<8x32xf32>
    %c16 = arith.constant 16 : index
    %c0_6 = arith.constant 0 : index
    %10 = vector.load %arg1[%c16, %c0_6] : memref<48x32xf32, #tpu.memory_space<vmem>>, vector<16x32xf32>
    %11 = arith.truncf %10 : vector<16x32xf32> to vector<16x32xbf16>
    %c1 = arith.constant 1 : index
    %c0_7 = arith.constant 0 : index
    %12 = vector.load %arg3[%c1, %c0_7] : memref<5x64xf32, #tpu.memory_space<vmem>>, vector<1x32xf32>
    %c0_8 = arith.constant 0 : index
    %c0_9 = arith.constant 0 : index
    %13 = vector.load %arg2[%c0_8, %c0_9] : memref<56x64xf32, #tpu.memory_space<vmem>>, vector<24x64xf32>
    %14 = arith.truncf %13 : vector<24x64xf32> to vector<24x64xbf16>
    %c2 = arith.constant 2 : index
    %c0_10 = arith.constant 0 : index
    %15 = vector.load %arg3[%c2, %c0_10] : memref<5x64xf32, #tpu.memory_space<vmem>>, vector<1x64xf32>
    %c24 = arith.constant 24 : index
    %c0_11 = arith.constant 0 : index
    %16 = vector.load %arg2[%c24, %c0_11] : memref<56x64xf32, #tpu.memory_space<vmem>>, vector<32x64xf32>
    %17 = arith.truncf %16 : vector<32x64xf32> to vector<32x64xbf16>
    %c3 = arith.constant 3 : index
    %c0_12 = arith.constant 0 : index
    %18 = vector.load %arg3[%c3, %c0_12] : memref<5x64xf32, #tpu.memory_space<vmem>>, vector<1x64xf32>
    %c32 = arith.constant 32 : index
    %c0_13 = arith.constant 0 : index
    %19 = vector.load %arg1[%c32, %c0_13] : memref<48x32xf32, #tpu.memory_space<vmem>>, vector<16x32xf32>
    %20 = arith.truncf %19 : vector<16x32xf32> to vector<16x32xbf16>
    %c4 = arith.constant 4 : index
    %c0_14 = arith.constant 0 : index
    %21 = vector.load %arg3[%c4, %c0_14] : memref<5x64xf32, #tpu.memory_space<vmem>>, vector<1x32xf32>
    %cst_15 = arith.constant 0.000000e+00 : f32
    %22 = vector.broadcast %cst_15 : f32 to vector<8x8xf32>
    %cst_16 = arith.constant 0.000000e+00 : f32
    %23 = vector.broadcast %cst_16 : f32 to vector<8x8xf32>
    %cst_17 = arith.constant 0.000000e+00 : f32
    %24 = vector.broadcast %cst_17 : f32 to vector<8x16xf32>
    %cst_18 = arith.constant 0.000000e+00 : f32
    %25 = vector.broadcast %cst_18 : f32 to vector<8x16xf32>
    %cst_19 = arith.constant 0.000000e+00 : f32
    %26 = vector.broadcast %cst_19 : f32 to vector<8x8xf32>
    %cst_20 = arith.constant 0.000000e+00 : f32
    %27 = vector.broadcast %cst_20 : f32 to vector<8x8xf32>
    %cst_21 = arith.constant 0.000000e+00 : f32
    %28 = vector.broadcast %cst_21 : f32 to vector<8x16xf32>
    %cst_22 = arith.constant 0.000000e+00 : f32
    %29 = vector.broadcast %cst_22 : f32 to vector<8x16xf32>
    %30 = arith.truncf %22 : vector<8x8xf32> to vector<8x8xbf16>
    %cst_23 = arith.constant dense<0.000000e+00> : vector<8x32xf32>
    %31 = tpu.matmul %30, %4, %cst_23 {dimension_numbers = #tpu.dot_dimension_numbers<[1], [0], [0], [1], [0, 0, 1, 1], [], []>} : vector<8x8xbf16>, vector<8x32xbf16>, vector<8x32xf32> -> vector<8x32xf32>
    %32 = arith.addf %9, %31 : vector<8x32xf32>
    %33 = math.tanh %32 : vector<8x32xf32>
    %34 = vector.extract_strided_slice %33 {offsets = [0, 0], sizes = [8, 8], strides = [1, 1]} : vector<8x32xf32> to vector<8x8xf32>
    %cst_24 = arith.constant 1.000000e+00 : f32
    %35 = vector.broadcast %cst_24 : f32 to vector<8x8xf32>
    %36 = arith.addf %34, %35 : vector<8x8xf32>
    %cst_25 = arith.constant 5.000000e-01 : f32
    %37 = vector.broadcast %cst_25 : f32 to vector<8x8xf32>
    %38 = arith.mulf %37, %36 : vector<8x8xf32>
    %39 = vector.extract_strided_slice %33 {offsets = [0, 8], sizes = [8, 8], strides = [1, 1]} : vector<8x32xf32> to vector<8x8xf32>
    %cst_26 = arith.constant 1.000000e+00 : f32
    %40 = vector.broadcast %cst_26 : f32 to vector<8x8xf32>
    %41 = arith.addf %39, %40 : vector<8x8xf32>
    %cst_27 = arith.constant 5.000000e-01 : f32
    %42 = vector.broadcast %cst_27 : f32 to vector<8x8xf32>
    %43 = arith.mulf %42, %41 : vector<8x8xf32>
    %44 = vector.extract_strided_slice %33 {offsets = [0, 16], sizes = [8, 8], strides = [1, 1]} : vector<8x32xf32> to vector<8x8xf32>
    %45 = vector.extract_strided_slice %33 {offsets = [0, 24], sizes = [8, 8], strides = [1, 1]} : vector<8x32xf32> to vector<8x8xf32>
    %cst_28 = arith.constant 1.000000e+00 : f32
    %46 = vector.broadcast %cst_28 : f32 to vector<8x8xf32>
    %47 = arith.addf %45, %46 : vector<8x8xf32>
    %cst_29 = arith.constant 5.000000e-01 : f32
    %48 = vector.broadcast %cst_29 : f32 to vector<8x8xf32>
    %49 = arith.mulf %48, %47 : vector<8x8xf32>
    %50 = arith.mulf %43, %26 : vector<8x8xf32>
    %51 = arith.mulf %38, %44 : vector<8x8xf32>
    %52 = arith.addf %50, %51 : vector<8x8xf32>
    %53 = math.tanh %52 : vector<8x8xf32>
    %54 = arith.mulf %49, %53 : vector<8x8xf32>
    %55 = arith.truncf %54 : vector<8x8xf32> to vector<8x8xbf16>
    %cst_30 = arith.constant dense<0.000000e+00> : vector<8x32xf32>
    %56 = tpu.matmul %55, %4, %cst_30 {dimension_numbers = #tpu.dot_dimension_numbers<[1], [0], [0], [1], [0, 0, 1, 1], [], []>} : vector<8x8xbf16>, vector<8x32xbf16>, vector<8x32xf32> -> vector<8x32xf32>
    %57 = arith.addf %9, %56 : vector<8x32xf32>
    %58 = math.tanh %57 : vector<8x32xf32>
    %59 = vector.extract_strided_slice %58 {offsets = [0, 0], sizes = [8, 8], strides = [1, 1]} : vector<8x32xf32> to vector<8x8xf32>
    %cst_31 = arith.constant 1.000000e+00 : f32
    %60 = vector.broadcast %cst_31 : f32 to vector<8x8xf32>
    %61 = arith.addf %59, %60 : vector<8x8xf32>
    %cst_32 = arith.constant 5.000000e-01 : f32
    %62 = vector.broadcast %cst_32 : f32 to vector<8x8xf32>
    %63 = arith.mulf %62, %61 : vector<8x8xf32>
    %64 = vector.extract_strided_slice %58 {offsets = [0, 8], sizes = [8, 8], strides = [1, 1]} : vector<8x32xf32> to vector<8x8xf32>
    %cst_33 = arith.constant 1.000000e+00 : f32
    %65 = vector.broadcast %cst_33 : f32 to vector<8x8xf32>
    %66 = arith.addf %64, %65 : vector<8x8xf32>
    %cst_34 = arith.constant 5.000000e-01 : f32
    %67 = vector.broadcast %cst_34 : f32 to vector<8x8xf32>
    %68 = arith.mulf %67, %66 : vector<8x8xf32>
    %69 = vector.extract_strided_slice %58 {offsets = [0, 16], sizes = [8, 8], strides = [1, 1]} : vector<8x32xf32> to vector<8x8xf32>
    %70 = vector.extract_strided_slice %58 {offsets = [0, 24], sizes = [8, 8], strides = [1, 1]} : vector<8x32xf32> to vector<8x8xf32>
    %cst_35 = arith.constant 1.000000e+00 : f32
    %71 = vector.broadcast %cst_35 : f32 to vector<8x8xf32>
    %72 = arith.addf %70, %71 : vector<8x8xf32>
    %cst_36 = arith.constant 5.000000e-01 : f32
    %73 = vector.broadcast %cst_36 : f32 to vector<8x8xf32>
    %74 = arith.mulf %73, %72 : vector<8x8xf32>
    %75 = arith.mulf %68, %52 : vector<8x8xf32>
    %76 = arith.mulf %63, %69 : vector<8x8xf32>
    %77 = arith.addf %75, %76 : vector<8x8xf32>
    %78 = math.tanh %77 : vector<8x8xf32>
    %79 = arith.mulf %74, %78 : vector<8x8xf32>
    %80 = tpu.concatenate %54, %23 in 1 : vector<8x8xf32>, vector<8x8xf32> -> vector<8x16xf32>
    %81 = arith.truncf %80 : vector<8x16xf32> to vector<8x16xbf16>
    %cst_37 = arith.constant dense<0.000000e+00> : vector<8x32xf32>
    %82 = tpu.matmul %81, %11, %cst_37 {dimension_numbers = #tpu.dot_dimension_numbers<[1], [0], [0], [1], [0, 0, 1, 1], [], []>} : vector<8x16xbf16>, vector<16x32xbf16>, vector<8x32xf32> -> vector<8x32xf32>
    %83 = vector.broadcast %12 : vector<1x32xf32> to vector<8x32xf32>
    %84 = arith.addf %82, %83 : vector<8x32xf32>
    %85 = math.tanh %84 : vector<8x32xf32>
    %86 = vector.extract_strided_slice %85 {offsets = [0, 0], sizes = [8, 8], strides = [1, 1]} : vector<8x32xf32> to vector<8x8xf32>
    %cst_38 = arith.constant 1.000000e+00 : f32
    %87 = vector.broadcast %cst_38 : f32 to vector<8x8xf32>
    %88 = arith.addf %86, %87 : vector<8x8xf32>
    %cst_39 = arith.constant 5.000000e-01 : f32
    %89 = vector.broadcast %cst_39 : f32 to vector<8x8xf32>
    %90 = arith.mulf %89, %88 : vector<8x8xf32>
    %91 = vector.extract_strided_slice %85 {offsets = [0, 8], sizes = [8, 8], strides = [1, 1]} : vector<8x32xf32> to vector<8x8xf32>
    %cst_40 = arith.constant 1.000000e+00 : f32
    %92 = vector.broadcast %cst_40 : f32 to vector<8x8xf32>
    %93 = arith.addf %91, %92 : vector<8x8xf32>
    %cst_41 = arith.constant 5.000000e-01 : f32
    %94 = vector.broadcast %cst_41 : f32 to vector<8x8xf32>
    %95 = arith.mulf %94, %93 : vector<8x8xf32>
    %96 = vector.extract_strided_slice %85 {offsets = [0, 16], sizes = [8, 8], strides = [1, 1]} : vector<8x32xf32> to vector<8x8xf32>
    %97 = vector.extract_strided_slice %85 {offsets = [0, 24], sizes = [8, 8], strides = [1, 1]} : vector<8x32xf32> to vector<8x8xf32>
    %cst_42 = arith.constant 1.000000e+00 : f32
    %98 = vector.broadcast %cst_42 : f32 to vector<8x8xf32>
    %99 = arith.addf %97, %98 : vector<8x8xf32>
    %cst_43 = arith.constant 5.000000e-01 : f32
    %100 = vector.broadcast %cst_43 : f32 to vector<8x8xf32>
    %101 = arith.mulf %100, %99 : vector<8x8xf32>
    %102 = arith.mulf %95, %27 : vector<8x8xf32>
    %103 = arith.mulf %90, %96 : vector<8x8xf32>
    %104 = arith.addf %102, %103 : vector<8x8xf32>
    %105 = math.tanh %104 : vector<8x8xf32>
    %106 = arith.mulf %101, %105 : vector<8x8xf32>
    %107 = arith.truncf %79 : vector<8x8xf32> to vector<8x8xbf16>
    %cst_44 = arith.constant dense<0.000000e+00> : vector<8x32xf32>
    %108 = tpu.matmul %107, %4, %cst_44 {dimension_numbers = #tpu.dot_dimension_numbers<[1], [0], [0], [1], [0, 0, 1, 1], [], []>} : vector<8x8xbf16>, vector<8x32xbf16>, vector<8x32xf32> -> vector<8x32xf32>
    %109 = arith.addf %9, %108 : vector<8x32xf32>
    %110 = math.tanh %109 : vector<8x32xf32>
    %111 = vector.extract_strided_slice %110 {offsets = [0, 0], sizes = [8, 8], strides = [1, 1]} : vector<8x32xf32> to vector<8x8xf32>
    %cst_45 = arith.constant 1.000000e+00 : f32
    %112 = vector.broadcast %cst_45 : f32 to vector<8x8xf32>
    %113 = arith.addf %111, %112 : vector<8x8xf32>
    %cst_46 = arith.constant 5.000000e-01 : f32
    %114 = vector.broadcast %cst_46 : f32 to vector<8x8xf32>
    %115 = arith.mulf %114, %113 : vector<8x8xf32>
    %116 = vector.extract_strided_slice %110 {offsets = [0, 8], sizes = [8, 8], strides = [1, 1]} : vector<8x32xf32> to vector<8x8xf32>
    %cst_47 = arith.constant 1.000000e+00 : f32
    %117 = vector.broadcast %cst_47 : f32 to vector<8x8xf32>
    %118 = arith.addf %116, %117 : vector<8x8xf32>
    %cst_48 = arith.constant 5.000000e-01 : f32
    %119 = vector.broadcast %cst_48 : f32 to vector<8x8xf32>
    %120 = arith.mulf %119, %118 : vector<8x8xf32>
    %121 = vector.extract_strided_slice %110 {offsets = [0, 16], sizes = [8, 8], strides = [1, 1]} : vector<8x32xf32> to vector<8x8xf32>
    %122 = vector.extract_strided_slice %110 {offsets = [0, 24], sizes = [8, 8], strides = [1, 1]} : vector<8x32xf32> to vector<8x8xf32>
    %cst_49 = arith.constant 1.000000e+00 : f32
    %123 = vector.broadcast %cst_49 : f32 to vector<8x8xf32>
    %124 = arith.addf %122, %123 : vector<8x8xf32>
    %cst_50 = arith.constant 5.000000e-01 : f32
    %125 = vector.broadcast %cst_50 : f32 to vector<8x8xf32>
    %126 = arith.mulf %125, %124 : vector<8x8xf32>
    %127 = arith.mulf %120, %77 : vector<8x8xf32>
    %128 = arith.mulf %115, %121 : vector<8x8xf32>
    %129 = arith.addf %127, %128 : vector<8x8xf32>
    %130 = math.tanh %129 : vector<8x8xf32>
    %131 = arith.mulf %126, %130 : vector<8x8xf32>
    %132 = tpu.concatenate %79, %106 in 1 : vector<8x8xf32>, vector<8x8xf32> -> vector<8x16xf32>
    %133 = arith.truncf %132 : vector<8x16xf32> to vector<8x16xbf16>
    %cst_51 = arith.constant dense<0.000000e+00> : vector<8x32xf32>
    %134 = tpu.matmul %133, %11, %cst_51 {dimension_numbers = #tpu.dot_dimension_numbers<[1], [0], [0], [1], [0, 0, 1, 1], [], []>} : vector<8x16xbf16>, vector<16x32xbf16>, vector<8x32xf32> -> vector<8x32xf32>
    %135 = vector.broadcast %12 : vector<1x32xf32> to vector<8x32xf32>
    %136 = arith.addf %134, %135 : vector<8x32xf32>
    %137 = math.tanh %136 : vector<8x32xf32>
    %138 = vector.extract_strided_slice %137 {offsets = [0, 0], sizes = [8, 8], strides = [1, 1]} : vector<8x32xf32> to vector<8x8xf32>
    %cst_52 = arith.constant 1.000000e+00 : f32
    %139 = vector.broadcast %cst_52 : f32 to vector<8x8xf32>
    %140 = arith.addf %138, %139 : vector<8x8xf32>
    %cst_53 = arith.constant 5.000000e-01 : f32
    %141 = vector.broadcast %cst_53 : f32 to vector<8x8xf32>
    %142 = arith.mulf %141, %140 : vector<8x8xf32>
    %143 = vector.extract_strided_slice %137 {offsets = [0, 8], sizes = [8, 8], strides = [1, 1]} : vector<8x32xf32> to vector<8x8xf32>
    %cst_54 = arith.constant 1.000000e+00 : f32
    %144 = vector.broadcast %cst_54 : f32 to vector<8x8xf32>
    %145 = arith.addf %143, %144 : vector<8x8xf32>
    %cst_55 = arith.constant 5.000000e-01 : f32
    %146 = vector.broadcast %cst_55 : f32 to vector<8x8xf32>
    %147 = arith.mulf %146, %145 : vector<8x8xf32>
    %148 = vector.extract_strided_slice %137 {offsets = [0, 16], sizes = [8, 8], strides = [1, 1]} : vector<8x32xf32> to vector<8x8xf32>
    %149 = vector.extract_strided_slice %137 {offsets = [0, 24], sizes = [8, 8], strides = [1, 1]} : vector<8x32xf32> to vector<8x8xf32>
    %cst_56 = arith.constant 1.000000e+00 : f32
    %150 = vector.broadcast %cst_56 : f32 to vector<8x8xf32>
    %151 = arith.addf %149, %150 : vector<8x8xf32>
    %cst_57 = arith.constant 5.000000e-01 : f32
    %152 = vector.broadcast %cst_57 : f32 to vector<8x8xf32>
    %153 = arith.mulf %152, %151 : vector<8x8xf32>
    %154 = arith.mulf %147, %104 : vector<8x8xf32>
    %155 = arith.mulf %142, %148 : vector<8x8xf32>
    %156 = arith.addf %154, %155 : vector<8x8xf32>
    %157 = math.tanh %156 : vector<8x8xf32>
    %158 = arith.mulf %153, %157 : vector<8x8xf32>
    %159 = tpu.concatenate %106, %24 in 1 : vector<8x8xf32>, vector<8x16xf32> -> vector<8x24xf32>
    %160 = arith.truncf %159 : vector<8x24xf32> to vector<8x24xbf16>
    %cst_58 = arith.constant dense<0.000000e+00> : vector<8x64xf32>
    %161 = tpu.matmul %160, %14, %cst_58 {dimension_numbers = #tpu.dot_dimension_numbers<[1], [0], [0], [1], [0, 0, 1, 1], [], []>} : vector<8x24xbf16>, vector<24x64xbf16>, vector<8x64xf32> -> vector<8x64xf32>
    %162 = vector.broadcast %15 : vector<1x64xf32> to vector<8x64xf32>
    %163 = arith.addf %161, %162 : vector<8x64xf32>
    %164 = math.tanh %163 : vector<8x64xf32>
    %165 = vector.extract_strided_slice %164 {offsets = [0, 0], sizes = [8, 16], strides = [1, 1]} : vector<8x64xf32> to vector<8x16xf32>
    %cst_59 = arith.constant 1.000000e+00 : f32
    %166 = vector.broadcast %cst_59 : f32 to vector<8x16xf32>
    %167 = arith.addf %165, %166 : vector<8x16xf32>
    %cst_60 = arith.constant 5.000000e-01 : f32
    %168 = vector.broadcast %cst_60 : f32 to vector<8x16xf32>
    %169 = arith.mulf %168, %167 : vector<8x16xf32>
    %170 = vector.extract_strided_slice %164 {offsets = [0, 16], sizes = [8, 16], strides = [1, 1]} : vector<8x64xf32> to vector<8x16xf32>
    %cst_61 = arith.constant 1.000000e+00 : f32
    %171 = vector.broadcast %cst_61 : f32 to vector<8x16xf32>
    %172 = arith.addf %170, %171 : vector<8x16xf32>
    %cst_62 = arith.constant 5.000000e-01 : f32
    %173 = vector.broadcast %cst_62 : f32 to vector<8x16xf32>
    %174 = arith.mulf %173, %172 : vector<8x16xf32>
    %175 = vector.extract_strided_slice %164 {offsets = [0, 32], sizes = [8, 16], strides = [1, 1]} : vector<8x64xf32> to vector<8x16xf32>
    %176 = vector.extract_strided_slice %164 {offsets = [0, 48], sizes = [8, 16], strides = [1, 1]} : vector<8x64xf32> to vector<8x16xf32>
    %cst_63 = arith.constant 1.000000e+00 : f32
    %177 = vector.broadcast %cst_63 : f32 to vector<8x16xf32>
    %178 = arith.addf %176, %177 : vector<8x16xf32>
    %cst_64 = arith.constant 5.000000e-01 : f32
    %179 = vector.broadcast %cst_64 : f32 to vector<8x16xf32>
    %180 = arith.mulf %179, %178 : vector<8x16xf32>
    %181 = arith.mulf %174, %28 : vector<8x16xf32>
    %182 = arith.mulf %169, %175 : vector<8x16xf32>
    %183 = arith.addf %181, %182 : vector<8x16xf32>
    %184 = math.tanh %183 : vector<8x16xf32>
    %185 = arith.mulf %180, %184 : vector<8x16xf32>
    %186 = arith.truncf %131 : vector<8x8xf32> to vector<8x8xbf16>
    %cst_65 = arith.constant dense<0.000000e+00> : vector<8x32xf32>
    %187 = tpu.matmul %186, %4, %cst_65 {dimension_numbers = #tpu.dot_dimension_numbers<[1], [0], [0], [1], [0, 0, 1, 1], [], []>} : vector<8x8xbf16>, vector<8x32xbf16>, vector<8x32xf32> -> vector<8x32xf32>
    %188 = arith.addf %9, %187 : vector<8x32xf32>
    %189 = math.tanh %188 : vector<8x32xf32>
    %190 = vector.extract_strided_slice %189 {offsets = [0, 0], sizes = [8, 8], strides = [1, 1]} : vector<8x32xf32> to vector<8x8xf32>
    %cst_66 = arith.constant 1.000000e+00 : f32
    %191 = vector.broadcast %cst_66 : f32 to vector<8x8xf32>
    %192 = arith.addf %190, %191 : vector<8x8xf32>
    %cst_67 = arith.constant 5.000000e-01 : f32
    %193 = vector.broadcast %cst_67 : f32 to vector<8x8xf32>
    %194 = arith.mulf %193, %192 : vector<8x8xf32>
    %195 = vector.extract_strided_slice %189 {offsets = [0, 8], sizes = [8, 8], strides = [1, 1]} : vector<8x32xf32> to vector<8x8xf32>
    %cst_68 = arith.constant 1.000000e+00 : f32
    %196 = vector.broadcast %cst_68 : f32 to vector<8x8xf32>
    %197 = arith.addf %195, %196 : vector<8x8xf32>
    %cst_69 = arith.constant 5.000000e-01 : f32
    %198 = vector.broadcast %cst_69 : f32 to vector<8x8xf32>
    %199 = arith.mulf %198, %197 : vector<8x8xf32>
    %200 = vector.extract_strided_slice %189 {offsets = [0, 16], sizes = [8, 8], strides = [1, 1]} : vector<8x32xf32> to vector<8x8xf32>
    %201 = vector.extract_strided_slice %189 {offsets = [0, 24], sizes = [8, 8], strides = [1, 1]} : vector<8x32xf32> to vector<8x8xf32>
    %cst_70 = arith.constant 1.000000e+00 : f32
    %202 = vector.broadcast %cst_70 : f32 to vector<8x8xf32>
    %203 = arith.addf %201, %202 : vector<8x8xf32>
    %cst_71 = arith.constant 5.000000e-01 : f32
    %204 = vector.broadcast %cst_71 : f32 to vector<8x8xf32>
    %205 = arith.mulf %204, %203 : vector<8x8xf32>
    %206 = arith.mulf %199, %129 : vector<8x8xf32>
    %207 = arith.mulf %194, %200 : vector<8x8xf32>
    %208 = arith.addf %206, %207 : vector<8x8xf32>
    %209 = math.tanh %208 : vector<8x8xf32>
    %210 = arith.mulf %205, %209 : vector<8x8xf32>
    %211 = tpu.concatenate %131, %158 in 1 : vector<8x8xf32>, vector<8x8xf32> -> vector<8x16xf32>
    %212 = arith.truncf %211 : vector<8x16xf32> to vector<8x16xbf16>
    %cst_72 = arith.constant dense<0.000000e+00> : vector<8x32xf32>
    %213 = tpu.matmul %212, %11, %cst_72 {dimension_numbers = #tpu.dot_dimension_numbers<[1], [0], [0], [1], [0, 0, 1, 1], [], []>} : vector<8x16xbf16>, vector<16x32xbf16>, vector<8x32xf32> -> vector<8x32xf32>
    %214 = vector.broadcast %12 : vector<1x32xf32> to vector<8x32xf32>
    %215 = arith.addf %213, %214 : vector<8x32xf32>
    %216 = math.tanh %215 : vector<8x32xf32>
    %217 = vector.extract_strided_slice %216 {offsets = [0, 0], sizes = [8, 8], strides = [1, 1]} : vector<8x32xf32> to vector<8x8xf32>
    %cst_73 = arith.constant 1.000000e+00 : f32
    %218 = vector.broadcast %cst_73 : f32 to vector<8x8xf32>
    %219 = arith.addf %217, %218 : vector<8x8xf32>
    %cst_74 = arith.constant 5.000000e-01 : f32
    %220 = vector.broadcast %cst_74 : f32 to vector<8x8xf32>
    %221 = arith.mulf %220, %219 : vector<8x8xf32>
    %222 = vector.extract_strided_slice %216 {offsets = [0, 8], sizes = [8, 8], strides = [1, 1]} : vector<8x32xf32> to vector<8x8xf32>
    %cst_75 = arith.constant 1.000000e+00 : f32
    %223 = vector.broadcast %cst_75 : f32 to vector<8x8xf32>
    %224 = arith.addf %222, %223 : vector<8x8xf32>
    %cst_76 = arith.constant 5.000000e-01 : f32
    %225 = vector.broadcast %cst_76 : f32 to vector<8x8xf32>
    %226 = arith.mulf %225, %224 : vector<8x8xf32>
    %227 = vector.extract_strided_slice %216 {offsets = [0, 16], sizes = [8, 8], strides = [1, 1]} : vector<8x32xf32> to vector<8x8xf32>
    %228 = vector.extract_strided_slice %216 {offsets = [0, 24], sizes = [8, 8], strides = [1, 1]} : vector<8x32xf32> to vector<8x8xf32>
    %cst_77 = arith.constant 1.000000e+00 : f32
    %229 = vector.broadcast %cst_77 : f32 to vector<8x8xf32>
    %230 = arith.addf %228, %229 : vector<8x8xf32>
    %cst_78 = arith.constant 5.000000e-01 : f32
    %231 = vector.broadcast %cst_78 : f32 to vector<8x8xf32>
    %232 = arith.mulf %231, %230 : vector<8x8xf32>
    %233 = arith.mulf %226, %156 : vector<8x8xf32>
    %234 = arith.mulf %221, %227 : vector<8x8xf32>
    %235 = arith.addf %233, %234 : vector<8x8xf32>
    %236 = math.tanh %235 : vector<8x8xf32>
    %237 = arith.mulf %232, %236 : vector<8x8xf32>
    %238 = tpu.concatenate %158, %185 in 1 : vector<8x8xf32>, vector<8x16xf32> -> vector<8x24xf32>
    %239 = arith.truncf %238 : vector<8x24xf32> to vector<8x24xbf16>
    %cst_79 = arith.constant dense<0.000000e+00> : vector<8x64xf32>
    %240 = tpu.matmul %239, %14, %cst_79 {dimension_numbers = #tpu.dot_dimension_numbers<[1], [0], [0], [1], [0, 0, 1, 1], [], []>} : vector<8x24xbf16>, vector<24x64xbf16>, vector<8x64xf32> -> vector<8x64xf32>
    %241 = vector.broadcast %15 : vector<1x64xf32> to vector<8x64xf32>
    %242 = arith.addf %240, %241 : vector<8x64xf32>
    %243 = math.tanh %242 : vector<8x64xf32>
    %244 = vector.extract_strided_slice %243 {offsets = [0, 0], sizes = [8, 16], strides = [1, 1]} : vector<8x64xf32> to vector<8x16xf32>
    %cst_80 = arith.constant 1.000000e+00 : f32
    %245 = vector.broadcast %cst_80 : f32 to vector<8x16xf32>
    %246 = arith.addf %244, %245 : vector<8x16xf32>
    %cst_81 = arith.constant 5.000000e-01 : f32
    %247 = vector.broadcast %cst_81 : f32 to vector<8x16xf32>
    %248 = arith.mulf %247, %246 : vector<8x16xf32>
    %249 = vector.extract_strided_slice %243 {offsets = [0, 16], sizes = [8, 16], strides = [1, 1]} : vector<8x64xf32> to vector<8x16xf32>
    %cst_82 = arith.constant 1.000000e+00 : f32
    %250 = vector.broadcast %cst_82 : f32 to vector<8x16xf32>
    %251 = arith.addf %249, %250 : vector<8x16xf32>
    %cst_83 = arith.constant 5.000000e-01 : f32
    %252 = vector.broadcast %cst_83 : f32 to vector<8x16xf32>
    %253 = arith.mulf %252, %251 : vector<8x16xf32>
    %254 = vector.extract_strided_slice %243 {offsets = [0, 32], sizes = [8, 16], strides = [1, 1]} : vector<8x64xf32> to vector<8x16xf32>
    %255 = vector.extract_strided_slice %243 {offsets = [0, 48], sizes = [8, 16], strides = [1, 1]} : vector<8x64xf32> to vector<8x16xf32>
    %cst_84 = arith.constant 1.000000e+00 : f32
    %256 = vector.broadcast %cst_84 : f32 to vector<8x16xf32>
    %257 = arith.addf %255, %256 : vector<8x16xf32>
    %cst_85 = arith.constant 5.000000e-01 : f32
    %258 = vector.broadcast %cst_85 : f32 to vector<8x16xf32>
    %259 = arith.mulf %258, %257 : vector<8x16xf32>
    %260 = arith.mulf %253, %183 : vector<8x16xf32>
    %261 = arith.mulf %248, %254 : vector<8x16xf32>
    %262 = arith.addf %260, %261 : vector<8x16xf32>
    %263 = math.tanh %262 : vector<8x16xf32>
    %264 = arith.mulf %259, %263 : vector<8x16xf32>
    %265 = tpu.concatenate %185, %25 in 1 : vector<8x16xf32>, vector<8x16xf32> -> vector<8x32xf32>
    %266 = arith.truncf %265 : vector<8x32xf32> to vector<8x32xbf16>
    %cst_86 = arith.constant dense<0.000000e+00> : vector<8x64xf32>
    %267 = tpu.matmul %266, %17, %cst_86 {dimension_numbers = #tpu.dot_dimension_numbers<[1], [0], [0], [1], [0, 0, 1, 1], [], []>} : vector<8x32xbf16>, vector<32x64xbf16>, vector<8x64xf32> -> vector<8x64xf32>
    %268 = vector.broadcast %18 : vector<1x64xf32> to vector<8x64xf32>
    %269 = arith.addf %267, %268 : vector<8x64xf32>
    %270 = math.tanh %269 : vector<8x64xf32>
    %271 = vector.extract_strided_slice %270 {offsets = [0, 0], sizes = [8, 16], strides = [1, 1]} : vector<8x64xf32> to vector<8x16xf32>
    %cst_87 = arith.constant 1.000000e+00 : f32
    %272 = vector.broadcast %cst_87 : f32 to vector<8x16xf32>
    %273 = arith.addf %271, %272 : vector<8x16xf32>
    %cst_88 = arith.constant 5.000000e-01 : f32
    %274 = vector.broadcast %cst_88 : f32 to vector<8x16xf32>
    %275 = arith.mulf %274, %273 : vector<8x16xf32>
    %276 = vector.extract_strided_slice %270 {offsets = [0, 16], sizes = [8, 16], strides = [1, 1]} : vector<8x64xf32> to vector<8x16xf32>
    %cst_89 = arith.constant 1.000000e+00 : f32
    %277 = vector.broadcast %cst_89 : f32 to vector<8x16xf32>
    %278 = arith.addf %276, %277 : vector<8x16xf32>
    %cst_90 = arith.constant 5.000000e-01 : f32
    %279 = vector.broadcast %cst_90 : f32 to vector<8x16xf32>
    %280 = arith.mulf %279, %278 : vector<8x16xf32>
    %281 = vector.extract_strided_slice %270 {offsets = [0, 32], sizes = [8, 16], strides = [1, 1]} : vector<8x64xf32> to vector<8x16xf32>
    %282 = vector.extract_strided_slice %270 {offsets = [0, 48], sizes = [8, 16], strides = [1, 1]} : vector<8x64xf32> to vector<8x16xf32>
    %cst_91 = arith.constant 1.000000e+00 : f32
    %283 = vector.broadcast %cst_91 : f32 to vector<8x16xf32>
    %284 = arith.addf %282, %283 : vector<8x16xf32>
    %cst_92 = arith.constant 5.000000e-01 : f32
    %285 = vector.broadcast %cst_92 : f32 to vector<8x16xf32>
    %286 = arith.mulf %285, %284 : vector<8x16xf32>
    %287 = arith.mulf %280, %29 : vector<8x16xf32>
    %288 = arith.mulf %275, %281 : vector<8x16xf32>
    %289 = arith.addf %287, %288 : vector<8x16xf32>
    %290 = math.tanh %289 : vector<8x16xf32>
    %291 = arith.mulf %286, %290 : vector<8x16xf32>
    %292 = arith.truncf %291 : vector<8x16xf32> to vector<8x16xbf16>
    %cst_93 = arith.constant dense<0.000000e+00> : vector<8x32xf32>
    %293 = tpu.matmul %292, %20, %cst_93 {dimension_numbers = #tpu.dot_dimension_numbers<[1], [0], [0], [1], [0, 0, 1, 1], [], []>} : vector<8x16xbf16>, vector<16x32xbf16>, vector<8x32xf32> -> vector<8x32xf32>
    %294 = vector.broadcast %21 : vector<1x32xf32> to vector<8x32xf32>
    %295 = arith.addf %293, %294 : vector<8x32xf32>
    %c0_94 = arith.constant 0 : index
    %c0_95 = arith.constant 0 : index
    %296 = vector.load %arg4[%c0_94, %c0_95] : memref<8x256xf32, #tpu.memory_space<vmem>>, vector<8x32xf32>
    tpu.vector_store %arg4[%c0_94, %c0_95], %295 {strides = array<i32>} : memref<8x256xf32, #tpu.memory_space<vmem>>, vector<8x32xf32>,
    %297 = arith.truncf %210 : vector<8x8xf32> to vector<8x8xbf16>
    %cst_96 = arith.constant dense<0.000000e+00> : vector<8x32xf32>
    %298 = tpu.matmul %297, %4, %cst_96 {dimension_numbers = #tpu.dot_dimension_numbers<[1], [0], [0], [1], [0, 0, 1, 1], [], []>} : vector<8x8xbf16>, vector<8x32xbf16>, vector<8x32xf32> -> vector<8x32xf32>
    %299 = arith.addf %9, %298 : vector<8x32xf32>
    %300 = math.tanh %299 : vector<8x32xf32>
    %301 = vector.extract_strided_slice %300 {offsets = [0, 0], sizes = [8, 8], strides = [1, 1]} : vector<8x32xf32> to vector<8x8xf32>
    %cst_97 = arith.constant 1.000000e+00 : f32
    %302 = vector.broadcast %cst_97 : f32 to vector<8x8xf32>
    %303 = arith.addf %301, %302 : vector<8x8xf32>
    %cst_98 = arith.constant 5.000000e-01 : f32
    %304 = vector.broadcast %cst_98 : f32 to vector<8x8xf32>
    %305 = arith.mulf %304, %303 : vector<8x8xf32>
    %306 = vector.extract_strided_slice %300 {offsets = [0, 8], sizes = [8, 8], strides = [1, 1]} : vector<8x32xf32> to vector<8x8xf32>
    %cst_99 = arith.constant 1.000000e+00 : f32
    %307 = vector.broadcast %cst_99 : f32 to vector<8x8xf32>
    %308 = arith.addf %306, %307 : vector<8x8xf32>
    %cst_100 = arith.constant 5.000000e-01 : f32
    %309 = vector.broadcast %cst_100 : f32 to vector<8x8xf32>
    %310 = arith.mulf %309, %308 : vector<8x8xf32>
    %311 = vector.extract_strided_slice %300 {offsets = [0, 16], sizes = [8, 8], strides = [1, 1]} : vector<8x32xf32> to vector<8x8xf32>
    %312 = vector.extract_strided_slice %300 {offsets = [0, 24], sizes = [8, 8], strides = [1, 1]} : vector<8x32xf32> to vector<8x8xf32>
    %cst_101 = arith.constant 1.000000e+00 : f32
    %313 = vector.broadcast %cst_101 : f32 to vector<8x8xf32>
    %314 = arith.addf %312, %313 : vector<8x8xf32>
    %cst_102 = arith.constant 5.000000e-01 : f32
    %315 = vector.broadcast %cst_102 : f32 to vector<8x8xf32>
    %316 = arith.mulf %315, %314 : vector<8x8xf32>
    %317 = arith.mulf %310, %208 : vector<8x8xf32>
    %318 = arith.mulf %305, %311 : vector<8x8xf32>
    %319 = arith.addf %317, %318 : vector<8x8xf32>
    %320 = math.tanh %319 : vector<8x8xf32>
    %321 = arith.mulf %316, %320 : vector<8x8xf32>
    %322 = tpu.concatenate %210, %237 in 1 : vector<8x8xf32>, vector<8x8xf32> -> vector<8x16xf32>
    %323 = arith.truncf %322 : vector<8x16xf32> to vector<8x16xbf16>
    %cst_103 = arith.constant dense<0.000000e+00> : vector<8x32xf32>
    %324 = tpu.matmul %323, %11, %cst_103 {dimension_numbers = #tpu.dot_dimension_numbers<[1], [0], [0], [1], [0, 0, 1, 1], [], []>} : vector<8x16xbf16>, vector<16x32xbf16>, vector<8x32xf32> -> vector<8x32xf32>
    %325 = vector.broadcast %12 : vector<1x32xf32> to vector<8x32xf32>
    %326 = arith.addf %324, %325 : vector<8x32xf32>
    %327 = math.tanh %326 : vector<8x32xf32>
    %328 = vector.extract_strided_slice %327 {offsets = [0, 0], sizes = [8, 8], strides = [1, 1]} : vector<8x32xf32> to vector<8x8xf32>
    %cst_104 = arith.constant 1.000000e+00 : f32
    %329 = vector.broadcast %cst_104 : f32 to vector<8x8xf32>
    %330 = arith.addf %328, %329 : vector<8x8xf32>
    %cst_105 = arith.constant 5.000000e-01 : f32
    %331 = vector.broadcast %cst_105 : f32 to vector<8x8xf32>
    %332 = arith.mulf %331, %330 : vector<8x8xf32>
    %333 = vector.extract_strided_slice %327 {offsets = [0, 8], sizes = [8, 8], strides = [1, 1]} : vector<8x32xf32> to vector<8x8xf32>
    %cst_106 = arith.constant 1.000000e+00 : f32
    %334 = vector.broadcast %cst_106 : f32 to vector<8x8xf32>
    %335 = arith.addf %333, %334 : vector<8x8xf32>
    %cst_107 = arith.constant 5.000000e-01 : f32
    %336 = vector.broadcast %cst_107 : f32 to vector<8x8xf32>
    %337 = arith.mulf %336, %335 : vector<8x8xf32>
    %338 = vector.extract_strided_slice %327 {offsets = [0, 16], sizes = [8, 8], strides = [1, 1]} : vector<8x32xf32> to vector<8x8xf32>
    %339 = vector.extract_strided_slice %327 {offsets = [0, 24], sizes = [8, 8], strides = [1, 1]} : vector<8x32xf32> to vector<8x8xf32>
    %cst_108 = arith.constant 1.000000e+00 : f32
    %340 = vector.broadcast %cst_108 : f32 to vector<8x8xf32>
    %341 = arith.addf %339, %340 : vector<8x8xf32>
    %cst_109 = arith.constant 5.000000e-01 : f32
    %342 = vector.broadcast %cst_109 : f32 to vector<8x8xf32>
    %343 = arith.mulf %342, %341 : vector<8x8xf32>
    %344 = arith.mulf %337, %235 : vector<8x8xf32>
    %345 = arith.mulf %332, %338 : vector<8x8xf32>
    %346 = arith.addf %344, %345 : vector<8x8xf32>
    %347 = math.tanh %346 : vector<8x8xf32>
    %348 = arith.mulf %343, %347 : vector<8x8xf32>
    %349 = tpu.concatenate %237, %264 in 1 : vector<8x8xf32>, vector<8x16xf32> -> vector<8x24xf32>
    %350 = arith.truncf %349 : vector<8x24xf32> to vector<8x24xbf16>
    %cst_110 = arith.constant dense<0.000000e+00> : vector<8x64xf32>
    %351 = tpu.matmul %350, %14, %cst_110 {dimension_numbers = #tpu.dot_dimension_numbers<[1], [0], [0], [1], [0, 0, 1, 1], [], []>} : vector<8x24xbf16>, vector<24x64xbf16>, vector<8x64xf32> -> vector<8x64xf32>
    %352 = vector.broadcast %15 : vector<1x64xf32> to vector<8x64xf32>
    %353 = arith.addf %351, %352 : vector<8x64xf32>
    %354 = math.tanh %353 : vector<8x64xf32>
    %355 = vector.extract_strided_slice %354 {offsets = [0, 0], sizes = [8, 16], strides = [1, 1]} : vector<8x64xf32> to vector<8x16xf32>
    %cst_111 = arith.constant 1.000000e+00 : f32
    %356 = vector.broadcast %cst_111 : f32 to vector<8x16xf32>
    %357 = arith.addf %355, %356 : vector<8x16xf32>
    %cst_112 = arith.constant 5.000000e-01 : f32
    %358 = vector.broadcast %cst_112 : f32 to vector<8x16xf32>
    %359 = arith.mulf %358, %357 : vector<8x16xf32>
    %360 = vector.extract_strided_slice %354 {offsets = [0, 16], sizes = [8, 16], strides = [1, 1]} : vector<8x64xf32> to vector<8x16xf32>
    %cst_113 = arith.constant 1.000000e+00 : f32
    %361 = vector.broadcast %cst_113 : f32 to vector<8x16xf32>
    %362 = arith.addf %360, %361 : vector<8x16xf32>
    %cst_114 = arith.constant 5.000000e-01 : f32
    %363 = vector.broadcast %cst_114 : f32 to vector<8x16xf32>
    %364 = arith.mulf %363, %362 : vector<8x16xf32>
    %365 = vector.extract_strided_slice %354 {offsets = [0, 32], sizes = [8, 16], strides = [1, 1]} : vector<8x64xf32> to vector<8x16xf32>
    %366 = vector.extract_strided_slice %354 {offsets = [0, 48], sizes = [8, 16], strides = [1, 1]} : vector<8x64xf32> to vector<8x16xf32>
    %cst_115 = arith.constant 1.000000e+00 : f32
    %367 = vector.broadcast %cst_115 : f32 to vector<8x16xf32>
    %368 = arith.addf %366, %367 : vector<8x16xf32>
    %cst_116 = arith.constant 5.000000e-01 : f32
    %369 = vector.broadcast %cst_116 : f32 to vector<8x16xf32>
    %370 = arith.mulf %369, %368 : vector<8x16xf32>
    %371 = arith.mulf %364, %262 : vector<8x16xf32>
    %372 = arith.mulf %359, %365 : vector<8x16xf32>
    %373 = arith.addf %371, %372 : vector<8x16xf32>
    %374 = math.tanh %373 : vector<8x16xf32>
    %375 = arith.mulf %370, %374 : vector<8x16xf32>
    %376 = tpu.concatenate %264, %291 in 1 : vector<8x16xf32>, vector<8x16xf32> -> vector<8x32xf32>
    %377 = arith.truncf %376 : vector<8x32xf32> to vector<8x32xbf16>
    %cst_117 = arith.constant dense<0.000000e+00> : vector<8x64xf32>
    %378 = tpu.matmul %377, %17, %cst_117 {dimension_numbers = #tpu.dot_dimension_numbers<[1], [0], [0], [1], [0, 0, 1, 1], [], []>} : vector<8x32xbf16>, vector<32x64xbf16>, vector<8x64xf32> -> vector<8x64xf32>
    %379 = vector.broadcast %18 : vector<1x64xf32> to vector<8x64xf32>
    %380 = arith.addf %378, %379 : vector<8x64xf32>
    %381 = math.tanh %380 : vector<8x64xf32>
    %382 = vector.extract_strided_slice %381 {offsets = [0, 0], sizes = [8, 16], strides = [1, 1]} : vector<8x64xf32> to vector<8x16xf32>
    %cst_118 = arith.constant 1.000000e+00 : f32
    %383 = vector.broadcast %cst_118 : f32 to vector<8x16xf32>
    %384 = arith.addf %382, %383 : vector<8x16xf32>
    %cst_119 = arith.constant 5.000000e-01 : f32
    %385 = vector.broadcast %cst_119 : f32 to vector<8x16xf32>
    %386 = arith.mulf %385, %384 : vector<8x16xf32>
    %387 = vector.extract_strided_slice %381 {offsets = [0, 16], sizes = [8, 16], strides = [1, 1]} : vector<8x64xf32> to vector<8x16xf32>
    %cst_120 = arith.constant 1.000000e+00 : f32
    %388 = vector.broadcast %cst_120 : f32 to vector<8x16xf32>
    %389 = arith.addf %387, %388 : vector<8x16xf32>
    %cst_121 = arith.constant 5.000000e-01 : f32
    %390 = vector.broadcast %cst_121 : f32 to vector<8x16xf32>
    %391 = arith.mulf %390, %389 : vector<8x16xf32>
    %392 = vector.extract_strided_slice %381 {offsets = [0, 32], sizes = [8, 16], strides = [1, 1]} : vector<8x64xf32> to vector<8x16xf32>
    %393 = vector.extract_strided_slice %381 {offsets = [0, 48], sizes = [8, 16], strides = [1, 1]} : vector<8x64xf32> to vector<8x16xf32>
    %cst_122 = arith.constant 1.000000e+00 : f32
    %394 = vector.broadcast %cst_122 : f32 to vector<8x16xf32>
    %395 = arith.addf %393, %394 : vector<8x16xf32>
    %cst_123 = arith.constant 5.000000e-01 : f32
    %396 = vector.broadcast %cst_123 : f32 to vector<8x16xf32>
    %397 = arith.mulf %396, %395 : vector<8x16xf32>
    %398 = arith.mulf %391, %289 : vector<8x16xf32>
    %399 = arith.mulf %386, %392 : vector<8x16xf32>
    %400 = arith.addf %398, %399 : vector<8x16xf32>
    %401 = math.tanh %400 : vector<8x16xf32>
    %402 = arith.mulf %397, %401 : vector<8x16xf32>
    %403 = arith.truncf %402 : vector<8x16xf32> to vector<8x16xbf16>
    %cst_124 = arith.constant dense<0.000000e+00> : vector<8x32xf32>
    %404 = tpu.matmul %403, %20, %cst_124 {dimension_numbers = #tpu.dot_dimension_numbers<[1], [0], [0], [1], [0, 0, 1, 1], [], []>} : vector<8x16xbf16>, vector<16x32xbf16>, vector<8x32xf32> -> vector<8x32xf32>
    %405 = vector.broadcast %21 : vector<1x32xf32> to vector<8x32xf32>
    %406 = arith.addf %404, %405 : vector<8x32xf32>
    %c0_125 = arith.constant 0 : index
    %c32_126 = arith.constant 32 : index
    %407 = vector.load %arg4[%c0_125, %c32_126] : memref<8x256xf32, #tpu.memory_space<vmem>>, vector<8x32xf32>
    tpu.vector_store %arg4[%c0_125, %c32_126], %406 {strides = array<i32>} : memref<8x256xf32, #tpu.memory_space<vmem>>, vector<8x32xf32>,
    %408 = arith.truncf %321 : vector<8x8xf32> to vector<8x8xbf16>
    %cst_127 = arith.constant dense<0.000000e+00> : vector<8x32xf32>
    %409 = tpu.matmul %408, %4, %cst_127 {dimension_numbers = #tpu.dot_dimension_numbers<[1], [0], [0], [1], [0, 0, 1, 1], [], []>} : vector<8x8xbf16>, vector<8x32xbf16>, vector<8x32xf32> -> vector<8x32xf32>
    %410 = arith.addf %9, %409 : vector<8x32xf32>
    %411 = math.tanh %410 : vector<8x32xf32>
    %412 = vector.extract_strided_slice %411 {offsets = [0, 0], sizes = [8, 8], strides = [1, 1]} : vector<8x32xf32> to vector<8x8xf32>
    %cst_128 = arith.constant 1.000000e+00 : f32
    %413 = vector.broadcast %cst_128 : f32 to vector<8x8xf32>
    %414 = arith.addf %412, %413 : vector<8x8xf32>
    %cst_129 = arith.constant 5.000000e-01 : f32
    %415 = vector.broadcast %cst_129 : f32 to vector<8x8xf32>
    %416 = arith.mulf %415, %414 : vector<8x8xf32>
    %417 = vector.extract_strided_slice %411 {offsets = [0, 8], sizes = [8, 8], strides = [1, 1]} : vector<8x32xf32> to vector<8x8xf32>
    %cst_130 = arith.constant 1.000000e+00 : f32
    %418 = vector.broadcast %cst_130 : f32 to vector<8x8xf32>
    %419 = arith.addf %417, %418 : vector<8x8xf32>
    %cst_131 = arith.constant 5.000000e-01 : f32
    %420 = vector.broadcast %cst_131 : f32 to vector<8x8xf32>
    %421 = arith.mulf %420, %419 : vector<8x8xf32>
    %422 = vector.extract_strided_slice %411 {offsets = [0, 16], sizes = [8, 8], strides = [1, 1]} : vector<8x32xf32> to vector<8x8xf32>
    %423 = vector.extract_strided_slice %411 {offsets = [0, 24], sizes = [8, 8], strides = [1, 1]} : vector<8x32xf32> to vector<8x8xf32>
    %cst_132 = arith.constant 1.000000e+00 : f32
    %424 = vector.broadcast %cst_132 : f32 to vector<8x8xf32>
    %425 = arith.addf %423, %424 : vector<8x8xf32>
    %cst_133 = arith.constant 5.000000e-01 : f32
    %426 = vector.broadcast %cst_133 : f32 to vector<8x8xf32>
    %427 = arith.mulf %426, %425 : vector<8x8xf32>
    %428 = arith.mulf %421, %319 : vector<8x8xf32>
    %429 = arith.mulf %416, %422 : vector<8x8xf32>
    %430 = arith.addf %428, %429 : vector<8x8xf32>
    %431 = math.tanh %430 : vector<8x8xf32>
    %432 = arith.mulf %427, %431 : vector<8x8xf32>
    %433 = tpu.concatenate %321, %348 in 1 : vector<8x8xf32>, vector<8x8xf32> -> vector<8x16xf32>
    %434 = arith.truncf %433 : vector<8x16xf32> to vector<8x16xbf16>
    %cst_134 = arith.constant dense<0.000000e+00> : vector<8x32xf32>
    %435 = tpu.matmul %434, %11, %cst_134 {dimension_numbers = #tpu.dot_dimension_numbers<[1], [0], [0], [1], [0, 0, 1, 1], [], []>} : vector<8x16xbf16>, vector<16x32xbf16>, vector<8x32xf32> -> vector<8x32xf32>
    %436 = vector.broadcast %12 : vector<1x32xf32> to vector<8x32xf32>
    %437 = arith.addf %435, %436 : vector<8x32xf32>
    %438 = math.tanh %437 : vector<8x32xf32>
    %439 = vector.extract_strided_slice %438 {offsets = [0, 0], sizes = [8, 8], strides = [1, 1]} : vector<8x32xf32> to vector<8x8xf32>
    %cst_135 = arith.constant 1.000000e+00 : f32
    %440 = vector.broadcast %cst_135 : f32 to vector<8x8xf32>
    %441 = arith.addf %439, %440 : vector<8x8xf32>
    %cst_136 = arith.constant 5.000000e-01 : f32
    %442 = vector.broadcast %cst_136 : f32 to vector<8x8xf32>
    %443 = arith.mulf %442, %441 : vector<8x8xf32>
    %444 = vector.extract_strided_slice %438 {offsets = [0, 8], sizes = [8, 8], strides = [1, 1]} : vector<8x32xf32> to vector<8x8xf32>
    %cst_137 = arith.constant 1.000000e+00 : f32
    %445 = vector.broadcast %cst_137 : f32 to vector<8x8xf32>
    %446 = arith.addf %444, %445 : vector<8x8xf32>
    %cst_138 = arith.constant 5.000000e-01 : f32
    %447 = vector.broadcast %cst_138 : f32 to vector<8x8xf32>
    %448 = arith.mulf %447, %446 : vector<8x8xf32>
    %449 = vector.extract_strided_slice %438 {offsets = [0, 16], sizes = [8, 8], strides = [1, 1]} : vector<8x32xf32> to vector<8x8xf32>
    %450 = vector.extract_strided_slice %438 {offsets = [0, 24], sizes = [8, 8], strides = [1, 1]} : vector<8x32xf32> to vector<8x8xf32>
    %cst_139 = arith.constant 1.000000e+00 : f32
    %451 = vector.broadcast %cst_139 : f32 to vector<8x8xf32>
    %452 = arith.addf %450, %451 : vector<8x8xf32>
    %cst_140 = arith.constant 5.000000e-01 : f32
    %453 = vector.broadcast %cst_140 : f32 to vector<8x8xf32>
    %454 = arith.mulf %453, %452 : vector<8x8xf32>
    %455 = arith.mulf %448, %346 : vector<8x8xf32>
    %456 = arith.mulf %443, %449 : vector<8x8xf32>
    %457 = arith.addf %455, %456 : vector<8x8xf32>
    %458 = math.tanh %457 : vector<8x8xf32>
    %459 = arith.mulf %454, %458 : vector<8x8xf32>
    %460 = tpu.concatenate %348, %375 in 1 : vector<8x8xf32>, vector<8x16xf32> -> vector<8x24xf32>
    %461 = arith.truncf %460 : vector<8x24xf32> to vector<8x24xbf16>
    %cst_141 = arith.constant dense<0.000000e+00> : vector<8x64xf32>
    %462 = tpu.matmul %461, %14, %cst_141 {dimension_numbers = #tpu.dot_dimension_numbers<[1], [0], [0], [1], [0, 0, 1, 1], [], []>} : vector<8x24xbf16>, vector<24x64xbf16>, vector<8x64xf32> -> vector<8x64xf32>
    %463 = vector.broadcast %15 : vector<1x64xf32> to vector<8x64xf32>
    %464 = arith.addf %462, %463 : vector<8x64xf32>
    %465 = math.tanh %464 : vector<8x64xf32>
    %466 = vector.extract_strided_slice %465 {offsets = [0, 0], sizes = [8, 16], strides = [1, 1]} : vector<8x64xf32> to vector<8x16xf32>
    %cst_142 = arith.constant 1.000000e+00 : f32
    %467 = vector.broadcast %cst_142 : f32 to vector<8x16xf32>
    %468 = arith.addf %466, %467 : vector<8x16xf32>
    %cst_143 = arith.constant 5.000000e-01 : f32
    %469 = vector.broadcast %cst_143 : f32 to vector<8x16xf32>
    %470 = arith.mulf %469, %468 : vector<8x16xf32>
    %471 = vector.extract_strided_slice %465 {offsets = [0, 16], sizes = [8, 16], strides = [1, 1]} : vector<8x64xf32> to vector<8x16xf32>
    %cst_144 = arith.constant 1.000000e+00 : f32
    %472 = vector.broadcast %cst_144 : f32 to vector<8x16xf32>
    %473 = arith.addf %471, %472 : vector<8x16xf32>
    %cst_145 = arith.constant 5.000000e-01 : f32
    %474 = vector.broadcast %cst_145 : f32 to vector<8x16xf32>
    %475 = arith.mulf %474, %473 : vector<8x16xf32>
    %476 = vector.extract_strided_slice %465 {offsets = [0, 32], sizes = [8, 16], strides = [1, 1]} : vector<8x64xf32> to vector<8x16xf32>
    %477 = vector.extract_strided_slice %465 {offsets = [0, 48], sizes = [8, 16], strides = [1, 1]} : vector<8x64xf32> to vector<8x16xf32>
    %cst_146 = arith.constant 1.000000e+00 : f32
    %478 = vector.broadcast %cst_146 : f32 to vector<8x16xf32>
    %479 = arith.addf %477, %478 : vector<8x16xf32>
    %cst_147 = arith.constant 5.000000e-01 : f32
    %480 = vector.broadcast %cst_147 : f32 to vector<8x16xf32>
    %481 = arith.mulf %480, %479 : vector<8x16xf32>
    %482 = arith.mulf %475, %373 : vector<8x16xf32>
    %483 = arith.mulf %470, %476 : vector<8x16xf32>
    %484 = arith.addf %482, %483 : vector<8x16xf32>
    %485 = math.tanh %484 : vector<8x16xf32>
    %486 = arith.mulf %481, %485 : vector<8x16xf32>
    %487 = tpu.concatenate %375, %402 in 1 : vector<8x16xf32>, vector<8x16xf32> -> vector<8x32xf32>
    %488 = arith.truncf %487 : vector<8x32xf32> to vector<8x32xbf16>
    %cst_148 = arith.constant dense<0.000000e+00> : vector<8x64xf32>
    %489 = tpu.matmul %488, %17, %cst_148 {dimension_numbers = #tpu.dot_dimension_numbers<[1], [0], [0], [1], [0, 0, 1, 1], [], []>} : vector<8x32xbf16>, vector<32x64xbf16>, vector<8x64xf32> -> vector<8x64xf32>
    %490 = vector.broadcast %18 : vector<1x64xf32> to vector<8x64xf32>
    %491 = arith.addf %489, %490 : vector<8x64xf32>
    %492 = math.tanh %491 : vector<8x64xf32>
    %493 = vector.extract_strided_slice %492 {offsets = [0, 0], sizes = [8, 16], strides = [1, 1]} : vector<8x64xf32> to vector<8x16xf32>
    %cst_149 = arith.constant 1.000000e+00 : f32
    %494 = vector.broadcast %cst_149 : f32 to vector<8x16xf32>
    %495 = arith.addf %493, %494 : vector<8x16xf32>
    %cst_150 = arith.constant 5.000000e-01 : f32
    %496 = vector.broadcast %cst_150 : f32 to vector<8x16xf32>
    %497 = arith.mulf %496, %495 : vector<8x16xf32>
    %498 = vector.extract_strided_slice %492 {offsets = [0, 16], sizes = [8, 16], strides = [1, 1]} : vector<8x64xf32> to vector<8x16xf32>
    %cst_151 = arith.constant 1.000000e+00 : f32
    %499 = vector.broadcast %cst_151 : f32 to vector<8x16xf32>
    %500 = arith.addf %498, %499 : vector<8x16xf32>
    %cst_152 = arith.constant 5.000000e-01 : f32
    %501 = vector.broadcast %cst_152 : f32 to vector<8x16xf32>
    %502 = arith.mulf %501, %500 : vector<8x16xf32>
    %503 = vector.extract_strided_slice %492 {offsets = [0, 32], sizes = [8, 16], strides = [1, 1]} : vector<8x64xf32> to vector<8x16xf32>
    %504 = vector.extract_strided_slice %492 {offsets = [0, 48], sizes = [8, 16], strides = [1, 1]} : vector<8x64xf32> to vector<8x16xf32>
    %cst_153 = arith.constant 1.000000e+00 : f32
    %505 = vector.broadcast %cst_153 : f32 to vector<8x16xf32>
    %506 = arith.addf %504, %505 : vector<8x16xf32>
    %cst_154 = arith.constant 5.000000e-01 : f32
    %507 = vector.broadcast %cst_154 : f32 to vector<8x16xf32>
    %508 = arith.mulf %507, %506 : vector<8x16xf32>
    %509 = arith.mulf %502, %400 : vector<8x16xf32>
    %510 = arith.mulf %497, %503 : vector<8x16xf32>
    %511 = arith.addf %509, %510 : vector<8x16xf32>
    %512 = math.tanh %511 : vector<8x16xf32>
    %513 = arith.mulf %508, %512 : vector<8x16xf32>
    %514 = arith.truncf %513 : vector<8x16xf32> to vector<8x16xbf16>
    %cst_155 = arith.constant dense<0.000000e+00> : vector<8x32xf32>
    %515 = tpu.matmul %514, %20, %cst_155 {dimension_numbers = #tpu.dot_dimension_numbers<[1], [0], [0], [1], [0, 0, 1, 1], [], []>} : vector<8x16xbf16>, vector<16x32xbf16>, vector<8x32xf32> -> vector<8x32xf32>
    %516 = vector.broadcast %21 : vector<1x32xf32> to vector<8x32xf32>
    %517 = arith.addf %515, %516 : vector<8x32xf32>
    %c0_156 = arith.constant 0 : index
    %c64 = arith.constant 64 : index
    %518 = vector.load %arg4[%c0_156, %c64] : memref<8x256xf32, #tpu.memory_space<vmem>>, vector<8x32xf32>
    tpu.vector_store %arg4[%c0_156, %c64], %517 {strides = array<i32>} : memref<8x256xf32, #tpu.memory_space<vmem>>, vector<8x32xf32>,
    %519 = arith.truncf %432 : vector<8x8xf32> to vector<8x8xbf16>
    %cst_157 = arith.constant dense<0.000000e+00> : vector<8x32xf32>
    %520 = tpu.matmul %519, %4, %cst_157 {dimension_numbers = #tpu.dot_dimension_numbers<[1], [0], [0], [1], [0, 0, 1, 1], [], []>} : vector<8x8xbf16>, vector<8x32xbf16>, vector<8x32xf32> -> vector<8x32xf32>
    %521 = arith.addf %9, %520 : vector<8x32xf32>
    %522 = math.tanh %521 : vector<8x32xf32>
    %523 = vector.extract_strided_slice %522 {offsets = [0, 0], sizes = [8, 8], strides = [1, 1]} : vector<8x32xf32> to vector<8x8xf32>
    %cst_158 = arith.constant 1.000000e+00 : f32
    %524 = vector.broadcast %cst_158 : f32 to vector<8x8xf32>
    %525 = arith.addf %523, %524 : vector<8x8xf32>
    %cst_159 = arith.constant 5.000000e-01 : f32
    %526 = vector.broadcast %cst_159 : f32 to vector<8x8xf32>
    %527 = arith.mulf %526, %525 : vector<8x8xf32>
    %528 = vector.extract_strided_slice %522 {offsets = [0, 8], sizes = [8, 8], strides = [1, 1]} : vector<8x32xf32> to vector<8x8xf32>
    %cst_160 = arith.constant 1.000000e+00 : f32
    %529 = vector.broadcast %cst_160 : f32 to vector<8x8xf32>
    %530 = arith.addf %528, %529 : vector<8x8xf32>
    %cst_161 = arith.constant 5.000000e-01 : f32
    %531 = vector.broadcast %cst_161 : f32 to vector<8x8xf32>
    %532 = arith.mulf %531, %530 : vector<8x8xf32>
    %533 = vector.extract_strided_slice %522 {offsets = [0, 16], sizes = [8, 8], strides = [1, 1]} : vector<8x32xf32> to vector<8x8xf32>
    %534 = vector.extract_strided_slice %522 {offsets = [0, 24], sizes = [8, 8], strides = [1, 1]} : vector<8x32xf32> to vector<8x8xf32>
    %cst_162 = arith.constant 1.000000e+00 : f32
    %535 = vector.broadcast %cst_162 : f32 to vector<8x8xf32>
    %536 = arith.addf %534, %535 : vector<8x8xf32>
    %cst_163 = arith.constant 5.000000e-01 : f32
    %537 = vector.broadcast %cst_163 : f32 to vector<8x8xf32>
    %538 = arith.mulf %537, %536 : vector<8x8xf32>
    %539 = arith.mulf %532, %430 : vector<8x8xf32>
    %540 = arith.mulf %527, %533 : vector<8x8xf32>
    %541 = arith.addf %539, %540 : vector<8x8xf32>
    %542 = math.tanh %541 : vector<8x8xf32>
    %543 = arith.mulf %538, %542 : vector<8x8xf32>
    %544 = tpu.concatenate %432, %459 in 1 : vector<8x8xf32>, vector<8x8xf32> -> vector<8x16xf32>
    %545 = arith.truncf %544 : vector<8x16xf32> to vector<8x16xbf16>
    %cst_164 = arith.constant dense<0.000000e+00> : vector<8x32xf32>
    %546 = tpu.matmul %545, %11, %cst_164 {dimension_numbers = #tpu.dot_dimension_numbers<[1], [0], [0], [1], [0, 0, 1, 1], [], []>} : vector<8x16xbf16>, vector<16x32xbf16>, vector<8x32xf32> -> vector<8x32xf32>
    %547 = vector.broadcast %12 : vector<1x32xf32> to vector<8x32xf32>
    %548 = arith.addf %546, %547 : vector<8x32xf32>
    %549 = math.tanh %548 : vector<8x32xf32>
    %550 = vector.extract_strided_slice %549 {offsets = [0, 0], sizes = [8, 8], strides = [1, 1]} : vector<8x32xf32> to vector<8x8xf32>
    %cst_165 = arith.constant 1.000000e+00 : f32
    %551 = vector.broadcast %cst_165 : f32 to vector<8x8xf32>
    %552 = arith.addf %550, %551 : vector<8x8xf32>
    %cst_166 = arith.constant 5.000000e-01 : f32
    %553 = vector.broadcast %cst_166 : f32 to vector<8x8xf32>
    %554 = arith.mulf %553, %552 : vector<8x8xf32>
    %555 = vector.extract_strided_slice %549 {offsets = [0, 8], sizes = [8, 8], strides = [1, 1]} : vector<8x32xf32> to vector<8x8xf32>
    %cst_167 = arith.constant 1.000000e+00 : f32
    %556 = vector.broadcast %cst_167 : f32 to vector<8x8xf32>
    %557 = arith.addf %555, %556 : vector<8x8xf32>
    %cst_168 = arith.constant 5.000000e-01 : f32
    %558 = vector.broadcast %cst_168 : f32 to vector<8x8xf32>
    %559 = arith.mulf %558, %557 : vector<8x8xf32>
    %560 = vector.extract_strided_slice %549 {offsets = [0, 16], sizes = [8, 8], strides = [1, 1]} : vector<8x32xf32> to vector<8x8xf32>
    %561 = vector.extract_strided_slice %549 {offsets = [0, 24], sizes = [8, 8], strides = [1, 1]} : vector<8x32xf32> to vector<8x8xf32>
    %cst_169 = arith.constant 1.000000e+00 : f32
    %562 = vector.broadcast %cst_169 : f32 to vector<8x8xf32>
    %563 = arith.addf %561, %562 : vector<8x8xf32>
    %cst_170 = arith.constant 5.000000e-01 : f32
    %564 = vector.broadcast %cst_170 : f32 to vector<8x8xf32>
    %565 = arith.mulf %564, %563 : vector<8x8xf32>
    %566 = arith.mulf %559, %457 : vector<8x8xf32>
    %567 = arith.mulf %554, %560 : vector<8x8xf32>
    %568 = arith.addf %566, %567 : vector<8x8xf32>
    %569 = math.tanh %568 : vector<8x8xf32>
    %570 = arith.mulf %565, %569 : vector<8x8xf32>
    %571 = tpu.concatenate %459, %486 in 1 : vector<8x8xf32>, vector<8x16xf32> -> vector<8x24xf32>
    %572 = arith.truncf %571 : vector<8x24xf32> to vector<8x24xbf16>
    %cst_171 = arith.constant dense<0.000000e+00> : vector<8x64xf32>
    %573 = tpu.matmul %572, %14, %cst_171 {dimension_numbers = #tpu.dot_dimension_numbers<[1], [0], [0], [1], [0, 0, 1, 1], [], []>} : vector<8x24xbf16>, vector<24x64xbf16>, vector<8x64xf32> -> vector<8x64xf32>
    %574 = vector.broadcast %15 : vector<1x64xf32> to vector<8x64xf32>
    %575 = arith.addf %573, %574 : vector<8x64xf32>
    %576 = math.tanh %575 : vector<8x64xf32>
    %577 = vector.extract_strided_slice %576 {offsets = [0, 0], sizes = [8, 16], strides = [1, 1]} : vector<8x64xf32> to vector<8x16xf32>
    %cst_172 = arith.constant 1.000000e+00 : f32
    %578 = vector.broadcast %cst_172 : f32 to vector<8x16xf32>
    %579 = arith.addf %577, %578 : vector<8x16xf32>
    %cst_173 = arith.constant 5.000000e-01 : f32
    %580 = vector.broadcast %cst_173 : f32 to vector<8x16xf32>
    %581 = arith.mulf %580, %579 : vector<8x16xf32>
    %582 = vector.extract_strided_slice %576 {offsets = [0, 16], sizes = [8, 16], strides = [1, 1]} : vector<8x64xf32> to vector<8x16xf32>
    %cst_174 = arith.constant 1.000000e+00 : f32
    %583 = vector.broadcast %cst_174 : f32 to vector<8x16xf32>
    %584 = arith.addf %582, %583 : vector<8x16xf32>
    %cst_175 = arith.constant 5.000000e-01 : f32
    %585 = vector.broadcast %cst_175 : f32 to vector<8x16xf32>
    %586 = arith.mulf %585, %584 : vector<8x16xf32>
    %587 = vector.extract_strided_slice %576 {offsets = [0, 32], sizes = [8, 16], strides = [1, 1]} : vector<8x64xf32> to vector<8x16xf32>
    %588 = vector.extract_strided_slice %576 {offsets = [0, 48], sizes = [8, 16], strides = [1, 1]} : vector<8x64xf32> to vector<8x16xf32>
    %cst_176 = arith.constant 1.000000e+00 : f32
    %589 = vector.broadcast %cst_176 : f32 to vector<8x16xf32>
    %590 = arith.addf %588, %589 : vector<8x16xf32>
    %cst_177 = arith.constant 5.000000e-01 : f32
    %591 = vector.broadcast %cst_177 : f32 to vector<8x16xf32>
    %592 = arith.mulf %591, %590 : vector<8x16xf32>
    %593 = arith.mulf %586, %484 : vector<8x16xf32>
    %594 = arith.mulf %581, %587 : vector<8x16xf32>
    %595 = arith.addf %593, %594 : vector<8x16xf32>
    %596 = math.tanh %595 : vector<8x16xf32>
    %597 = arith.mulf %592, %596 : vector<8x16xf32>
    %598 = tpu.concatenate %486, %513 in 1 : vector<8x16xf32>, vector<8x16xf32> -> vector<8x32xf32>
    %599 = arith.truncf %598 : vector<8x32xf32> to vector<8x32xbf16>
    %cst_178 = arith.constant dense<0.000000e+00> : vector<8x64xf32>
    %600 = tpu.matmul %599, %17, %cst_178 {dimension_numbers = #tpu.dot_dimension_numbers<[1], [0], [0], [1], [0, 0, 1, 1], [], []>} : vector<8x32xbf16>, vector<32x64xbf16>, vector<8x64xf32> -> vector<8x64xf32>
    %601 = vector.broadcast %18 : vector<1x64xf32> to vector<8x64xf32>
    %602 = arith.addf %600, %601 : vector<8x64xf32>
    %603 = math.tanh %602 : vector<8x64xf32>
    %604 = vector.extract_strided_slice %603 {offsets = [0, 0], sizes = [8, 16], strides = [1, 1]} : vector<8x64xf32> to vector<8x16xf32>
    %cst_179 = arith.constant 1.000000e+00 : f32
    %605 = vector.broadcast %cst_179 : f32 to vector<8x16xf32>
    %606 = arith.addf %604, %605 : vector<8x16xf32>
    %cst_180 = arith.constant 5.000000e-01 : f32
    %607 = vector.broadcast %cst_180 : f32 to vector<8x16xf32>
    %608 = arith.mulf %607, %606 : vector<8x16xf32>
    %609 = vector.extract_strided_slice %603 {offsets = [0, 16], sizes = [8, 16], strides = [1, 1]} : vector<8x64xf32> to vector<8x16xf32>
    %cst_181 = arith.constant 1.000000e+00 : f32
    %610 = vector.broadcast %cst_181 : f32 to vector<8x16xf32>
    %611 = arith.addf %609, %610 : vector<8x16xf32>
    %cst_182 = arith.constant 5.000000e-01 : f32
    %612 = vector.broadcast %cst_182 : f32 to vector<8x16xf32>
    %613 = arith.mulf %612, %611 : vector<8x16xf32>
    %614 = vector.extract_strided_slice %603 {offsets = [0, 32], sizes = [8, 16], strides = [1, 1]} : vector<8x64xf32> to vector<8x16xf32>
    %615 = vector.extract_strided_slice %603 {offsets = [0, 48], sizes = [8, 16], strides = [1, 1]} : vector<8x64xf32> to vector<8x16xf32>
    %cst_183 = arith.constant 1.000000e+00 : f32
    %616 = vector.broadcast %cst_183 : f32 to vector<8x16xf32>
    %617 = arith.addf %615, %616 : vector<8x16xf32>
    %cst_184 = arith.constant 5.000000e-01 : f32
    %618 = vector.broadcast %cst_184 : f32 to vector<8x16xf32>
    %619 = arith.mulf %618, %617 : vector<8x16xf32>
    %620 = arith.mulf %613, %511 : vector<8x16xf32>
    %621 = arith.mulf %608, %614 : vector<8x16xf32>
    %622 = arith.addf %620, %621 : vector<8x16xf32>
    %623 = math.tanh %622 : vector<8x16xf32>
    %624 = arith.mulf %619, %623 : vector<8x16xf32>
    %625 = arith.truncf %624 : vector<8x16xf32> to vector<8x16xbf16>
    %cst_185 = arith.constant dense<0.000000e+00> : vector<8x32xf32>
    %626 = tpu.matmul %625, %20, %cst_185 {dimension_numbers = #tpu.dot_dimension_numbers<[1], [0], [0], [1], [0, 0, 1, 1], [], []>} : vector<8x16xbf16>, vector<16x32xbf16>, vector<8x32xf32> -> vector<8x32xf32>
    %627 = vector.broadcast %21 : vector<1x32xf32> to vector<8x32xf32>
    %628 = arith.addf %626, %627 : vector<8x32xf32>
    %c0_186 = arith.constant 0 : index
    %c96 = arith.constant 96 : index
    %629 = vector.load %arg4[%c0_186, %c96] : memref<8x256xf32, #tpu.memory_space<vmem>>, vector<8x32xf32>
    tpu.vector_store %arg4[%c0_186, %c96], %628 {strides = array<i32>} : memref<8x256xf32, #tpu.memory_space<vmem>>, vector<8x32xf32>,
    %630 = arith.truncf %543 : vector<8x8xf32> to vector<8x8xbf16>
    %cst_187 = arith.constant dense<0.000000e+00> : vector<8x32xf32>
    %631 = tpu.matmul %630, %4, %cst_187 {dimension_numbers = #tpu.dot_dimension_numbers<[1], [0], [0], [1], [0, 0, 1, 1], [], []>} : vector<8x8xbf16>, vector<8x32xbf16>, vector<8x32xf32> -> vector<8x32xf32>
    %632 = arith.addf %9, %631 : vector<8x32xf32>
    %633 = math.tanh %632 : vector<8x32xf32>
    %634 = vector.extract_strided_slice %633 {offsets = [0, 0], sizes = [8, 8], strides = [1, 1]} : vector<8x32xf32> to vector<8x8xf32>
    %cst_188 = arith.constant 1.000000e+00 : f32
    %635 = vector.broadcast %cst_188 : f32 to vector<8x8xf32>
    %636 = arith.addf %634, %635 : vector<8x8xf32>
    %cst_189 = arith.constant 5.000000e-01 : f32
    %637 = vector.broadcast %cst_189 : f32 to vector<8x8xf32>
    %638 = arith.mulf %637, %636 : vector<8x8xf32>
    %639 = vector.extract_strided_slice %633 {offsets = [0, 8], sizes = [8, 8], strides = [1, 1]} : vector<8x32xf32> to vector<8x8xf32>
    %cst_190 = arith.constant 1.000000e+00 : f32
    %640 = vector.broadcast %cst_190 : f32 to vector<8x8xf32>
    %641 = arith.addf %639, %640 : vector<8x8xf32>
    %cst_191 = arith.constant 5.000000e-01 : f32
    %642 = vector.broadcast %cst_191 : f32 to vector<8x8xf32>
    %643 = arith.mulf %642, %641 : vector<8x8xf32>
    %644 = vector.extract_strided_slice %633 {offsets = [0, 16], sizes = [8, 8], strides = [1, 1]} : vector<8x32xf32> to vector<8x8xf32>
    %645 = vector.extract_strided_slice %633 {offsets = [0, 24], sizes = [8, 8], strides = [1, 1]} : vector<8x32xf32> to vector<8x8xf32>
    %cst_192 = arith.constant 1.000000e+00 : f32
    %646 = vector.broadcast %cst_192 : f32 to vector<8x8xf32>
    %647 = arith.addf %645, %646 : vector<8x8xf32>
    %cst_193 = arith.constant 5.000000e-01 : f32
    %648 = vector.broadcast %cst_193 : f32 to vector<8x8xf32>
    %649 = arith.mulf %648, %647 : vector<8x8xf32>
    %650 = arith.mulf %643, %541 : vector<8x8xf32>
    %651 = arith.mulf %638, %644 : vector<8x8xf32>
    %652 = arith.addf %650, %651 : vector<8x8xf32>
    %653 = math.tanh %652 : vector<8x8xf32>
    %654 = arith.mulf %649, %653 : vector<8x8xf32>
    %655 = tpu.concatenate %543, %570 in 1 : vector<8x8xf32>, vector<8x8xf32> -> vector<8x16xf32>
    %656 = arith.truncf %655 : vector<8x16xf32> to vector<8x16xbf16>
    %cst_194 = arith.constant dense<0.000000e+00> : vector<8x32xf32>
    %657 = tpu.matmul %656, %11, %cst_194 {dimension_numbers = #tpu.dot_dimension_numbers<[1], [0], [0], [1], [0, 0, 1, 1], [], []>} : vector<8x16xbf16>, vector<16x32xbf16>, vector<8x32xf32> -> vector<8x32xf32>
    %658 = vector.broadcast %12 : vector<1x32xf32> to vector<8x32xf32>
    %659 = arith.addf %657, %658 : vector<8x32xf32>
    %660 = math.tanh %659 : vector<8x32xf32>
    %661 = vector.extract_strided_slice %660 {offsets = [0, 0], sizes = [8, 8], strides = [1, 1]} : vector<8x32xf32> to vector<8x8xf32>
    %cst_195 = arith.constant 1.000000e+00 : f32
    %662 = vector.broadcast %cst_195 : f32 to vector<8x8xf32>
    %663 = arith.addf %661, %662 : vector<8x8xf32>
    %cst_196 = arith.constant 5.000000e-01 : f32
    %664 = vector.broadcast %cst_196 : f32 to vector<8x8xf32>
    %665 = arith.mulf %664, %663 : vector<8x8xf32>
    %666 = vector.extract_strided_slice %660 {offsets = [0, 8], sizes = [8, 8], strides = [1, 1]} : vector<8x32xf32> to vector<8x8xf32>
    %cst_197 = arith.constant 1.000000e+00 : f32
    %667 = vector.broadcast %cst_197 : f32 to vector<8x8xf32>
    %668 = arith.addf %666, %667 : vector<8x8xf32>
    %cst_198 = arith.constant 5.000000e-01 : f32
    %669 = vector.broadcast %cst_198 : f32 to vector<8x8xf32>
    %670 = arith.mulf %669, %668 : vector<8x8xf32>
    %671 = vector.extract_strided_slice %660 {offsets = [0, 16], sizes = [8, 8], strides = [1, 1]} : vector<8x32xf32> to vector<8x8xf32>
    %672 = vector.extract_strided_slice %660 {offsets = [0, 24], sizes = [8, 8], strides = [1, 1]} : vector<8x32xf32> to vector<8x8xf32>
    %cst_199 = arith.constant 1.000000e+00 : f32
    %673 = vector.broadcast %cst_199 : f32 to vector<8x8xf32>
    %674 = arith.addf %672, %673 : vector<8x8xf32>
    %cst_200 = arith.constant 5.000000e-01 : f32
    %675 = vector.broadcast %cst_200 : f32 to vector<8x8xf32>
    %676 = arith.mulf %675, %674 : vector<8x8xf32>
    %677 = arith.mulf %670, %568 : vector<8x8xf32>
    %678 = arith.mulf %665, %671 : vector<8x8xf32>
    %679 = arith.addf %677, %678 : vector<8x8xf32>
    %680 = math.tanh %679 : vector<8x8xf32>
    %681 = arith.mulf %676, %680 : vector<8x8xf32>
    %682 = tpu.concatenate %570, %597 in 1 : vector<8x8xf32>, vector<8x16xf32> -> vector<8x24xf32>
    %683 = arith.truncf %682 : vector<8x24xf32> to vector<8x24xbf16>
    %cst_201 = arith.constant dense<0.000000e+00> : vector<8x64xf32>
    %684 = tpu.matmul %683, %14, %cst_201 {dimension_numbers = #tpu.dot_dimension_numbers<[1], [0], [0], [1], [0, 0, 1, 1], [], []>} : vector<8x24xbf16>, vector<24x64xbf16>, vector<8x64xf32> -> vector<8x64xf32>
    %685 = vector.broadcast %15 : vector<1x64xf32> to vector<8x64xf32>
    %686 = arith.addf %684, %685 : vector<8x64xf32>
    %687 = math.tanh %686 : vector<8x64xf32>
    %688 = vector.extract_strided_slice %687 {offsets = [0, 0], sizes = [8, 16], strides = [1, 1]} : vector<8x64xf32> to vector<8x16xf32>
    %cst_202 = arith.constant 1.000000e+00 : f32
    %689 = vector.broadcast %cst_202 : f32 to vector<8x16xf32>
    %690 = arith.addf %688, %689 : vector<8x16xf32>
    %cst_203 = arith.constant 5.000000e-01 : f32
    %691 = vector.broadcast %cst_203 : f32 to vector<8x16xf32>
    %692 = arith.mulf %691, %690 : vector<8x16xf32>
    %693 = vector.extract_strided_slice %687 {offsets = [0, 16], sizes = [8, 16], strides = [1, 1]} : vector<8x64xf32> to vector<8x16xf32>
    %cst_204 = arith.constant 1.000000e+00 : f32
    %694 = vector.broadcast %cst_204 : f32 to vector<8x16xf32>
    %695 = arith.addf %693, %694 : vector<8x16xf32>
    %cst_205 = arith.constant 5.000000e-01 : f32
    %696 = vector.broadcast %cst_205 : f32 to vector<8x16xf32>
    %697 = arith.mulf %696, %695 : vector<8x16xf32>
    %698 = vector.extract_strided_slice %687 {offsets = [0, 32], sizes = [8, 16], strides = [1, 1]} : vector<8x64xf32> to vector<8x16xf32>
    %699 = vector.extract_strided_slice %687 {offsets = [0, 48], sizes = [8, 16], strides = [1, 1]} : vector<8x64xf32> to vector<8x16xf32>
    %cst_206 = arith.constant 1.000000e+00 : f32
    %700 = vector.broadcast %cst_206 : f32 to vector<8x16xf32>
    %701 = arith.addf %699, %700 : vector<8x16xf32>
    %cst_207 = arith.constant 5.000000e-01 : f32
    %702 = vector.broadcast %cst_207 : f32 to vector<8x16xf32>
    %703 = arith.mulf %702, %701 : vector<8x16xf32>
    %704 = arith.mulf %697, %595 : vector<8x16xf32>
    %705 = arith.mulf %692, %698 : vector<8x16xf32>
    %706 = arith.addf %704, %705 : vector<8x16xf32>
    %707 = math.tanh %706 : vector<8x16xf32>
    %708 = arith.mulf %703, %707 : vector<8x16xf32>
    %709 = tpu.concatenate %597, %624 in 1 : vector<8x16xf32>, vector<8x16xf32> -> vector<8x32xf32>
    %710 = arith.truncf %709 : vector<8x32xf32> to vector<8x32xbf16>
    %cst_208 = arith.constant dense<0.000000e+00> : vector<8x64xf32>
    %711 = tpu.matmul %710, %17, %cst_208 {dimension_numbers = #tpu.dot_dimension_numbers<[1], [0], [0], [1], [0, 0, 1, 1], [], []>} : vector<8x32xbf16>, vector<32x64xbf16>, vector<8x64xf32> -> vector<8x64xf32>
    %712 = vector.broadcast %18 : vector<1x64xf32> to vector<8x64xf32>
    %713 = arith.addf %711, %712 : vector<8x64xf32>
    %714 = math.tanh %713 : vector<8x64xf32>
    %715 = vector.extract_strided_slice %714 {offsets = [0, 0], sizes = [8, 16], strides = [1, 1]} : vector<8x64xf32> to vector<8x16xf32>
    %cst_209 = arith.constant 1.000000e+00 : f32
    %716 = vector.broadcast %cst_209 : f32 to vector<8x16xf32>
    %717 = arith.addf %715, %716 : vector<8x16xf32>
    %cst_210 = arith.constant 5.000000e-01 : f32
    %718 = vector.broadcast %cst_210 : f32 to vector<8x16xf32>
    %719 = arith.mulf %718, %717 : vector<8x16xf32>
    %720 = vector.extract_strided_slice %714 {offsets = [0, 16], sizes = [8, 16], strides = [1, 1]} : vector<8x64xf32> to vector<8x16xf32>
    %cst_211 = arith.constant 1.000000e+00 : f32
    %721 = vector.broadcast %cst_211 : f32 to vector<8x16xf32>
    %722 = arith.addf %720, %721 : vector<8x16xf32>
    %cst_212 = arith.constant 5.000000e-01 : f32
    %723 = vector.broadcast %cst_212 : f32 to vector<8x16xf32>
    %724 = arith.mulf %723, %722 : vector<8x16xf32>
    %725 = vector.extract_strided_slice %714 {offsets = [0, 32], sizes = [8, 16], strides = [1, 1]} : vector<8x64xf32> to vector<8x16xf32>
    %726 = vector.extract_strided_slice %714 {offsets = [0, 48], sizes = [8, 16], strides = [1, 1]} : vector<8x64xf32> to vector<8x16xf32>
    %cst_213 = arith.constant 1.000000e+00 : f32
    %727 = vector.broadcast %cst_213 : f32 to vector<8x16xf32>
    %728 = arith.addf %726, %727 : vector<8x16xf32>
    %cst_214 = arith.constant 5.000000e-01 : f32
    %729 = vector.broadcast %cst_214 : f32 to vector<8x16xf32>
    %730 = arith.mulf %729, %728 : vector<8x16xf32>
    %731 = arith.mulf %724, %622 : vector<8x16xf32>
    %732 = arith.mulf %719, %725 : vector<8x16xf32>
    %733 = arith.addf %731, %732 : vector<8x16xf32>
    %734 = math.tanh %733 : vector<8x16xf32>
    %735 = arith.mulf %730, %734 : vector<8x16xf32>
    %736 = arith.truncf %735 : vector<8x16xf32> to vector<8x16xbf16>
    %cst_215 = arith.constant dense<0.000000e+00> : vector<8x32xf32>
    %737 = tpu.matmul %736, %20, %cst_215 {dimension_numbers = #tpu.dot_dimension_numbers<[1], [0], [0], [1], [0, 0, 1, 1], [], []>} : vector<8x16xbf16>, vector<16x32xbf16>, vector<8x32xf32> -> vector<8x32xf32>
    %738 = vector.broadcast %21 : vector<1x32xf32> to vector<8x32xf32>
    %739 = arith.addf %737, %738 : vector<8x32xf32>
    %c0_216 = arith.constant 0 : index
    %c128 = arith.constant 128 : index
    %740 = vector.load %arg4[%c0_216, %c128] : memref<8x256xf32, #tpu.memory_space<vmem>>, vector<8x32xf32>
    tpu.vector_store %arg4[%c0_216, %c128], %739 {strides = array<i32>} : memref<8x256xf32, #tpu.memory_space<vmem>>, vector<8x32xf32>,
    %741 = tpu.concatenate %654, %681 in 1 : vector<8x8xf32>, vector<8x8xf32> -> vector<8x16xf32>
    %742 = arith.truncf %741 : vector<8x16xf32> to vector<8x16xbf16>
    %cst_217 = arith.constant dense<0.000000e+00> : vector<8x32xf32>
    %743 = tpu.matmul %742, %11, %cst_217 {dimension_numbers = #tpu.dot_dimension_numbers<[1], [0], [0], [1], [0, 0, 1, 1], [], []>} : vector<8x16xbf16>, vector<16x32xbf16>, vector<8x32xf32> -> vector<8x32xf32>
    %744 = vector.broadcast %12 : vector<1x32xf32> to vector<8x32xf32>
    %745 = arith.addf %743, %744 : vector<8x32xf32>
    %746 = math.tanh %745 : vector<8x32xf32>
    %747 = vector.extract_strided_slice %746 {offsets = [0, 0], sizes = [8, 8], strides = [1, 1]} : vector<8x32xf32> to vector<8x8xf32>
    %cst_218 = arith.constant 1.000000e+00 : f32
    %748 = vector.broadcast %cst_218 : f32 to vector<8x8xf32>
    %749 = arith.addf %747, %748 : vector<8x8xf32>
    %cst_219 = arith.constant 5.000000e-01 : f32
    %750 = vector.broadcast %cst_219 : f32 to vector<8x8xf32>
    %751 = arith.mulf %750, %749 : vector<8x8xf32>
    %752 = vector.extract_strided_slice %746 {offsets = [0, 8], sizes = [8, 8], strides = [1, 1]} : vector<8x32xf32> to vector<8x8xf32>
    %cst_220 = arith.constant 1.000000e+00 : f32
    %753 = vector.broadcast %cst_220 : f32 to vector<8x8xf32>
    %754 = arith.addf %752, %753 : vector<8x8xf32>
    %cst_221 = arith.constant 5.000000e-01 : f32
    %755 = vector.broadcast %cst_221 : f32 to vector<8x8xf32>
    %756 = arith.mulf %755, %754 : vector<8x8xf32>
    %757 = vector.extract_strided_slice %746 {offsets = [0, 16], sizes = [8, 8], strides = [1, 1]} : vector<8x32xf32> to vector<8x8xf32>
    %758 = vector.extract_strided_slice %746 {offsets = [0, 24], sizes = [8, 8], strides = [1, 1]} : vector<8x32xf32> to vector<8x8xf32>
    %cst_222 = arith.constant 1.000000e+00 : f32
    %759 = vector.broadcast %cst_222 : f32 to vector<8x8xf32>
    %760 = arith.addf %758, %759 : vector<8x8xf32>
    %cst_223 = arith.constant 5.000000e-01 : f32
    %761 = vector.broadcast %cst_223 : f32 to vector<8x8xf32>
    %762 = arith.mulf %761, %760 : vector<8x8xf32>
    %763 = arith.mulf %756, %679 : vector<8x8xf32>
    %764 = arith.mulf %751, %757 : vector<8x8xf32>
    %765 = arith.addf %763, %764 : vector<8x8xf32>
    %766 = math.tanh %765 : vector<8x8xf32>
    %767 = arith.mulf %762, %766 : vector<8x8xf32>
    %768 = tpu.concatenate %681, %708 in 1 : vector<8x8xf32>, vector<8x16xf32> -> vector<8x24xf32>
    %769 = arith.truncf %768 : vector<8x24xf32> to vector<8x24xbf16>
    %cst_224 = arith.constant dense<0.000000e+00> : vector<8x64xf32>
    %770 = tpu.matmul %769, %14, %cst_224 {dimension_numbers = #tpu.dot_dimension_numbers<[1], [0], [0], [1], [0, 0, 1, 1], [], []>} : vector<8x24xbf16>, vector<24x64xbf16>, vector<8x64xf32> -> vector<8x64xf32>
    %771 = vector.broadcast %15 : vector<1x64xf32> to vector<8x64xf32>
    %772 = arith.addf %770, %771 : vector<8x64xf32>
    %773 = math.tanh %772 : vector<8x64xf32>
    %774 = vector.extract_strided_slice %773 {offsets = [0, 0], sizes = [8, 16], strides = [1, 1]} : vector<8x64xf32> to vector<8x16xf32>
    %cst_225 = arith.constant 1.000000e+00 : f32
    %775 = vector.broadcast %cst_225 : f32 to vector<8x16xf32>
    %776 = arith.addf %774, %775 : vector<8x16xf32>
    %cst_226 = arith.constant 5.000000e-01 : f32
    %777 = vector.broadcast %cst_226 : f32 to vector<8x16xf32>
    %778 = arith.mulf %777, %776 : vector<8x16xf32>
    %779 = vector.extract_strided_slice %773 {offsets = [0, 16], sizes = [8, 16], strides = [1, 1]} : vector<8x64xf32> to vector<8x16xf32>
    %cst_227 = arith.constant 1.000000e+00 : f32
    %780 = vector.broadcast %cst_227 : f32 to vector<8x16xf32>
    %781 = arith.addf %779, %780 : vector<8x16xf32>
    %cst_228 = arith.constant 5.000000e-01 : f32
    %782 = vector.broadcast %cst_228 : f32 to vector<8x16xf32>
    %783 = arith.mulf %782, %781 : vector<8x16xf32>
    %784 = vector.extract_strided_slice %773 {offsets = [0, 32], sizes = [8, 16], strides = [1, 1]} : vector<8x64xf32> to vector<8x16xf32>
    %785 = vector.extract_strided_slice %773 {offsets = [0, 48], sizes = [8, 16], strides = [1, 1]} : vector<8x64xf32> to vector<8x16xf32>
    %cst_229 = arith.constant 1.000000e+00 : f32
    %786 = vector.broadcast %cst_229 : f32 to vector<8x16xf32>
    %787 = arith.addf %785, %786 : vector<8x16xf32>
    %cst_230 = arith.constant 5.000000e-01 : f32
    %788 = vector.broadcast %cst_230 : f32 to vector<8x16xf32>
    %789 = arith.mulf %788, %787 : vector<8x16xf32>
    %790 = arith.mulf %783, %706 : vector<8x16xf32>
    %791 = arith.mulf %778, %784 : vector<8x16xf32>
    %792 = arith.addf %790, %791 : vector<8x16xf32>
    %793 = math.tanh %792 : vector<8x16xf32>
    %794 = arith.mulf %789, %793 : vector<8x16xf32>
    %795 = tpu.concatenate %708, %735 in 1 : vector<8x16xf32>, vector<8x16xf32> -> vector<8x32xf32>
    %796 = arith.truncf %795 : vector<8x32xf32> to vector<8x32xbf16>
    %cst_231 = arith.constant dense<0.000000e+00> : vector<8x64xf32>
    %797 = tpu.matmul %796, %17, %cst_231 {dimension_numbers = #tpu.dot_dimension_numbers<[1], [0], [0], [1], [0, 0, 1, 1], [], []>} : vector<8x32xbf16>, vector<32x64xbf16>, vector<8x64xf32> -> vector<8x64xf32>
    %798 = vector.broadcast %18 : vector<1x64xf32> to vector<8x64xf32>
    %799 = arith.addf %797, %798 : vector<8x64xf32>
    %800 = math.tanh %799 : vector<8x64xf32>
    %801 = vector.extract_strided_slice %800 {offsets = [0, 0], sizes = [8, 16], strides = [1, 1]} : vector<8x64xf32> to vector<8x16xf32>
    %cst_232 = arith.constant 1.000000e+00 : f32
    %802 = vector.broadcast %cst_232 : f32 to vector<8x16xf32>
    %803 = arith.addf %801, %802 : vector<8x16xf32>
    %cst_233 = arith.constant 5.000000e-01 : f32
    %804 = vector.broadcast %cst_233 : f32 to vector<8x16xf32>
    %805 = arith.mulf %804, %803 : vector<8x16xf32>
    %806 = vector.extract_strided_slice %800 {offsets = [0, 16], sizes = [8, 16], strides = [1, 1]} : vector<8x64xf32> to vector<8x16xf32>
    %cst_234 = arith.constant 1.000000e+00 : f32
    %807 = vector.broadcast %cst_234 : f32 to vector<8x16xf32>
    %808 = arith.addf %806, %807 : vector<8x16xf32>
    %cst_235 = arith.constant 5.000000e-01 : f32
    %809 = vector.broadcast %cst_235 : f32 to vector<8x16xf32>
    %810 = arith.mulf %809, %808 : vector<8x16xf32>
    %811 = vector.extract_strided_slice %800 {offsets = [0, 32], sizes = [8, 16], strides = [1, 1]} : vector<8x64xf32> to vector<8x16xf32>
    %812 = vector.extract_strided_slice %800 {offsets = [0, 48], sizes = [8, 16], strides = [1, 1]} : vector<8x64xf32> to vector<8x16xf32>
    %cst_236 = arith.constant 1.000000e+00 : f32
    %813 = vector.broadcast %cst_236 : f32 to vector<8x16xf32>
    %814 = arith.addf %812, %813 : vector<8x16xf32>
    %cst_237 = arith.constant 5.000000e-01 : f32
    %815 = vector.broadcast %cst_237 : f32 to vector<8x16xf32>
    %816 = arith.mulf %815, %814 : vector<8x16xf32>
    %817 = arith.mulf %810, %733 : vector<8x16xf32>
    %818 = arith.mulf %805, %811 : vector<8x16xf32>
    %819 = arith.addf %817, %818 : vector<8x16xf32>
    %820 = math.tanh %819 : vector<8x16xf32>
    %821 = arith.mulf %816, %820 : vector<8x16xf32>
    %822 = arith.truncf %821 : vector<8x16xf32> to vector<8x16xbf16>
    %cst_238 = arith.constant dense<0.000000e+00> : vector<8x32xf32>
    %823 = tpu.matmul %822, %20, %cst_238 {dimension_numbers = #tpu.dot_dimension_numbers<[1], [0], [0], [1], [0, 0, 1, 1], [], []>} : vector<8x16xbf16>, vector<16x32xbf16>, vector<8x32xf32> -> vector<8x32xf32>
    %824 = vector.broadcast %21 : vector<1x32xf32> to vector<8x32xf32>
    %825 = arith.addf %823, %824 : vector<8x32xf32>
    %c0_239 = arith.constant 0 : index
    %c160 = arith.constant 160 : index
    %826 = vector.load %arg4[%c0_239, %c160] : memref<8x256xf32, #tpu.memory_space<vmem>>, vector<8x32xf32>
    tpu.vector_store %arg4[%c0_239, %c160], %825 {strides = array<i32>} : memref<8x256xf32, #tpu.memory_space<vmem>>, vector<8x32xf32>,
    %827 = tpu.concatenate %767, %794 in 1 : vector<8x8xf32>, vector<8x16xf32> -> vector<8x24xf32>
    %828 = arith.truncf %827 : vector<8x24xf32> to vector<8x24xbf16>
    %cst_240 = arith.constant dense<0.000000e+00> : vector<8x64xf32>
    %829 = tpu.matmul %828, %14, %cst_240 {dimension_numbers = #tpu.dot_dimension_numbers<[1], [0], [0], [1], [0, 0, 1, 1], [], []>} : vector<8x24xbf16>, vector<24x64xbf16>, vector<8x64xf32> -> vector<8x64xf32>
    %830 = vector.broadcast %15 : vector<1x64xf32> to vector<8x64xf32>
    %831 = arith.addf %829, %830 : vector<8x64xf32>
    %832 = math.tanh %831 : vector<8x64xf32>
    %833 = vector.extract_strided_slice %832 {offsets = [0, 0], sizes = [8, 16], strides = [1, 1]} : vector<8x64xf32> to vector<8x16xf32>
    %cst_241 = arith.constant 1.000000e+00 : f32
    %834 = vector.broadcast %cst_241 : f32 to vector<8x16xf32>
    %835 = arith.addf %833, %834 : vector<8x16xf32>
    %cst_242 = arith.constant 5.000000e-01 : f32
    %836 = vector.broadcast %cst_242 : f32 to vector<8x16xf32>
    %837 = arith.mulf %836, %835 : vector<8x16xf32>
    %838 = vector.extract_strided_slice %832 {offsets = [0, 16], sizes = [8, 16], strides = [1, 1]} : vector<8x64xf32> to vector<8x16xf32>
    %cst_243 = arith.constant 1.000000e+00 : f32
    %839 = vector.broadcast %cst_243 : f32 to vector<8x16xf32>
    %840 = arith.addf %838, %839 : vector<8x16xf32>
    %cst_244 = arith.constant 5.000000e-01 : f32
    %841 = vector.broadcast %cst_244 : f32 to vector<8x16xf32>
    %842 = arith.mulf %841, %840 : vector<8x16xf32>
    %843 = vector.extract_strided_slice %832 {offsets = [0, 32], sizes = [8, 16], strides = [1, 1]} : vector<8x64xf32> to vector<8x16xf32>
    %844 = vector.extract_strided_slice %832 {offsets = [0, 48], sizes = [8, 16], strides = [1, 1]} : vector<8x64xf32> to vector<8x16xf32>
    %cst_245 = arith.constant 1.000000e+00 : f32
    %845 = vector.broadcast %cst_245 : f32 to vector<8x16xf32>
    %846 = arith.addf %844, %845 : vector<8x16xf32>
    %cst_246 = arith.constant 5.000000e-01 : f32
    %847 = vector.broadcast %cst_246 : f32 to vector<8x16xf32>
    %848 = arith.mulf %847, %846 : vector<8x16xf32>
    %849 = arith.mulf %842, %792 : vector<8x16xf32>
    %850 = arith.mulf %837, %843 : vector<8x16xf32>
    %851 = arith.addf %849, %850 : vector<8x16xf32>
    %852 = math.tanh %851 : vector<8x16xf32>
    %853 = arith.mulf %848, %852 : vector<8x16xf32>
    %854 = tpu.concatenate %794, %821 in 1 : vector<8x16xf32>, vector<8x16xf32> -> vector<8x32xf32>
    %855 = arith.truncf %854 : vector<8x32xf32> to vector<8x32xbf16>
    %cst_247 = arith.constant dense<0.000000e+00> : vector<8x64xf32>
    %856 = tpu.matmul %855, %17, %cst_247 {dimension_numbers = #tpu.dot_dimension_numbers<[1], [0], [0], [1], [0, 0, 1, 1], [], []>} : vector<8x32xbf16>, vector<32x64xbf16>, vector<8x64xf32> -> vector<8x64xf32>
    %857 = vector.broadcast %18 : vector<1x64xf32> to vector<8x64xf32>
    %858 = arith.addf %856, %857 : vector<8x64xf32>
    %859 = math.tanh %858 : vector<8x64xf32>
    %860 = vector.extract_strided_slice %859 {offsets = [0, 0], sizes = [8, 16], strides = [1, 1]} : vector<8x64xf32> to vector<8x16xf32>
    %cst_248 = arith.constant 1.000000e+00 : f32
    %861 = vector.broadcast %cst_248 : f32 to vector<8x16xf32>
    %862 = arith.addf %860, %861 : vector<8x16xf32>
    %cst_249 = arith.constant 5.000000e-01 : f32
    %863 = vector.broadcast %cst_249 : f32 to vector<8x16xf32>
    %864 = arith.mulf %863, %862 : vector<8x16xf32>
    %865 = vector.extract_strided_slice %859 {offsets = [0, 16], sizes = [8, 16], strides = [1, 1]} : vector<8x64xf32> to vector<8x16xf32>
    %cst_250 = arith.constant 1.000000e+00 : f32
    %866 = vector.broadcast %cst_250 : f32 to vector<8x16xf32>
    %867 = arith.addf %865, %866 : vector<8x16xf32>
    %cst_251 = arith.constant 5.000000e-01 : f32
    %868 = vector.broadcast %cst_251 : f32 to vector<8x16xf32>
    %869 = arith.mulf %868, %867 : vector<8x16xf32>
    %870 = vector.extract_strided_slice %859 {offsets = [0, 32], sizes = [8, 16], strides = [1, 1]} : vector<8x64xf32> to vector<8x16xf32>
    %871 = vector.extract_strided_slice %859 {offsets = [0, 48], sizes = [8, 16], strides = [1, 1]} : vector<8x64xf32> to vector<8x16xf32>
    %cst_252 = arith.constant 1.000000e+00 : f32
    %872 = vector.broadcast %cst_252 : f32 to vector<8x16xf32>
    %873 = arith.addf %871, %872 : vector<8x16xf32>
    %cst_253 = arith.constant 5.000000e-01 : f32
    %874 = vector.broadcast %cst_253 : f32 to vector<8x16xf32>
    %875 = arith.mulf %874, %873 : vector<8x16xf32>
    %876 = arith.mulf %869, %819 : vector<8x16xf32>
    %877 = arith.mulf %864, %870 : vector<8x16xf32>
    %878 = arith.addf %876, %877 : vector<8x16xf32>
    %879 = math.tanh %878 : vector<8x16xf32>
    %880 = arith.mulf %875, %879 : vector<8x16xf32>
    %881 = arith.truncf %880 : vector<8x16xf32> to vector<8x16xbf16>
    %cst_254 = arith.constant dense<0.000000e+00> : vector<8x32xf32>
    %882 = tpu.matmul %881, %20, %cst_254 {dimension_numbers = #tpu.dot_dimension_numbers<[1], [0], [0], [1], [0, 0, 1, 1], [], []>} : vector<8x16xbf16>, vector<16x32xbf16>, vector<8x32xf32> -> vector<8x32xf32>
    %883 = vector.broadcast %21 : vector<1x32xf32> to vector<8x32xf32>
    %884 = arith.addf %882, %883 : vector<8x32xf32>
    %c0_255 = arith.constant 0 : index
    %c192 = arith.constant 192 : index
    %885 = vector.load %arg4[%c0_255, %c192] : memref<8x256xf32, #tpu.memory_space<vmem>>, vector<8x32xf32>
    tpu.vector_store %arg4[%c0_255, %c192], %884 {strides = array<i32>} : memref<8x256xf32, #tpu.memory_space<vmem>>, vector<8x32xf32>,
    %886 = tpu.concatenate %853, %880 in 1 : vector<8x16xf32>, vector<8x16xf32> -> vector<8x32xf32>
    %887 = arith.truncf %886 : vector<8x32xf32> to vector<8x32xbf16>
    %cst_256 = arith.constant dense<0.000000e+00> : vector<8x64xf32>
    %888 = tpu.matmul %887, %17, %cst_256 {dimension_numbers = #tpu.dot_dimension_numbers<[1], [0], [0], [1], [0, 0, 1, 1], [], []>} : vector<8x32xbf16>, vector<32x64xbf16>, vector<8x64xf32> -> vector<8x64xf32>
    %889 = vector.broadcast %18 : vector<1x64xf32> to vector<8x64xf32>
    %890 = arith.addf %888, %889 : vector<8x64xf32>
    %891 = math.tanh %890 : vector<8x64xf32>
    %892 = vector.extract_strided_slice %891 {offsets = [0, 0], sizes = [8, 16], strides = [1, 1]} : vector<8x64xf32> to vector<8x16xf32>
    %cst_257 = arith.constant 1.000000e+00 : f32
    %893 = vector.broadcast %cst_257 : f32 to vector<8x16xf32>
    %894 = arith.addf %892, %893 : vector<8x16xf32>
    %cst_258 = arith.constant 5.000000e-01 : f32
    %895 = vector.broadcast %cst_258 : f32 to vector<8x16xf32>
    %896 = arith.mulf %895, %894 : vector<8x16xf32>
    %897 = vector.extract_strided_slice %891 {offsets = [0, 16], sizes = [8, 16], strides = [1, 1]} : vector<8x64xf32> to vector<8x16xf32>
    %cst_259 = arith.constant 1.000000e+00 : f32
    %898 = vector.broadcast %cst_259 : f32 to vector<8x16xf32>
    %899 = arith.addf %897, %898 : vector<8x16xf32>
    %cst_260 = arith.constant 5.000000e-01 : f32
    %900 = vector.broadcast %cst_260 : f32 to vector<8x16xf32>
    %901 = arith.mulf %900, %899 : vector<8x16xf32>
    %902 = vector.extract_strided_slice %891 {offsets = [0, 32], sizes = [8, 16], strides = [1, 1]} : vector<8x64xf32> to vector<8x16xf32>
    %903 = vector.extract_strided_slice %891 {offsets = [0, 48], sizes = [8, 16], strides = [1, 1]} : vector<8x64xf32> to vector<8x16xf32>
    %cst_261 = arith.constant 1.000000e+00 : f32
    %904 = vector.broadcast %cst_261 : f32 to vector<8x16xf32>
    %905 = arith.addf %903, %904 : vector<8x16xf32>
    %cst_262 = arith.constant 5.000000e-01 : f32
    %906 = vector.broadcast %cst_262 : f32 to vector<8x16xf32>
    %907 = arith.mulf %906, %905 : vector<8x16xf32>
    %908 = arith.mulf %901, %878 : vector<8x16xf32>
    %909 = arith.mulf %896, %902 : vector<8x16xf32>
    %910 = arith.addf %908, %909 : vector<8x16xf32>
    %911 = math.tanh %910 : vector<8x16xf32>
    %912 = arith.mulf %907, %911 : vector<8x16xf32>
    %913 = arith.truncf %912 : vector<8x16xf32> to vector<8x16xbf16>
    %cst_263 = arith.constant dense<0.000000e+00> : vector<8x32xf32>
    %914 = tpu.matmul %913, %20, %cst_263 {dimension_numbers = #tpu.dot_dimension_numbers<[1], [0], [0], [1], [0, 0, 1, 1], [], []>} : vector<8x16xbf16>, vector<16x32xbf16>, vector<8x32xf32> -> vector<8x32xf32>
    %915 = vector.broadcast %21 : vector<1x32xf32> to vector<8x32xf32>
    %916 = arith.addf %914, %915 : vector<8x32xf32>
    %c0_264 = arith.constant 0 : index
    %c224 = arith.constant 224 : index
    %917 = vector.load %arg4[%c0_264, %c224] : memref<8x256xf32, #tpu.memory_space<vmem>>, vector<8x32xf32>
    tpu.vector_store %arg4[%c0_264, %c224], %916 {strides = array<i32>} : memref<8x256xf32, #tpu.memory_space<vmem>>, vector<8x32xf32>,
    return
  }
}

</mosaic_0001>

<llo_original>
// kernel: recurrent_decoder_forward.1
$region0: #{recurrent_decoder_forward.1}
  #allocation0 [shape = 'u32[]', space=smem, size = 0x4, offset = 0x4, fixed_abs, tag = 'smem constant byte address 0x4 - core index']
  #allocation1 [shape = 'u32[144,128]{1,0:T(1,128)}', space=vmem, size = 0x12000, scoped, tag = 'internal scratch']
  %s0 = inlined_call_operand.vmem [shape: f32[8,8], index: 0, kind: input, shape index: {}]
  %s1 = inlined_call_operand.vmem [shape: f32[48,32], index: 1, kind: input, shape index: {}]
  %s2 = inlined_call_operand.vmem [shape: f32[56,64], index: 2, kind: input, shape index: {}]
  %s3 = inlined_call_operand.vmem [shape: f32[5,64], index: 3, kind: input, shape index: {}]
  %s4 = inlined_call_operand.vmem [shape: f32[8,256], index: 4, kind: output, shape index: {}]
  %s5 = sld [smem:[#allocation0]]
  $region26: #{recurrent_decoder_forward.1} parent=0
    _
  %s7 = ssub.s32 1, %s5
  %s8 = scalar_select 0, %s7, %s5
  // Predicated region
  $region2: #{recurrent_decoder_forward.1} parent=0 // pred_check
    _
  $region3: #{recurrent_decoder_forward.1} parent=0 // pred_check_branch
    %10 = sbr.rel (0) target = $region5
  $region4: #{recurrent_decoder_forward.1} parent=0 // pred_region
    _
  $region5: #{recurrent_decoder_forward.1} parent=0 // pred_fallthru
    _
  // Predicated region
  $region6: #{recurrent_decoder_forward.1} parent=0 // pred_check
    _
  $region7: #{recurrent_decoder_forward.1} parent=0 // pred_check_branch
    %12 = sbr.rel (0) target = $region9
  $region8: #{recurrent_decoder_forward.1} parent=0 // pred_region
    _
  $region9: #{recurrent_decoder_forward.1} parent=0 // pred_fallthru
    _
  // Predicated region
  $region10: #{recurrent_decoder_forward.1} parent=0 // pred_check
    _
  $region11: #{recurrent_decoder_forward.1} parent=0 // pred_check_branch
    %14 = sbr.rel (0) target = $region13
  $region12: #{recurrent_decoder_forward.1} parent=0 // pred_region
    _
  $region13: #{recurrent_decoder_forward.1} parent=0 // pred_fallthru
    _
  // Predicated region
  $region14: #{recurrent_decoder_forward.1} parent=0 // pred_check
    _
  $region15: #{recurrent_decoder_forward.1} parent=0 // pred_check_branch
    %16 = sbr.rel (0) target = $region17
  $region16: #{recurrent_decoder_forward.1} parent=0 // pred_region
    _
  $region17: #{recurrent_decoder_forward.1} parent=0 // pred_fallthru
    _
  %v18 = vld [vmem:[%s0] sm:$0xff]
  %v19 = vld [vmem:[%s1] sm:$0xff]
  %v20 = vpack.c.bf16 %v19, %v19
  %v21 = vld [vmem:[%s1 + $0x8] sm:$0xff]
  %v22 = vpack.c.bf16 %v21, %v21
  %v23 = vld [vmem:[%s3] sm:$0x1]
  %v24 = vpack.c.bf16 %v18, %v18
  %v25 = vlaneseq
  %v26 = vshrl.u32 %v25, 7
  %v27 = vsub.s32 0, %v26
  %v28 = vrot.slane %v23, %v27
  %vm29 = vcmask 64512
  %v31 = vsel %vm29, %v24, 0
  %vm33 = vcmask 1043456
  %v35 = vsel %vm33, %v20, 0
  %37 = vmatprep.subr.bf16.mxu0 0
  %38 = vmatpush1.bf16.msra.mxu0 %v35
  %39 = vmatprep.subr.bf16.mxu0 0
  %40 = vmatpush1.bf16.msra.mxu0 0
  %41 = vmatprep.subr.bf16.mxu0 0
  %42 = vmatpush1.bf16.msra.mxu0 0
  %43 = vmatprep.subr.bf16.mxu0 0
  %44 = vmatpush1.bf16.msra.mxu0 0
  %45 = vmatprep.subr.bf16.mxu0 0
  %46 = vmatpush1.bf16.msra.mxu0 0
  %47 = vmatprep.subr.bf16.mxu0 0
  %48 = vmatpush1.bf16.msra.mxu0 0
  %49 = vmatprep.subr.bf16.mxu0 0
  %50 = vmatpush1.bf16.msra.mxu0 0
  %51 = vmatprep.subr.bf16.mxu0 0
  %52 = vmatpush1.bf16.msra.mxu0 0
  %53 = vmatprep.subr.bf16.mxu0 0
  %54 = vmatpush1.bf16.msra.mxu0 0
  %55 = vmatprep.subr.bf16.mxu0 0
  %56 = vmatpush1.bf16.msra.mxu0 0
  %57 = vmatprep.subr.bf16.mxu0 0
  %58 = vmatpush1.bf16.msra.mxu0 0
  %59 = vmatprep.subr.bf16.mxu0 0
  %60 = vmatpush1.bf16.msra.mxu0 0
  %61 = vmatprep.subr.bf16.mxu0 0
  %62 = vmatpush1.bf16.msra.mxu0 0
  %63 = vmatprep.subr.bf16.mxu0 0
  %64 = vmatpush1.bf16.msra.mxu0 0
  %65 = vmatprep.subr.bf16.mxu0 0
  %66 = vmatpush1.bf16.msra.mxu0 0
  %67 = vmatprep.subr.bf16.mxu0 0
  %68 = vmatpush1.bf16.msra.mxu0 0
  %69 = vmatprep.mubr.bf16.mxu0 0
  %70 = vmatmul.mubr.bf16.gmra.mrb[0].mxu0 %v31
  %v71 = vpop.f32.mrb[0].mxu0
  %v72 = vadd.f32 %v28, %v71
  %v73 = vpop.f32.mrb[0].mxu0
  %v74 = vpop.f32.mrb[0].mxu0
  %v75 = vpop.f32.mrb[0].mxu0
  %76 = vdwg.mxu0
  %v77 = vld [vmem:[%s1 + $0x10] sm:$0xff]
  %v78 = vld [vmem:[%s1 + $0x18] sm:$0xff]
  %v79 = vpack.c.bf16 %v78, %v77
  %v80 = vld [vmem:[%s3 + $0x1] sm:$0x1]
  %v81 = vld [vmem:[%s2] sm:$0xff]
  %v82 = vld [vmem:[%s2 + $0x8] sm:$0xff]
  %v83 = vld [vmem:[%s2 + $0x10] sm:$0xff]
  %v84 = vpack.c.bf16 %v82, %v81
  %v85 = vpack.c.bf16 %v83, %v83
  %v86 = vld [vmem:[%s3 + $0x2] sm:$0x1]
  %v87 = vld [vmem:[%s2 + $0x18] sm:$0xff]
  %v88 = vld [vmem:[%s2 + $0x20] sm:$0xff]
  %v89 = vld [vmem:[%s2 + $0x28] sm:$0xff]
  %v90 = vld [vmem:[%s2 + $0x30] sm:$0xff]
  %v91 = vpack.c.bf16 %v88, %v87
  %v92 = vpack.c.bf16 %v90, %v89
  %v93 = vld [vmem:[%s3 + $0x3] sm:$0x1]
  %v94 = vld [vmem:[%s1 + $0x20] sm:$0xff]
  %v95 = vld [vmem:[%s1 + $0x28] sm:$0xff]
  %v96 = vpack.c.bf16 %v95, %v94
  %v97 = vld [vmem:[%s3 + $0x4] sm:$0x1]
  %v99 = vsel %vm29, 0, 0
  %v102 = vsel %vm33, %v22, 0
  %104 = vmatprep.subr.bf16.mxu0 0
  %105 = vmatpush1.bf16.msra.mxu0 %v102
  %106 = vmatprep.subr.bf16.mxu0 0
  %107 = vmatpush1.bf16.msra.mxu0 0
  %108 = vmatprep.subr.bf16.mxu0 0
  %109 = vmatpush1.bf16.msra.mxu0 0
  %110 = vmatprep.subr.bf16.mxu0 0
  %111 = vmatpush1.bf16.msra.mxu0 0
  %112 = vmatprep.subr.bf16.mxu0 0
  %113 = vmatpush1.bf16.msra.mxu0 0
  %114 = vmatprep.subr.bf16.mxu0 0
  %115 = vmatpush1.bf16.msra.mxu0 0
  %116 = vmatprep.subr.bf16.mxu0 0
  %117 = vmatpush1.bf16.msra.mxu0 0
  %118 = vmatprep.subr.bf16.mxu0 0
  %119 = vmatpush1.bf16.msra.mxu0 0
  %120 = vmatprep.subr.bf16.mxu0 0
  %121 = vmatpush1.bf16.msra.mxu0 0
  %122 = vmatprep.subr.bf16.mxu0 0
  %123 = vmatpush1.bf16.msra.mxu0 0
  %124 = vmatprep.subr.bf16.mxu0 0
  %125 = vmatpush1.bf16.msra.mxu0 0
  %126 = vmatprep.subr.bf16.mxu0 0
  %127 = vmatpush1.bf16.msra.mxu0 0
  %128 = vmatprep.subr.bf16.mxu0 0
  %129 = vmatpush1.bf16.msra.mxu0 0
  %130 = vmatprep.subr.bf16.mxu0 0
  %131 = vmatpush1.bf16.msra.mxu0 0
  %132 = vmatprep.subr.bf16.mxu0 0
  %133 = vmatpush1.bf16.msra.mxu0 0
  %134 = vmatprep.subr.bf16.mxu0 0
  %135 = vmatpush1.bf16.msra.mxu0 0
  %136 = vmatprep.mubr.bf16.mxu0 0
  %137 = vmatmul.mubr.bf16.gmra.mrb[0].mxu0 %v99
  %v138 = vpop.f32.mrb[0].mxu0
  %v139 = vadd.f32 0.0, %v138
  %v140 = vpop.f32.mrb[0].mxu0
  %v141 = vpop.f32.mrb[0].mxu0
  %v142 = vpop.f32.mrb[0].mxu0
  %143 = vdwg.mxu0
  %v144 = vadd.f32 %v72, %v139
  %v145 = vtanh.pop %v144
  %v146 = vadd.f32 %v145, 1.0
  %v147 = vmul.f32 %v146, 0.5
  %v148 = vmul.f32 %v147, 0.0
  %150 = vrot.lane.b32.xlu0 %v145, 112
  %v151 = vpop.permute.xlu0 %150
  %v153 = vmul.f32 %v147, %v151
  %155 = vrot.lane.b32.xlu0 %v153, 8
  %v156 = vpop.permute.xlu0 %155
  %v158 = vadd.f32 %v148, %v156
  %v159 = vtanh.pop %v158
  %161 = vrot.lane.b32.xlu0 %v159, 16
  %v162 = vpop.permute.xlu0 %161
  %v164 = vmul.f32 %v147, %v162
  %v165 = vpack.c.bf16 %v164, %v164
  %167 = vrot.lane.b32.xlu0 %v165, 104
  %v168 = vpop.permute.xlu0 %167
  %v170 = vsel %vm29, %v168, 0
  %172 = vmatprep.subr.bf16.mxu0 0
  %173 = vmatpush1.bf16.msra.mxu0 %v102
  %174 = vmatprep.subr.bf16.mxu0 0
  %175 = vmatpush1.bf16.msra.mxu0 0
  %176 = vmatprep.subr.bf16.mxu0 0
  %177 = vmatpush1.bf16.msra.mxu0 0
  %178 = vmatprep.subr.bf16.mxu0 0
  %179 = vmatpush1.bf16.msra.mxu0 0
  %180 = vmatprep.subr.bf16.mxu0 0
  %181 = vmatpush1.bf16.msra.mxu0 0
  %182 = vmatprep.subr.bf16.mxu0 0
  %183 = vmatpush1.bf16.msra.mxu0 0
  %184 = vmatprep.subr.bf16.mxu0 0
  %185 = vmatpush1.bf16.msra.mxu0 0
  %186 = vmatprep.subr.bf16.mxu0 0
  %187 = vmatpush1.bf16.msra.mxu0 0
  %188 = vmatprep.subr.bf16.mxu0 0
  %189 = vmatpush1.bf16.msra.mxu0 0
  %190 = vmatprep.subr.bf16.mxu0 0
  %191 = vmatpush1.bf16.msra.mxu0 0
  %192 = vmatprep.subr.bf16.mxu0 0
  %193 = vmatpush1.bf16.msra.mxu0 0
  %194 = vmatprep.subr.bf16.mxu0 0
  %195 = vmatpush1.bf16.msra.mxu0 0
  %196 = vmatprep.subr.bf16.mxu0 0
  %197 = vmatpush1.bf16.msra.mxu0 0
  %198 = vmatprep.subr.bf16.mxu0 0
  %199 = vmatpush1.bf16.msra.mxu0 0
  %200 = vmatprep.subr.bf16.mxu0 0
  %201 = vmatpush1.bf16.msra.mxu0 0
  %202 = vmatprep.subr.bf16.mxu0 0
  %203 = vmatpush1.bf16.msra.mxu0 0
  %204 = vmatprep.mubr.bf16.mxu0 0
  %205 = vmatmul.mubr.bf16.gmra.mrb[0].mxu0 %v170
  %v206 = vpop.f32.mrb[0].mxu0
  %v207 = vadd.f32 0.0, %v206
  %v208 = vpop.f32.mrb[0].mxu0
  %v209 = vpop.f32.mrb[0].mxu0
  %v210 = vpop.f32.mrb[0].mxu0
  %211 = vdwg.mxu0
  %v212 = vadd.f32 %v72, %v207
  %v213 = vtanh.pop %v212
  %v214 = vadd.f32 %v213, 1.0
  %v215 = vmul.f32 %v214, 0.5
  %v216 = vmul.f32 %v215, %v158
  %218 = vrot.lane.b32.xlu0 %v213, 112
  %v219 = vpop.permute.xlu0 %218
  %v221 = vmul.f32 %v215, %v219
  %223 = vrot.lane.b32.xlu0 %v221, 8
  %v224 = vpop.permute.xlu0 %223
  %v226 = vadd.f32 %v216, %v224
  %v227 = vtanh.pop %v226
  %229 = vrot.lane.b32.xlu0 %v227, 16
  %v230 = vpop.permute.xlu0 %229
  %v232 = vmul.f32 %v215, %v230
  %234 = vrot.lane.b32.xlu0 %v164, 104
  %v235 = vpop.permute.xlu0 %234
  %v237 = vsel %vm29, %v235, 0.0
  %v238 = vpack.c.bf16 %v237, %v237
  %v239 = vlaneseq
  %v240 = vshrl.u32 %v239, 7
  %v241 = vsub.s32 0, %v240
  %v242 = vrot.slane %v80, %v241
  %vm243 = vcmask 130048
  %v245 = vsel %vm243, %v238, 0
  %247 = vmatprep.subr.bf16.mxu0 0
  %248 = vmatpush1.bf16.msra.mxu0 %v79
  %249 = vmatprep.subr.bf16.mxu0 0
  %250 = vmatpush1.bf16.msra.mxu0 0
  %251 = vmatprep.subr.bf16.mxu0 0
  %252 = vmatpush1.bf16.msra.mxu0 0
  %253 = vmatprep.subr.bf16.mxu0 0
  %254 = vmatpush1.bf16.msra.mxu0 0
  %255 = vmatprep.subr.bf16.mxu0 0
  %256 = vmatpush1.bf16.msra.mxu0 0
  %257 = vmatprep.subr.bf16.mxu0 0
  %258 = vmatpush1.bf16.msra.mxu0 0
  %259 = vmatprep.subr.bf16.mxu0 0
  %260 = vmatpush1.bf16.msra.mxu0 0
  %261 = vmatprep.subr.bf16.mxu0 0
  %262 = vmatpush1.bf16.msra.mxu0 0
  %263 = vmatprep.subr.bf16.mxu0 0
  %264 = vmatpush1.bf16.msra.mxu0 0
  %265 = vmatprep.subr.bf16.mxu0 0
  %266 = vmatpush1.bf16.msra.mxu0 0
  %267 = vmatprep.subr.bf16.mxu0 0
  %268 = vmatpush1.bf16.msra.mxu0 0
  %269 = vmatprep.subr.bf16.mxu0 0
  %270 = vmatpush1.bf16.msra.mxu0 0
  %271 = vmatprep.subr.bf16.mxu0 0
  %272 = vmatpush1.bf16.msra.mxu0 0
  %273 = vmatprep.subr.bf16.mxu0 0
  %274 = vmatpush1.bf16.msra.mxu0 0
  %275 = vmatprep.subr.bf16.mxu0 0
  %276 = vmatpush1.bf16.msra.mxu0 0
  %277 = vmatprep.subr.bf16.mxu0 0
  %278 = vmatpush1.bf16.msra.mxu0 0
  %279 = vmatprep.mubr.bf16.mxu0 0
  %280 = vmatmul.mubr.bf16.gmra.mrb[0].mxu0 %v245
  %v281 = vpop.f32.mrb[0].mxu0
  %v282 = vadd.f32 %v242, %v281
  %v283 = vpop.f32.mrb[0].mxu0
  %v284 = vpop.f32.mrb[0].mxu0
  %v285 = vpop.f32.mrb[0].mxu0
  %286 = vdwg.mxu0
  %v287 = vtanh.pop %v282
  %v288 = vadd.f32 %v287, 1.0
  %v289 = vmul.f32 %v288, 0.5
  %v290 = vmul.f32 %v289, 0.0
  %292 = vrot.lane.b32.xlu0 %v287, 112
  %v293 = vpop.permute.xlu0 %292
  %v295 = vmul.f32 %v289, %v293
  %297 = vrot.lane.b32.xlu0 %v295, 8
  %v298 = vpop.permute.xlu0 %297
  %v300 = vadd.f32 %v290, %v298
  %v301 = vtanh.pop %v300
  %303 = vrot.lane.b32.xlu0 %v301, 16
  %v304 = vpop.permute.xlu0 %303
  %v306 = vmul.f32 %v289, %v304
  %v307 = vpack.c.bf16 %v232, %v232
  %309 = vrot.lane.b32.xlu0 %v307, 104
  %v310 = vpop.permute.xlu0 %309
  %v312 = vsel %vm29, %v310, 0
  %314 = vmatprep.subr.bf16.mxu0 0
  %315 = vmatpush1.bf16.msra.mxu0 %v102
  %316 = vmatprep.subr.bf16.mxu0 0
  %317 = vmatpush1.bf16.msra.mxu0 0
  %318 = vmatprep.subr.bf16.mxu0 0
  %319 = vmatpush1.bf16.msra.mxu0 0
  %320 = vmatprep.subr.bf16.mxu0 0
  %321 = vmatpush1.bf16.msra.mxu0 0
  %322 = vmatprep.subr.bf16.mxu0 0
  %323 = vmatpush1.bf16.msra.mxu0 0
  %324 = vmatprep.subr.bf16.mxu0 0
  %325 = vmatpush1.bf16.msra.mxu0 0
  %326 = vmatprep.subr.bf16.mxu0 0
  %327 = vmatpush1.bf16.msra.mxu0 0
  %328 = vmatprep.subr.bf16.mxu0 0
  %329 = vmatpush1.bf16.msra.mxu0 0
  %330 = vmatprep.subr.bf16.mxu0 0
  %331 = vmatpush1.bf16.msra.mxu0 0
  %332 = vmatprep.subr.bf16.mxu0 0
  %333 = vmatpush1.bf16.msra.mxu0 0
  %334 = vmatprep.subr.bf16.mxu0 0
  %335 = vmatpush1.bf16.msra.mxu0 0
  %336 = vmatprep.subr.bf16.mxu0 0
  %337 = vmatpush1.bf16.msra.mxu0 0
  %338 = vmatprep.subr.bf16.mxu0 0
  %339 = vmatpush1.bf16.msra.mxu0 0
  %340 = vmatprep.subr.bf16.mxu0 0
  %341 = vmatpush1.bf16.msra.mxu0 0
  %342 = vmatprep.subr.bf16.mxu0 0
  %343 = vmatpush1.bf16.msra.mxu0 0
  %344 = vmatprep.subr.bf16.mxu0 0
  %345 = vmatpush1.bf16.msra.mxu0 0
  %346 = vmatprep.mubr.bf16.mxu0 0
  %347 = vmatmul.mubr.bf16.gmra.mrb[0].mxu0 %v312
  %v348 = vpop.f32.mrb[0].mxu0
  %v349 = vadd.f32 0.0, %v348
  %v350 = vpop.f32.mrb[0].mxu0
  %v351 = vpop.f32.mrb[0].mxu0
  %v352 = vpop.f32.mrb[0].mxu0
  %353 = vdwg.mxu0
  %v354 = vadd.f32 %v72, %v349
  %v355 = vtanh.pop %v354
  %v356 = vadd.f32 %v355, 1.0
  %v357 = vmul.f32 %v356, 0.5
  %v358 = vmul.f32 %v357, %v226
  %360 = vrot.lane.b32.xlu0 %v355, 112
  %v361 = vpop.permute.xlu0 %360
  %v363 = vmul.f32 %v357, %v361
  %365 = vrot.lane.b32.xlu0 %v363, 8
  %v366 = vpop.permute.xlu0 %365
  %v368 = vadd.f32 %v358, %v366
  %v369 = vtanh.pop %v368
  %371 = vrot.lane.b32.xlu0 %v369, 16
  %v372 = vpop.permute.xlu0 %371
  %v374 = vmul.f32 %v357, %v372
  %376 = vrot.lane.b32.xlu0 %v232, 104
  %v377 = vpop.permute.xlu0 %376
  %380 = vrot.lane.b32.xlu0 %v306, 112
  %v381 = vpop.permute.xlu0 %380
  %v383 = vsel %vm29, %v377, %v381
  %v384 = vpack.c.bf16 %v383, %v383
  %v386 = vsel %vm243, %v384, 0
  %388 = vmatprep.subr.bf16.mxu0 0
  %389 = vmatpush1.bf16.msra.mxu0 %v79
  %390 = vmatprep.subr.bf16.mxu0 0
  %391 = vmatpush1.bf16.msra.mxu0 0
  %392 = vmatprep.subr.bf16.mxu0 0
  %393 = vmatpush1.bf16.msra.mxu0 0
  %394 = vmatprep.subr.bf16.mxu0 0
  %395 = vmatpush1.bf16.msra.mxu0 0
  %396 = vmatprep.subr.bf16.mxu0 0
  %397 = vmatpush1.bf16.msra.mxu0 0
  %398 = vmatprep.subr.bf16.mxu0 0
  %399 = vmatpush1.bf16.msra.mxu0 0
  %400 = vmatprep.subr.bf16.mxu0 0
  %401 = vmatpush1.bf16.msra.mxu0 0
  %402 = vmatprep.subr.bf16.mxu0 0
  %403 = vmatpush1.bf16.msra.mxu0 0
  %404 = vmatprep.subr.bf16.mxu0 0
  %405 = vmatpush1.bf16.msra.mxu0 0
  %406 = vmatprep.subr.bf16.mxu0 0
  %407 = vmatpush1.bf16.msra.mxu0 0
  %408 = vmatprep.subr.bf16.mxu0 0
  %409 = vmatpush1.bf16.msra.mxu0 0
  %410 = vmatprep.subr.bf16.mxu0 0
  %411 = vmatpush1.bf16.msra.mxu0 0
  %412 = vmatprep.subr.bf16.mxu0 0
  %413 = vmatpush1.bf16.msra.mxu0 0
  %414 = vmatprep.subr.bf16.mxu0 0
  %415 = vmatpush1.bf16.msra.mxu0 0
  %416 = vmatprep.subr.bf16.mxu0 0
  %417 = vmatpush1.bf16.msra.mxu0 0
  %418 = vmatprep.subr.bf16.mxu0 0
  %419 = vmatpush1.bf16.msra.mxu0 0
  %420 = vmatprep.mubr.bf16.mxu0 0
  %421 = vmatmul.mubr.bf16.gmra.mrb[0].mxu0 %v386
  %v422 = vpop.f32.mrb[0].mxu0
  %v423 = vadd.f32 %v242, %v422
  %v424 = vpop.f32.mrb[0].mxu0
  %v425 = vpop.f32.mrb[0].mxu0
  %v426 = vpop.f32.mrb[0].mxu0
  %427 = vdwg.mxu0
  %v428 = vtanh.pop %v423
  %v429 = vadd.f32 %v428, 1.0
  %v430 = vmul.f32 %v429, 0.5
  %v431 = vmul.f32 %v430, %v300
  %433 = vrot.lane.b32.xlu0 %v428, 112
  %v434 = vpop.permute.xlu0 %433
  %v436 = vmul.f32 %v430, %v434
  %438 = vrot.lane.b32.xlu0 %v436, 8
  %v439 = vpop.permute.xlu0 %438
  %v441 = vadd.f32 %v431, %v439
  %v442 = vtanh.pop %v441
  %444 = vrot.lane.b32.xlu0 %v442, 16
  %v445 = vpop.permute.xlu0 %444
  %v447 = vmul.f32 %v430, %v445
  %448 = vrot.lane.b32.xlu0 %v306, 104
  %v449 = vpop.permute.xlu0 %448
  %v451 = vsel %vm29, %v449, 0.0
  %v452 = vpack.c.bf16 %v451, %v451
  %v453 = vlaneseq
  %v454 = vshrl.u32 %v453, 7
  %v455 = vsub.s32 0, %v454
  %v456 = vrot.slane %v86, %v455
  %vm457 = vcmask 195584
  %v459 = vsel %vm457, %v452, 0
  %v462 = vsel %vm33, %v85, 0
  %464 = vmatprep.subr.bf16.mxu0 0
  %465 = vmatpush1.bf16.msra.mxu0 %v84
  %466 = vmatprep.subr.bf16.mxu0 0
  %467 = vmatpush1.bf16.msra.mxu0 %v462
  %468 = vmatprep.subr.bf16.mxu0 0
  %469 = vmatpush1.bf16.msra.mxu0 0
  %470 = vmatprep.subr.bf16.mxu0 0
  %471 = vmatpush1.bf16.msra.mxu0 0
  %472 = vmatprep.subr.bf16.mxu0 0
  %473 = vmatpush1.bf16.msra.mxu0 0
  %474 = vmatprep.subr.bf16.mxu0 0
  %475 = vmatpush1.bf16.msra.mxu0 0
  %476 = vmatprep.subr.bf16.mxu0 0
  %477 = vmatpush1.bf16.msra.mxu0 0
  %478 = vmatprep.subr.bf16.mxu0 0
  %479 = vmatpush1.bf16.msra.mxu0 0
  %480 = vmatprep.subr.bf16.mxu0 0
  %481 = vmatpush1.bf16.msra.mxu0 0
  %482 = vmatprep.subr.bf16.mxu0 0
  %483 = vmatpush1.bf16.msra.mxu0 0
  %484 = vmatprep.subr.bf16.mxu0 0
  %485 = vmatpush1.bf16.msra.mxu0 0
  %486 = vmatprep.subr.bf16.mxu0 0
  %487 = vmatpush1.bf16.msra.mxu0 0
  %488 = vmatprep.subr.bf16.mxu0 0
  %489 = vmatpush1.bf16.msra.mxu0 0
  %490 = vmatprep.subr.bf16.mxu0 0
  %491 = vmatpush1.bf16.msra.mxu0 0
  %492 = vmatprep.subr.bf16.mxu0 0
  %493 = vmatpush1.bf16.msra.mxu0 0
  %494 = vmatprep.subr.bf16.mxu0 0
  %495 = vmatpush1.bf16.msra.mxu0 0
  %496 = vmatprep.mubr.bf16.mxu0 0
  %497 = vmatmul.mubr.bf16.gmra.mrb[0].mxu0 %v459
  %v498 = vpop.f32.mrb[0].mxu0
  %v499 = vadd.f32 %v456, %v498
  %v500 = vpop.f32.mrb[0].mxu0
  %v501 = vpop.f32.mrb[0].mxu0
  %v502 = vpop.f32.mrb[0].mxu0
  %503 = vdwg.mxu0
  %v504 = vtanh.pop %v499
  %v505 = vadd.f32 %v504, 1.0
  %v506 = vmul.f32 %v505, 0.5
  %v507 = vmul.f32 %v506, 0.0
  %509 = vrot.lane.b32.xlu0 %v504, 96
  %v510 = vpop.permute.xlu0 %509
  %v512 = vmul.f32 %v506, %v510
  %514 = vrot.lane.b32.xlu0 %v512, 16
  %v515 = vpop.permute.xlu0 %514
  %v517 = vadd.f32 %v507, %v515
  %v518 = vtanh.pop %v517
  %520 = vrot.lane.b32.xlu0 %v518, 32
  %v521 = vpop.permute.xlu0 %520
  %v523 = vmul.f32 %v506, %v521
  %v524 = vpack.c.bf16 %v374, %v374
  %526 = vrot.lane.b32.xlu0 %v524, 104
  %v527 = vpop.permute.xlu0 %526
  %v529 = vsel %vm29, %v527, 0
  %531 = vmatprep.subr.bf16.mxu0 0
  %532 = vmatpush1.bf16.msra.mxu0 %v102
  %533 = vmatprep.subr.bf16.mxu0 0
  %534 = vmatpush1.bf16.msra.mxu0 0
  %535 = vmatprep.subr.bf16.mxu0 0
  %536 = vmatpush1.bf16.msra.mxu0 0
  %537 = vmatprep.subr.bf16.mxu0 0
  %538 = vmatpush1.bf16.msra.mxu0 0
  %539 = vmatprep.subr.bf16.mxu0 0
  %540 = vmatpush1.bf16.msra.mxu0 0
  %541 = vmatprep.subr.bf16.mxu0 0
  %542 = vmatpush1.bf16.msra.mxu0 0
  %543 = vmatprep.subr.bf16.mxu0 0
  %544 = vmatpush1.bf16.msra.mxu0 0
  %545 = vmatprep.subr.bf16.mxu0 0
  %546 = vmatpush1.bf16.msra.mxu0 0
  %547 = vmatprep.subr.bf16.mxu0 0
  %548 = vmatpush1.bf16.msra.mxu0 0
  %549 = vmatprep.subr.bf16.mxu0 0
  %550 = vmatpush1.bf16.msra.mxu0 0
  %551 = vmatprep.subr.bf16.mxu0 0
  %552 = vmatpush1.bf16.msra.mxu0 0
  %553 = vmatprep.subr.bf16.mxu0 0
  %554 = vmatpush1.bf16.msra.mxu0 0
  %555 = vmatprep.subr.bf16.mxu0 0
  %556 = vmatpush1.bf16.msra.mxu0 0
  %557 = vmatprep.subr.bf16.mxu0 0
  %558 = vmatpush1.bf16.msra.mxu0 0
  %559 = vmatprep.subr.bf16.mxu0 0
  %560 = vmatpush1.bf16.msra.mxu0 0
  %561 = vmatprep.subr.bf16.mxu0 0
  %562 = vmatpush1.bf16.msra.mxu0 0
  %563 = vmatprep.mubr.bf16.mxu0 0
  %564 = vmatmul.mubr.bf16.gmra.mrb[0].mxu0 %v529
  %v565 = vpop.f32.mrb[0].mxu0
  %v566 = vadd.f32 0.0, %v565
  %v567 = vpop.f32.mrb[0].mxu0
  %v568 = vpop.f32.mrb[0].mxu0
  %v569 = vpop.f32.mrb[0].mxu0
  %570 = vdwg.mxu0
  %v571 = vadd.f32 %v72, %v566
  %v572 = vtanh.pop %v571
  %v573 = vadd.f32 %v572, 1.0
  %v574 = vmul.f32 %v573, 0.5
  %v575 = vmul.f32 %v574, %v368
  %577 = vrot.lane.b32.xlu0 %v572, 112
  %v578 = vpop.permute.xlu0 %577
  %v580 = vmul.f32 %v574, %v578
  %582 = vrot.lane.b32.xlu0 %v580, 8
  %v583 = vpop.permute.xlu0 %582
  %v585 = vadd.f32 %v575, %v583
  %v586 = vtanh.pop %v585
  %588 = vrot.lane.b32.xlu0 %v586, 16
  %v589 = vpop.permute.xlu0 %588
  %v591 = vmul.f32 %v574, %v589
  %593 = vrot.lane.b32.xlu0 %v374, 104
  %v594 = vpop.permute.xlu0 %593
  %597 = vrot.lane.b32.xlu0 %v447, 112
  %v598 = vpop.permute.xlu0 %597
  %v600 = vsel %vm29, %v594, %v598
  %v601 = vpack.c.bf16 %v600, %v600
  %v603 = vsel %vm243, %v601, 0
  %605 = vmatprep.subr.bf16.mxu0 0
  %606 = vmatpush1.bf16.msra.mxu0 %v79
  %607 = vmatprep.subr.bf16.mxu0 0
  %608 = vmatpush1.bf16.msra.mxu0 0
  %609 = vmatprep.subr.bf16.mxu0 0
  %610 = vmatpush1.bf16.msra.mxu0 0
  %611 = vmatprep.subr.bf16.mxu0 0
  %612 = vmatpush1.bf16.msra.mxu0 0
  %613 = vmatprep.subr.bf16.mxu0 0
  %614 = vmatpush1.bf16.msra.mxu0 0
  %615 = vmatprep.subr.bf16.mxu0 0
  %616 = vmatpush1.bf16.msra.mxu0 0
  %617 = vmatprep.subr.bf16.mxu0 0
  %618 = vmatpush1.bf16.msra.mxu0 0
  %619 = vmatprep.subr.bf16.mxu0 0
  %620 = vmatpush1.bf16.msra.mxu0 0
  %621 = vmatprep.subr.bf16.mxu0 0
  %622 = vmatpush1.bf16.msra.mxu0 0
  %623 = vmatprep.subr.bf16.mxu0 0
  %624 = vmatpush1.bf16.msra.mxu0 0
  %625 = vmatprep.subr.bf16.mxu0 0
  %626 = vmatpush1.bf16.msra.mxu0 0
  %627 = vmatprep.subr.bf16.mxu0 0
  %628 = vmatpush1.bf16.msra.mxu0 0
  %629 = vmatprep.subr.bf16.mxu0 0
  %630 = vmatpush1.bf16.msra.mxu0 0
  %631 = vmatprep.subr.bf16.mxu0 0
  %632 = vmatpush1.bf16.msra.mxu0 0
  %633 = vmatprep.subr.bf16.mxu0 0
  %634 = vmatpush1.bf16.msra.mxu0 0
  %635 = vmatprep.subr.bf16.mxu0 0
  %636 = vmatpush1.bf16.msra.mxu0 0
  %637 = vmatprep.mubr.bf16.mxu0 0
  %638 = vmatmul.mubr.bf16.gmra.mrb[0].mxu0 %v603
  %v639 = vpop.f32.mrb[0].mxu0
  %v640 = vadd.f32 %v242, %v639
  %v641 = vpop.f32.mrb[0].mxu0
  %v642 = vpop.f32.mrb[0].mxu0
  %v643 = vpop.f32.mrb[0].mxu0
  %644 = vdwg.mxu0
  %v645 = vtanh.pop %v640
  %v646 = vadd.f32 %v645, 1.0
  %v647 = vmul.f32 %v646, 0.5
  %v648 = vmul.f32 %v647, %v441
  %650 = vrot.lane.b32.xlu0 %v645, 112
  %v651 = vpop.permute.xlu0 %650
  %v653 = vmul.f32 %v647, %v651
  %655 = vrot.lane.b32.xlu0 %v653, 8
  %v656 = vpop.permute.xlu0 %655
  %v658 = vadd.f32 %v648, %v656
  %v659 = vtanh.pop %v658
  %661 = vrot.lane.b32.xlu0 %v659, 16
  %v662 = vpop.permute.xlu0 %661
  %v664 = vmul.f32 %v647, %v662
  %665 = vrot.lane.b32.xlu0 %v447, 104
  %v666 = vpop.permute.xlu0 %665
  %669 = vrot.lane.b32.xlu0 %v523, 88
  %v670 = vpop.permute.xlu0 %669
  %v672 = vsel %vm29, %v666, %v670
  %v673 = vpack.c.bf16 %v672, %v672
  %v675 = vsel %vm457, %v673, 0
  %677 = vmatprep.subr.bf16.mxu0 0
  %678 = vmatpush1.bf16.msra.mxu0 %v84
  %679 = vmatprep.subr.bf16.mxu0 0
  %680 = vmatpush1.bf16.msra.mxu0 %v462
  %681 = vmatprep.subr.bf16.mxu0 0
  %682 = vmatpush1.bf16.msra.mxu0 0
  %683 = vmatprep.subr.bf16.mxu0 0
  %684 = vmatpush1.bf16.msra.mxu0 0
  %685 = vmatprep.subr.bf16.mxu0 0
  %686 = vmatpush1.bf16.msra.mxu0 0
  %687 = vmatprep.subr.bf16.mxu0 0
  %688 = vmatpush1.bf16.msra.mxu0 0
  %689 = vmatprep.subr.bf16.mxu0 0
  %690 = vmatpush1.bf16.msra.mxu0 0
  %691 = vmatprep.subr.bf16.mxu0 0
  %692 = vmatpush1.bf16.msra.mxu0 0
  %693 = vmatprep.subr.bf16.mxu0 0
  %694 = vmatpush1.bf16.msra.mxu0 0
  %695 = vmatprep.subr.bf16.mxu0 0
  %696 = vmatpush1.bf16.msra.mxu0 0
  %697 = vmatprep.subr.bf16.mxu0 0
  %698 = vmatpush1.bf16.msra.mxu0 0
  %699 = vmatprep.subr.bf16.mxu0 0
  %700 = vmatpush1.bf16.msra.mxu0 0
  %701 = vmatprep.subr.bf16.mxu0 0
  %702 = vmatpush1.bf16.msra.mxu0 0
  %703 = vmatprep.subr.bf16.mxu0 0
  %704 = vmatpush1.bf16.msra.mxu0 0
  %705 = vmatprep.subr.bf16.mxu0 0
  %706 = vmatpush1.bf16.msra.mxu0 0
  %707 = vmatprep.subr.bf16.mxu0 0
  %708 = vmatpush1.bf16.msra.mxu0 0
  %709 = vmatprep.mubr.bf16.mxu0 0
  %710 = vmatmul.mubr.bf16.gmra.mrb[0].mxu0 %v675
  %v711 = vpop.f32.mrb[0].mxu0
  %v712 = vadd.f32 %v456, %v711
  %v713 = vpop.f32.mrb[0].mxu0
  %v714 = vpop.f32.mrb[0].mxu0
  %v715 = vpop.f32.mrb[0].mxu0
  %716 = vdwg.mxu0
  %v717 = vtanh.pop %v712
  %v718 = vadd.f32 %v717, 1.0
  %v719 = vmul.f32 %v718, 0.5
  %v720 = vmul.f32 %v719, %v517
  %722 = vrot.lane.b32.xlu0 %v717, 96
  %v723 = vpop.permute.xlu0 %722
  %v725 = vmul.f32 %v719, %v723
  %727 = vrot.lane.b32.xlu0 %v725, 16
  %v728 = vpop.permute.xlu0 %727
  %v730 = vadd.f32 %v720, %v728
  %v731 = vtanh.pop %v730
  %733 = vrot.lane.b32.xlu0 %v731, 32
  %v734 = vpop.permute.xlu0 %733
  %v736 = vmul.f32 %v719, %v734
  %737 = vrot.lane.b32.xlu0 %v523, 80
  %v738 = vpop.permute.xlu0 %737
  %v740 = vsel %vm243, %v738, 0.0
  %v741 = vpack.c.bf16 %v740, %v740
  %v742 = vlaneseq
  %v743 = vshrl.u32 %v742, 7
  %v744 = vsub.s32 0, %v743
  %v745 = vrot.slane %v93, %v744
  %vm746 = vcmask 261120
  %v748 = vsel %vm746, %v741, 0
  %750 = vmatprep.subr.bf16.mxu0 0
  %751 = vmatpush1.bf16.msra.mxu0 %v91
  %752 = vmatprep.subr.bf16.mxu0 0
  %753 = vmatpush1.bf16.msra.mxu0 %v92
  %754 = vmatprep.subr.bf16.mxu0 0
  %755 = vmatpush1.bf16.msra.mxu0 0
  %756 = vmatprep.subr.bf16.mxu0 0
  %757 = vmatpush1.bf16.msra.mxu0 0
  %758 = vmatprep.subr.bf16.mxu0 0
  %759 = vmatpush1.bf16.msra.mxu0 0
  %760 = vmatprep.subr.bf16.mxu0 0
  %761 = vmatpush1.bf16.msra.mxu0 0
  %762 = vmatprep.subr.bf16.mxu0 0
  %763 = vmatpush1.bf16.msra.mxu0 0
  %764 = vmatprep.subr.bf16.mxu0 0
  %765 = vmatpush1.bf16.msra.mxu0 0
  %766 = vmatprep.subr.bf16.mxu0 0
  %767 = vmatpush1.bf16.msra.mxu0 0
  %768 = vmatprep.subr.bf16.mxu0 0
  %769 = vmatpush1.bf16.msra.mxu0 0
  %770 = vmatprep.subr.bf16.mxu0 0
  %771 = vmatpush1.bf16.msra.mxu0 0
  %772 = vmatprep.subr.bf16.mxu0 0
  %773 = vmatpush1.bf16.msra.mxu0 0
  %774 = vmatprep.subr.bf16.mxu0 0
  %775 = vmatpush1.bf16.msra.mxu0 0
  %776 = vmatprep.subr.bf16.mxu0 0
  %777 = vmatpush1.bf16.msra.mxu0 0
  %778 = vmatprep.subr.bf16.mxu0 0
  %779 = vmatpush1.bf16.msra.mxu0 0
  %780 = vmatprep.subr.bf16.mxu0 0
  %781 = vmatpush1.bf16.msra.mxu0 0
  %782 = vmatprep.mubr.bf16.mxu0 0
  %783 = vmatmul.mubr.bf16.gmra.mrb[0].mxu0 %v748
  %v784 = vpop.f32.mrb[0].mxu0
  %v785 = vadd.f32 %v745, %v784
  %v786 = vpop.f32.mrb[0].mxu0
  %v787 = vpop.f32.mrb[0].mxu0
  %v788 = vpop.f32.mrb[0].mxu0
  %789 = vdwg.mxu0
  %v790 = vtanh.pop %v785
  %v791 = vadd.f32 %v790, 1.0
  %v792 = vmul.f32 %v791, 0.5
  %v793 = vmul.f32 %v792, 0.0
  %795 = vrot.lane.b32.xlu0 %v790, 96
  %v796 = vpop.permute.xlu0 %795
  %v798 = vmul.f32 %v792, %v796
  %800 = vrot.lane.b32.xlu0 %v798, 16
  %v801 = vpop.permute.xlu0 %800
  %v803 = vadd.f32 %v793, %v801
  %v804 = vtanh.pop %v803
  %806 = vrot.lane.b32.xlu0 %v804, 32
  %v807 = vpop.permute.xlu0 %806
  %v809 = vmul.f32 %v792, %v807
  %v810 = vpack.c.bf16 %v809, %v809
  %v811 = vlaneseq
  %v812 = vshrl.u32 %v811, 7
  %v813 = vsub.s32 0, %v812
  %v814 = vrot.slane %v97, %v813
  %816 = vrot.lane.b32.xlu0 %v810, 80
  %v817 = vpop.permute.xlu0 %816
  %v819 = vsel %vm243, %v817, 0
  %821 = vmatprep.subr.bf16.mxu0 0
  %822 = vmatpush1.bf16.msra.mxu0 %v96
  %823 = vmatprep.subr.bf16.mxu0 0
  %824 = vmatpush1.bf16.msra.mxu0 0
  %825 = vmatprep.subr.bf16.mxu0 0
  %826 = vmatpush1.bf16.msra.mxu0 0
  %827 = vmatprep.subr.bf16.mxu0 0
  %828 = vmatpush1.bf16.msra.mxu0 0
  %829 = vmatprep.subr.bf16.mxu0 0
  %830 = vmatpush1.bf16.msra.mxu0 0
  %831 = vmatprep.subr.bf16.mxu0 0
  %832 = vmatpush1.bf16.msra.mxu0 0
  %833 = vmatprep.subr.bf16.mxu0 0
  %834 = vmatpush1.bf16.msra.mxu0 0
  %835 = vmatprep.subr.bf16.mxu0 0
  %836 = vmatpush1.bf16.msra.mxu0 0
  %837 = vmatprep.subr.bf16.mxu0 0
  %838 = vmatpush1.bf16.msra.mxu0 0
  %839 = vmatprep.subr.bf16.mxu0 0
  %840 = vmatpush1.bf16.msra.mxu0 0
  %841 = vmatprep.subr.bf16.mxu0 0
  %842 = vmatpush1.bf16.msra.mxu0 0
  %843 = vmatprep.subr.bf16.mxu0 0
  %844 = vmatpush1.bf16.msra.mxu0 0
  %845 = vmatprep.subr.bf16.mxu0 0
  %846 = vmatpush1.bf16.msra.mxu0 0
  %847 = vmatprep.subr.bf16.mxu0 0
  %848 = vmatpush1.bf16.msra.mxu0 0
  %849 = vmatprep.subr.bf16.mxu0 0
  %850 = vmatpush1.bf16.msra.mxu0 0
  %851 = vmatprep.subr.bf16.mxu0 0
  %852 = vmatpush1.bf16.msra.mxu0 0
  %853 = vmatprep.mubr.bf16.mxu0 0
  %854 = vmatmul.mubr.bf16.gmra.mrb[0].mxu0 %v819
  %v855 = vpop.f32.mrb[0].mxu0
  %v856 = vadd.f32 %v814, %v855
  %v857 = vpop.f32.mrb[0].mxu0
  %v858 = vpop.f32.mrb[0].mxu0
  %v859 = vpop.f32.mrb[0].mxu0
  %860 = vdwg.mxu0
  %861 = vst.msk [vmem:[%s4] sm:$0xff] %vm746, %v856
  %v862 = vpack.c.bf16 %v591, %v591
  %864 = vrot.lane.b32.xlu0 %v862, 104
  %v865 = vpop.permute.xlu0 %864
  %v867 = vsel %vm29, %v865, 0
  %869 = vmatprep.subr.bf16.mxu0 0
  %870 = vmatpush1.bf16.msra.mxu0 %v102
  %871 = vmatprep.subr.bf16.mxu0 0
  %872 = vmatpush1.bf16.msra.mxu0 0
  %873 = vmatprep.subr.bf16.mxu0 0
  %874 = vmatpush1.bf16.msra.mxu0 0
  %875 = vmatprep.subr.bf16.mxu0 0
  %876 = vmatpush1.bf16.msra.mxu0 0
  %877 = vmatprep.subr.bf16.mxu0 0
  %878 = vmatpush1.bf16.msra.mxu0 0
  %879 = vmatprep.subr.bf16.mxu0 0
  %880 = vmatpush1.bf16.msra.mxu0 0
  %881 = vmatprep.subr.bf16.mxu0 0
  %882 = vmatpush1.bf16.msra.mxu0 0
  %883 = vmatprep.subr.bf16.mxu0 0
  %884 = vmatpush1.bf16.msra.mxu0 0
  %885 = vmatprep.subr.bf16.mxu0 0
  %886 = vmatpush1.bf16.msra.mxu0 0
  %887 = vmatprep.subr.bf16.mxu0 0
  %888 = vmatpush1.bf16.msra.mxu0 0
  %889 = vmatprep.subr.bf16.mxu0 0
  %890 = vmatpush1.bf16.msra.mxu0 0
  %891 = vmatprep.subr.bf16.mxu0 0
  %892 = vmatpush1.bf16.msra.mxu0 0
  %893 = vmatprep.subr.bf16.mxu0 0
  %894 = vmatpush1.bf16.msra.mxu0 0
  %895 = vmatprep.subr.bf16.mxu0 0
  %896 = vmatpush1.bf16.msra.mxu0 0
  %897 = vmatprep.subr.bf16.mxu0 0
  %898 = vmatpush1.bf16.msra.mxu0 0
  %899 = vmatprep.subr.bf16.mxu0 0
  %900 = vmatpush1.bf16.msra.mxu0 0
  %901 = vmatprep.mubr.bf16.mxu0 0
  %902 = vmatmul.mubr.bf16.gmra.mrb[0].mxu0 %v867
  %v903 = vpop.f32.mrb[0].mxu0
  %v904 = vadd.f32 0.0, %v903
  %v905 = vpop.f32.mrb[0].mxu0
  %v906 = vpop.f32.mrb[0].mxu0
  %v907 = vpop.f32.mrb[0].mxu0
  %908 = vdwg.mxu0
  %v909 = vadd.f32 %v72, %v904
  %v910 = vtanh.pop %v909
  %v911 = vadd.f32 %v910, 1.0
  %v912 = vmul.f32 %v911, 0.5
  %v913 = vmul.f32 %v912, %v585
  %915 = vrot.lane.b32.xlu0 %v910, 112
  %v916 = vpop.permute.xlu0 %915
  %v918 = vmul.f32 %v912, %v916
  %920 = vrot.lane.b32.xlu0 %v918, 8
  %v921 = vpop.permute.xlu0 %920
  %v923 = vadd.f32 %v913, %v921
  %v924 = vtanh.pop %v923
  %926 = vrot.lane.b32.xlu0 %v924, 16
  %v927 = vpop.permute.xlu0 %926
  %v929 = vmul.f32 %v912, %v927
  %931 = vrot.lane.b32.xlu0 %v591, 104
  %v932 = vpop.permute.xlu0 %931
  %935 = vrot.lane.b32.xlu0 %v664, 112
  %v936 = vpop.permute.xlu0 %935
  %v938 = vsel %vm29, %v932, %v936
  %v939 = vpack.c.bf16 %v938, %v938
  %v941 = vsel %vm243, %v939, 0
  %943 = vmatprep.subr.bf16.mxu0 0
  %944 = vmatpush1.bf16.msra.mxu0 %v79
  %945 = vmatprep.subr.bf16.mxu0 0
  %946 = vmatpush1.bf16.msra.mxu0 0
  %947 = vmatprep.subr.bf16.mxu0 0
  %948 = vmatpush1.bf16.msra.mxu0 0
  %949 = vmatprep.subr.bf16.mxu0 0
  %950 = vmatpush1.bf16.msra.mxu0 0
  %951 = vmatprep.subr.bf16.mxu0 0
  %952 = vmatpush1.bf16.msra.mxu0 0
  %953 = vmatprep.subr.bf16.mxu0 0
  %954 = vmatpush1.bf16.msra.mxu0 0
  %955 = vmatprep.subr.bf16.mxu0 0
  %956 = vmatpush1.bf16.msra.mxu0 0
  %957 = vmatprep.subr.bf16.mxu0 0
  %958 = vmatpush1.bf16.msra.mxu0 0
  %959 = vmatprep.subr.bf16.mxu0 0
  %960 = vmatpush1.bf16.msra.mxu0 0
  %961 = vmatprep.subr.bf16.mxu0 0
  %962 = vmatpush1.bf16.msra.mxu0 0
  %963 = vmatprep.subr.bf16.mxu0 0
  %964 = vmatpush1.bf16.msra.mxu0 0
  %965 = vmatprep.subr.bf16.mxu0 0
  %966 = vmatpush1.bf16.msra.mxu0 0
  %967 = vmatprep.subr.bf16.mxu0 0
  %968 = vmatpush1.bf16.msra.mxu0 0
  %969 = vmatprep.subr.bf16.mxu0 0
  %970 = vmatpush1.bf16.msra.mxu0 0
  %971 = vmatprep.subr.bf16.mxu0 0
  %972 = vmatpush1.bf16.msra.mxu0 0
  %973 = vmatprep.subr.bf16.mxu0 0
  %974 = vmatpush1.bf16.msra.mxu0 0
  %975 = vmatprep.mubr.bf16.mxu0 0
  %976 = vmatmul.mubr.bf16.gmra.mrb[0].mxu0 %v941
  %v977 = vpop.f32.mrb[0].mxu0
  %v978 = vadd.f32 %v242, %v977
  %v979 = vpop.f32.mrb[0].mxu0
  %v980 = vpop.f32.mrb[0].mxu0
  %v981 = vpop.f32.mrb[0].mxu0
  %982 = vdwg.mxu0
  %v983 = vtanh.pop %v978
  %v984 = vadd.f32 %v983, 1.0
  %v985 = vmul.f32 %v984, 0.5
  %v986 = vmul.f32 %v985, %v658
  %988 = vrot.lane.b32.xlu0 %v983, 112
  %v989 = vpop.permute.xlu0 %988
  %v991 = vmul.f32 %v985, %v989
  %993 = vrot.lane.b32.xlu0 %v991, 8
  %v994 = vpop.permute.xlu0 %993
  %v996 = vadd.f32 %v986, %v994
  %v997 = vtanh.pop %v996
  %999 = vrot.lane.b32.xlu0 %v997, 16
  %v1000 = vpop.permute.xlu0 %999
  %v1002 = vmul.f32 %v985, %v1000
  %1003 = vrot.lane.b32.xlu0 %v664, 104
  %v1004 = vpop.permute.xlu0 %1003
  %1007 = vrot.lane.b32.xlu0 %v736, 88
  %v1008 = vpop.permute.xlu0 %1007
  %v1010 = vsel %vm29, %v1004, %v1008
  %v1011 = vpack.c.bf16 %v1010, %v1010
  %v1013 = vsel %vm457, %v1011, 0
  %1015 = vmatprep.subr.bf16.mxu0 0
  %1016 = vmatpush1.bf16.msra.mxu0 %v84
  %1017 = vmatprep.subr.bf16.mxu0 0
  %1018 = vmatpush1.bf16.msra.mxu0 %v462
  %1019 = vmatprep.subr.bf16.mxu0 0
  %1020 = vmatpush1.bf16.msra.mxu0 0
  %1021 = vmatprep.subr.bf16.mxu0 0
  %1022 = vmatpush1.bf16.msra.mxu0 0
  %1023 = vmatprep.subr.bf16.mxu0 0
  %1024 = vmatpush1.bf16.msra.mxu0 0
  %1025 = vmatprep.subr.bf16.mxu0 0
  %1026 = vmatpush1.bf16.msra.mxu0 0
  %1027 = vmatprep.subr.bf16.mxu0 0
  %1028 = vmatpush1.bf16.msra.mxu0 0
  %1029 = vmatprep.subr.bf16.mxu0 0
  %1030 = vmatpush1.bf16.msra.mxu0 0
  %1031 = vmatprep.subr.bf16.mxu0 0
  %1032 = vmatpush1.bf16.msra.mxu0 0
  %1033 = vmatprep.subr.bf16.mxu0 0
  %1034 = vmatpush1.bf16.msra.mxu0 0
  %1035 = vmatprep.subr.bf16.mxu0 0
  %1036 = vmatpush1.bf16.msra.mxu0 0
  %1037 = vmatprep.subr.bf16.mxu0 0
  %1038 = vmatpush1.bf16.msra.mxu0 0
  %1039 = vmatprep.subr.bf16.mxu0 0
  %1040 = vmatpush1.bf16.msra.mxu0 0
  %1041 = vmatprep.subr.bf16.mxu0 0
  %1042 = vmatpush1.bf16.msra.mxu0 0
  %1043 = vmatprep.subr.bf16.mxu0 0
  %1044 = vmatpush1.bf16.msra.mxu0 0
  %1045 = vmatprep.subr.bf16.mxu0 0
  %1046 = vmatpush1.bf16.msra.mxu0 0
  %1047 = vmatprep.mubr.bf16.mxu0 0
  %1048 = vmatmul.mubr.bf16.gmra.mrb[0].mxu0 %v1013
  %v1049 = vpop.f32.mrb[0].mxu0
  %v1050 = vadd.f32 %v456, %v1049
  %v1051 = vpop.f32.mrb[0].mxu0
  %v1052 = vpop.f32.mrb[0].mxu0
  %v1053 = vpop.f32.mrb[0].mxu0
  %1054 = vdwg.mxu0
  %v1055 = vtanh.pop %v1050
  %v1056 = vadd.f32 %v1055, 1.0
  %v1057 = vmul.f32 %v1056, 0.5
  %v1058 = vmul.f32 %v1057, %v730
  %1060 = vrot.lane.b32.xlu0 %v1055, 96
  %v1061 = vpop.permute.xlu0 %1060
  %v1063 = vmul.f32 %v1057, %v1061
  %1065 = vrot.lane.b32.xlu0 %v1063, 16
  %v1066 = vpop.permute.xlu0 %1065
  %v1068 = vadd.f32 %v1058, %v1066
  %v1069 = vtanh.pop %v1068
  %1071 = vrot.lane.b32.xlu0 %v1069, 32
  %v1072 = vpop.permute.xlu0 %1071
  %v1074 = vmul.f32 %v1057, %v1072
  %1075 = vrot.lane.b32.xlu0 %v736, 80
  %v1076 = vpop.permute.xlu0 %1075
  %1079 = vrot.lane.b32.xlu0 %v809, 96
  %v1080 = vpop.permute.xlu0 %1079
  %v1082 = vsel %vm243, %v1076, %v1080
  %v1083 = vpack.c.bf16 %v1082, %v1082
  %v1085 = vsel %vm746, %v1083, 0
  %1087 = vmatprep.subr.bf16.mxu0 0
  %1088 = vmatpush1.bf16.msra.mxu0 %v91
  %1089 = vmatprep.subr.bf16.mxu0 0
  %1090 = vmatpush1.bf16.msra.mxu0 %v92
  %1091 = vmatprep.subr.bf16.mxu0 0
  %1092 = vmatpush1.bf16.msra.mxu0 0
  %1093 = vmatprep.subr.bf16.mxu0 0
  %1094 = vmatpush1.bf16.msra.mxu0 0
  %1095 = vmatprep.subr.bf16.mxu0 0
  %1096 = vmatpush1.bf16.msra.mxu0 0
  %1097 = vmatprep.subr.bf16.mxu0 0
  %1098 = vmatpush1.bf16.msra.mxu0 0
  %1099 = vmatprep.subr.bf16.mxu0 0
  %1100 = vmatpush1.bf16.msra.mxu0 0
  %1101 = vmatprep.subr.bf16.mxu0 0
  %1102 = vmatpush1.bf16.msra.mxu0 0
  %1103 = vmatprep.subr.bf16.mxu0 0
  %1104 = vmatpush1.bf16.msra.mxu0 0
  %1105 = vmatprep.subr.bf16.mxu0 0
  %1106 = vmatpush1.bf16.msra.mxu0 0
  %1107 = vmatprep.subr.bf16.mxu0 0
  %1108 = vmatpush1.bf16.msra.mxu0 0
  %1109 = vmatprep.subr.bf16.mxu0 0
  %1110 = vmatpush1.bf16.msra.mxu0 0
  %1111 = vmatprep.subr.bf16.mxu0 0
  %1112 = vmatpush1.bf16.msra.mxu0 0
  %1113 = vmatprep.subr.bf16.mxu0 0
  %1114 = vmatpush1.bf16.msra.mxu0 0
  %1115 = vmatprep.subr.bf16.mxu0 0
  %1116 = vmatpush1.bf16.msra.mxu0 0
  %1117 = vmatprep.subr.bf16.mxu0 0
  %1118 = vmatpush1.bf16.msra.mxu0 0
  %1119 = vmatprep.mubr.bf16.mxu0 0
  %1120 = vmatmul.mubr.bf16.gmra.mrb[0].mxu0 %v1085
  %v1121 = vpop.f32.mrb[0].mxu0
  %v1122 = vadd.f32 %v745, %v1121
  %v1123 = vpop.f32.mrb[0].mxu0
  %v1124 = vpop.f32.mrb[0].mxu0
  %v1125 = vpop.f32.mrb[0].mxu0
  %1126 = vdwg.mxu0
  %v1127 = vtanh.pop %v1122
  %v1128 = vadd.f32 %v1127, 1.0
  %v1129 = vmul.f32 %v1128, 0.5
  %v1130 = vmul.f32 %v1129, %v803
  %1132 = vrot.lane.b32.xlu0 %v1127, 96
  %v1133 = vpop.permute.xlu0 %1132
  %v1135 = vmul.f32 %v1129, %v1133
  %1137 = vrot.lane.b32.xlu0 %v1135, 16
  %v1138 = vpop.permute.xlu0 %1137
  %v1140 = vadd.f32 %v1130, %v1138
  %v1141 = vtanh.pop %v1140
  %1143 = vrot.lane.b32.xlu0 %v1141, 32
  %v1144 = vpop.permute.xlu0 %1143
  %v1146 = vmul.f32 %v1129, %v1144
  %v1147 = vpack.c.bf16 %v1146, %v1146
  %1149 = vrot.lane.b32.xlu0 %v1147, 80
  %v1150 = vpop.permute.xlu0 %1149
  %v1152 = vsel %vm243, %v1150, 0
  %1154 = vmatprep.subr.bf16.mxu0 0
  %1155 = vmatpush1.bf16.msra.mxu0 %v96
  %1156 = vmatprep.subr.bf16.mxu0 0
  %1157 = vmatpush1.bf16.msra.mxu0 0
  %1158 = vmatprep.subr.bf16.mxu0 0
  %1159 = vmatpush1.bf16.msra.mxu0 0
  %1160 = vmatprep.subr.bf16.mxu0 0
  %1161 = vmatpush1.bf16.msra.mxu0 0
  %1162 = vmatprep.subr.bf16.mxu0 0
  %1163 = vmatpush1.bf16.msra.mxu0 0
  %1164 = vmatprep.subr.bf16.mxu0 0
  %1165 = vmatpush1.bf16.msra.mxu0 0
  %1166 = vmatprep.subr.bf16.mxu0 0
  %1167 = vmatpush1.bf16.msra.mxu0 0
  %1168 = vmatprep.subr.bf16.mxu0 0
  %1169 = vmatpush1.bf16.msra.mxu0 0
  %1170 = vmatprep.subr.bf16.mxu0 0
  %1171 = vmatpush1.bf16.msra.mxu0 0
  %1172 = vmatprep.subr.bf16.mxu0 0
  %1173 = vmatpush1.bf16.msra.mxu0 0
  %1174 = vmatprep.subr.bf16.mxu0 0
  %1175 = vmatpush1.bf16.msra.mxu0 0
  %1176 = vmatprep.subr.bf16.mxu0 0
  %1177 = vmatpush1.bf16.msra.mxu0 0
  %1178 = vmatprep.subr.bf16.mxu0 0
  %1179 = vmatpush1.bf16.msra.mxu0 0
  %1180 = vmatprep.subr.bf16.mxu0 0
  %1181 = vmatpush1.bf16.msra.mxu0 0
  %1182 = vmatprep.subr.bf16.mxu0 0
  %1183 = vmatpush1.bf16.msra.mxu0 0
  %1184 = vmatprep.subr.bf16.mxu0 0
  %1185 = vmatpush1.bf16.msra.mxu0 0
  %1186 = vmatprep.mubr.bf16.mxu0 0
  %1187 = vmatmul.mubr.bf16.gmra.mrb[0].mxu0 %v1152
  %v1188 = vpop.f32.mrb[0].mxu0
  %v1189 = vadd.f32 %v814, %v1188
  %v1190 = vpop.f32.mrb[0].mxu0
  %v1191 = vpop.f32.mrb[0].mxu0
  %v1192 = vpop.f32.mrb[0].mxu0
  %1193 = vdwg.mxu0
  %1195 = vrot.lane.b32.xlu0 %v1189, 32
  %v1196 = vpop.permute.xlu0 %1195
  %vm1198 = vcmask 523520
  %1199 = vst.msk [vmem:[%s4] sm:$0xff] %vm1198, %v1196
  %v1200 = vpack.c.bf16 %v929, %v929
  %1202 = vrot.lane.b32.xlu0 %v1200, 104
  %v1203 = vpop.permute.xlu0 %1202
  %v1205 = vsel %vm29, %v1203, 0
  %1207 = vmatprep.subr.bf16.mxu0 0
  %1208 = vmatpush1.bf16.msra.mxu0 %v102
  %1209 = vmatprep.subr.bf16.mxu0 0
  %1210 = vmatpush1.bf16.msra.mxu0 0
  %1211 = vmatprep.subr.bf16.mxu0 0
  %1212 = vmatpush1.bf16.msra.mxu0 0
  %1213 = vmatprep.subr.bf16.mxu0 0
  %1214 = vmatpush1.bf16.msra.mxu0 0
  %1215 = vmatprep.subr.bf16.mxu0 0
  %1216 = vmatpush1.bf16.msra.mxu0 0
  %1217 = vmatprep.subr.bf16.mxu0 0
  %1218 = vmatpush1.bf16.msra.mxu0 0
  %1219 = vmatprep.subr.bf16.mxu0 0
  %1220 = vmatpush1.bf16.msra.mxu0 0
  %1221 = vmatprep.subr.bf16.mxu0 0
  %1222 = vmatpush1.bf16.msra.mxu0 0
  %1223 = vmatprep.subr.bf16.mxu0 0
  %1224 = vmatpush1.bf16.msra.mxu0 0
  %1225 = vmatprep.subr.bf16.mxu0 0
  %1226 = vmatpush1.bf16.msra.mxu0 0
  %1227 = vmatprep.subr.bf16.mxu0 0
  %1228 = vmatpush1.bf16.msra.mxu0 0
  %1229 = vmatprep.subr.bf16.mxu0 0
  %1230 = vmatpush1.bf16.msra.mxu0 0
  %1231 = vmatprep.subr.bf16.mxu0 0
  %1232 = vmatpush1.bf16.msra.mxu0 0
  %1233 = vmatprep.subr.bf16.mxu0 0
  %1234 = vmatpush1.bf16.msra.mxu0 0
  %1235 = vmatprep.subr.bf16.mxu0 0
  %1236 = vmatpush1.bf16.msra.mxu0 0
  %1237 = vmatprep.subr.bf16.mxu0 0
  %1238 = vmatpush1.bf16.msra.mxu0 0
  %1239 = vmatprep.mubr.bf16.mxu0 0
  %1240 = vmatmul.mubr.bf16.gmra.mrb[0].mxu0 %v1205
  %v1241 = vpop.f32.mrb[0].mxu0
  %v1242 = vadd.f32 0.0, %v1241
  %v1243 = vpop.f32.mrb[0].mxu0
  %v1244 = vpop.f32.mrb[0].mxu0
  %v1245 = vpop.f32.mrb[0].mxu0
  %1246 = vdwg.mxu0
  %v1247 = vadd.f32 %v72, %v1242
  %v1248 = vtanh.pop %v1247
  %v1249 = vadd.f32 %v1248, 1.0
  %v1250 = vmul.f32 %v1249, 0.5
  %v1251 = vmul.f32 %v1250, %v923
  %1253 = vrot.lane.b32.xlu0 %v1248, 112
  %v1254 = vpop.permute.xlu0 %1253
  %v1256 = vmul.f32 %v1250, %v1254
  %1258 = vrot.lane.b32.xlu0 %v1256, 8
  %v1259 = vpop.permute.xlu0 %1258
  %v1261 = vadd.f32 %v1251, %v1259
  %v1262 = vtanh.pop %v1261
  %1264 = vrot.lane.b32.xlu0 %v1262, 16
  %v1265 = vpop.permute.xlu0 %1264
  %v1267 = vmul.f32 %v1250, %v1265
  %1269 = vrot.lane.b32.xlu0 %v929, 104
  %v1270 = vpop.permute.xlu0 %1269
  %1273 = vrot.lane.b32.xlu0 %v1002, 112
  %v1274 = vpop.permute.xlu0 %1273
  %v1276 = vsel %vm29, %v1270, %v1274
  %v1277 = vpack.c.bf16 %v1276, %v1276
  %v1279 = vsel %vm243, %v1277, 0
  %1281 = vmatprep.subr.bf16.mxu0 0
  %1282 = vmatpush1.bf16.msra.mxu0 %v79
  %1283 = vmatprep.subr.bf16.mxu0 0
  %1284 = vmatpush1.bf16.msra.mxu0 0
  %1285 = vmatprep.subr.bf16.mxu0 0
  %1286 = vmatpush1.bf16.msra.mxu0 0
  %1287 = vmatprep.subr.bf16.mxu0 0
  %1288 = vmatpush1.bf16.msra.mxu0 0
  %1289 = vmatprep.subr.bf16.mxu0 0
  %1290 = vmatpush1.bf16.msra.mxu0 0
  %1291 = vmatprep.subr.bf16.mxu0 0
  %1292 = vmatpush1.bf16.msra.mxu0 0
  %1293 = vmatprep.subr.bf16.mxu0 0
  %1294 = vmatpush1.bf16.msra.mxu0 0
  %1295 = vmatprep.subr.bf16.mxu0 0
  %1296 = vmatpush1.bf16.msra.mxu0 0
  %1297 = vmatprep.subr.bf16.mxu0 0
  %1298 = vmatpush1.bf16.msra.mxu0 0
  %1299 = vmatprep.subr.bf16.mxu0 0
  %1300 = vmatpush1.bf16.msra.mxu0 0
  %1301 = vmatprep.subr.bf16.mxu0 0
  %1302 = vmatpush1.bf16.msra.mxu0 0
  %1303 = vmatprep.subr.bf16.mxu0 0
  %1304 = vmatpush1.bf16.msra.mxu0 0
  %1305 = vmatprep.subr.bf16.mxu0 0
  %1306 = vmatpush1.bf16.msra.mxu0 0
  %1307 = vmatprep.subr.bf16.mxu0 0
  %1308 = vmatpush1.bf16.msra.mxu0 0
  %1309 = vmatprep.subr.bf16.mxu0 0
  %1310 = vmatpush1.bf16.msra.mxu0 0
  %1311 = vmatprep.subr.bf16.mxu0 0
  %1312 = vmatpush1.bf16.msra.mxu0 0
  %1313 = vmatprep.mubr.bf16.mxu0 0
  %1314 = vmatmul.mubr.bf16.gmra.mrb[0].mxu0 %v1279
  %v1315 = vpop.f32.mrb[0].mxu0
  %v1316 = vadd.f32 %v242, %v1315
  %v1317 = vpop.f32.mrb[0].mxu0
  %v1318 = vpop.f32.mrb[0].mxu0
  %v1319 = vpop.f32.mrb[0].mxu0
  %1320 = vdwg.mxu0
  %v1321 = vtanh.pop %v1316
  %v1322 = vadd.f32 %v1321, 1.0
  %v1323 = vmul.f32 %v1322, 0.5
  %v1324 = vmul.f32 %v1323, %v996
  %1326 = vrot.lane.b32.xlu0 %v1321, 112
  %v1327 = vpop.permute.xlu0 %1326
  %v1329 = vmul.f32 %v1323, %v1327
  %1331 = vrot.lane.b32.xlu0 %v1329, 8
  %v1332 = vpop.permute.xlu0 %1331
  %v1334 = vadd.f32 %v1324, %v1332
  %v1335 = vtanh.pop %v1334
  %1337 = vrot.lane.b32.xlu0 %v1335, 16
  %v1338 = vpop.permute.xlu0 %1337
  %v1340 = vmul.f32 %v1323, %v1338
  %1341 = vrot.lane.b32.xlu0 %v1002, 104
  %v1342 = vpop.permute.xlu0 %1341
  %1345 = vrot.lane.b32.xlu0 %v1074, 88
  %v1346 = vpop.permute.xlu0 %1345
  %v1348 = vsel %vm29, %v1342, %v1346
  %v1349 = vpack.c.bf16 %v1348, %v1348
  %v1351 = vsel %vm457, %v1349, 0
  %1353 = vmatprep.subr.bf16.mxu0 0
  %1354 = vmatpush1.bf16.msra.mxu0 %v84
  %1355 = vmatprep.subr.bf16.mxu0 0
  %1356 = vmatpush1.bf16.msra.mxu0 %v462
  %1357 = vmatprep.subr.bf16.mxu0 0
  %1358 = vmatpush1.bf16.msra.mxu0 0
  %1359 = vmatprep.subr.bf16.mxu0 0
  %1360 = vmatpush1.bf16.msra.mxu0 0
  %1361 = vmatprep.subr.bf16.mxu0 0
  %1362 = vmatpush1.bf16.msra.mxu0 0
  %1363 = vmatprep.subr.bf16.mxu0 0
  %1364 = vmatpush1.bf16.msra.mxu0 0
  %1365 = vmatprep.subr.bf16.mxu0 0
  %1366 = vmatpush1.bf16.msra.mxu0 0
  %1367 = vmatprep.subr.bf16.mxu0 0
  %1368 = vmatpush1.bf16.msra.mxu0 0
  %1369 = vmatprep.subr.bf16.mxu0 0
  %1370 = vmatpush1.bf16.msra.mxu0 0
  %1371 = vmatprep.subr.bf16.mxu0 0
  %1372 = vmatpush1.bf16.msra.mxu0 0
  %1373 = vmatprep.subr.bf16.mxu0 0
  %1374 = vmatpush1.bf16.msra.mxu0 0
  %1375 = vmatprep.subr.bf16.mxu0 0
  %1376 = vmatpush1.bf16.msra.mxu0 0
  %1377 = vmatprep.subr.bf16.mxu0 0
  %1378 = vmatpush1.bf16.msra.mxu0 0
  %1379 = vmatprep.subr.bf16.mxu0 0
  %1380 = vmatpush1.bf16.msra.mxu0 0
  %1381 = vmatprep.subr.bf16.mxu0 0
  %1382 = vmatpush1.bf16.msra.mxu0 0
  %1383 = vmatprep.subr.bf16.mxu0 0
  %1384 = vmatpush1.bf16.msra.mxu0 0
  %1385 = vmatprep.mubr.bf16.mxu0 0
  %1386 = vmatmul.mubr.bf16.gmra.mrb[0].mxu0 %v1351
  %v1387 = vpop.f32.mrb[0].mxu0
  %v1388 = vadd.f32 %v456, %v1387
  %v1389 = vpop.f32.mrb[0].mxu0
  %v1390 = vpop.f32.mrb[0].mxu0
  %v1391 = vpop.f32.mrb[0].mxu0
  %1392 = vdwg.mxu0
  %v1393 = vtanh.pop %v1388
  %v1394 = vadd.f32 %v1393, 1.0
  %v1395 = vmul.f32 %v1394, 0.5
  %v1396 = vmul.f32 %v1395, %v1068
  %1398 = vrot.lane.b32.xlu0 %v1393, 96
  %v1399 = vpop.permute.xlu0 %1398
  %v1401 = vmul.f32 %v1395, %v1399
  %1403 = vrot.lane.b32.xlu0 %v1401, 16
  %v1404 = vpop.permute.xlu0 %1403
  %v1406 = vadd.f32 %v1396, %v1404
  %v1407 = vtanh.pop %v1406
  %1409 = vrot.lane.b32.xlu0 %v1407, 32
  %v1410 = vpop.permute.xlu0 %1409
  %v1412 = vmul.f32 %v1395, %v1410
  %1413 = vrot.lane.b32.xlu0 %v1074, 80
  %v1414 = vpop.permute.xlu0 %1413
  %1417 = vrot.lane.b32.xlu0 %v1146, 96
  %v1418 = vpop.permute.xlu0 %1417
  %v1420 = vsel %vm243, %v1414, %v1418
  %v1421 = vpack.c.bf16 %v1420, %v1420
  %v1423 = vsel %vm746, %v1421, 0
  %1425 = vmatprep.subr.bf16.mxu0 0
  %1426 = vmatpush1.bf16.msra.mxu0 %v91
  %1427 = vmatprep.subr.bf16.mxu0 0
  %1428 = vmatpush1.bf16.msra.mxu0 %v92
  %1429 = vmatprep.subr.bf16.mxu0 0
  %1430 = vmatpush1.bf16.msra.mxu0 0
  %1431 = vmatprep.subr.bf16.mxu0 0
  %1432 = vmatpush1.bf16.msra.mxu0 0
  %1433 = vmatprep.subr.bf16.mxu0 0
  %1434 = vmatpush1.bf16.msra.mxu0 0
  %1435 = vmatprep.subr.bf16.mxu0 0
  %1436 = vmatpush1.bf16.msra.mxu0 0
  %1437 = vmatprep.subr.bf16.mxu0 0
  %1438 = vmatpush1.bf16.msra.mxu0 0
  %1439 = vmatprep.subr.bf16.mxu0 0
  %1440 = vmatpush1.bf16.msra.mxu0 0
  %1441 = vmatprep.subr.bf16.mxu0 0
  %1442 = vmatpush1.bf16.msra.mxu0 0
  %1443 = vmatprep.subr.bf16.mxu0 0
  %1444 = vmatpush1.bf16.msra.mxu0 0
  %1445 = vmatprep.subr.bf16.mxu0 0
  %1446 = vmatpush1.bf16.msra.mxu0 0
  %1447 = vmatprep.subr.bf16.mxu0 0
  %1448 = vmatpush1.bf16.msra.mxu0 0
  %1449 = vmatprep.subr.bf16.mxu0 0
  %1450 = vmatpush1.bf16.msra.mxu0 0
  %1451 = vmatprep.subr.bf16.mxu0 0
  %1452 = vmatpush1.bf16.msra.mxu0 0
  %1453 = vmatprep.subr.bf16.mxu0 0
  %1454 = vmatpush1.bf16.msra.mxu0 0
  %1455 = vmatprep.subr.bf16.mxu0 0
  %1456 = vmatpush1.bf16.msra.mxu0 0
  %1457 = vmatprep.mubr.bf16.mxu0 0
  %1458 = vmatmul.mubr.bf16.gmra.mrb[0].mxu0 %v1423
  %v1459 = vpop.f32.mrb[0].mxu0
  %v1460 = vadd.f32 %v745, %v1459
  %v1461 = vpop.f32.mrb[0].mxu0
  %v1462 = vpop.f32.mrb[0].mxu0
  %v1463 = vpop.f32.mrb[0].mxu0
  %1464 = vdwg.mxu0
  %v1465 = vtanh.pop %v1460
  %v1466 = vadd.f32 %v1465, 1.0
  %v1467 = vmul.f32 %v1466, 0.5
  %v1468 = vmul.f32 %v1467, %v1140
  %1470 = vrot.lane.b32.xlu0 %v1465, 96
  %v1471 = vpop.permute.xlu0 %1470
  %v1473 = vmul.f32 %v1467, %v1471
  %1475 = vrot.lane.b32.xlu0 %v1473, 16
  %v1476 = vpop.permute.xlu0 %1475
  %v1478 = vadd.f32 %v1468, %v1476
  %v1479 = vtanh.pop %v1478
  %1481 = vrot.lane.b32.xlu0 %v1479, 32
  %v1482 = vpop.permute.xlu0 %1481
  %v1484 = vmul.f32 %v1467, %v1482
  %v1485 = vpack.c.bf16 %v1484, %v1484
  %1487 = vrot.lane.b32.xlu0 %v1485, 80
  %v1488 = vpop.permute.xlu0 %1487
  %v1490 = vsel %vm243, %v1488, 0
  %1492 = vmatprep.subr.bf16.mxu0 0
  %1493 = vmatpush1.bf16.msra.mxu0 %v96
  %1494 = vmatprep.subr.bf16.mxu0 0
  %1495 = vmatpush1.bf16.msra.mxu0 0
  %1496 = vmatprep.subr.bf16.mxu0 0
  %1497 = vmatpush1.bf16.msra.mxu0 0
  %1498 = vmatprep.subr.bf16.mxu0 0
  %1499 = vmatpush1.bf16.msra.mxu0 0
  %1500 = vmatprep.subr.bf16.mxu0 0
  %1501 = vmatpush1.bf16.msra.mxu0 0
  %1502 = vmatprep.subr.bf16.mxu0 0
  %1503 = vmatpush1.bf16.msra.mxu0 0
  %1504 = vmatprep.subr.bf16.mxu0 0
  %1505 = vmatpush1.bf16.msra.mxu0 0
  %1506 = vmatprep.subr.bf16.mxu0 0
  %1507 = vmatpush1.bf16.msra.mxu0 0
  %1508 = vmatprep.subr.bf16.mxu0 0
  %1509 = vmatpush1.bf16.msra.mxu0 0
  %1510 = vmatprep.subr.bf16.mxu0 0
  %1511 = vmatpush1.bf16.msra.mxu0 0
  %1512 = vmatprep.subr.bf16.mxu0 0
  %1513 = vmatpush1.bf16.msra.mxu0 0
  %1514 = vmatprep.subr.bf16.mxu0 0
  %1515 = vmatpush1.bf16.msra.mxu0 0
  %1516 = vmatprep.subr.bf16.mxu0 0
  %1517 = vmatpush1.bf16.msra.mxu0 0
  %1518 = vmatprep.subr.bf16.mxu0 0
  %1519 = vmatpush1.bf16.msra.mxu0 0
  %1520 = vmatprep.subr.bf16.mxu0 0
  %1521 = vmatpush1.bf16.msra.mxu0 0
  %1522 = vmatprep.subr.bf16.mxu0 0
  %1523 = vmatpush1.bf16.msra.mxu0 0
  %1524 = vmatprep.mubr.bf16.mxu0 0
  %1525 = vmatmul.mubr.bf16.gmra.mrb[0].mxu0 %v1490
  %v1526 = vpop.f32.mrb[0].mxu0
  %v1527 = vadd.f32 %v814, %v1526
  %v1528 = vpop.f32.mrb[0].mxu0
  %v1529 = vpop.f32.mrb[0].mxu0
  %v1530 = vpop.f32.mrb[0].mxu0
  %1531 = vdwg.mxu0
  %1533 = vrot.lane.b32.xlu0 %v1527, 64
  %v1534 = vpop.permute.xlu0 %1533
  %vm1536 = vcmask 785920
  %1537 = vst.msk [vmem:[%s4] sm:$0xff] %vm1536, %v1534
  %v1538 = vpack.c.bf16 %v1267, %v1267
  %1540 = vrot.lane.b32.xlu0 %v1538, 104
  %v1541 = vpop.permute.xlu0 %1540
  %v1543 = vsel %vm29, %v1541, 0
  %1545 = vmatprep.subr.bf16.mxu0 0
  %1546 = vmatpush1.bf16.msra.mxu0 %v102
  %1547 = vmatprep.subr.bf16.mxu0 0
  %1548 = vmatpush1.bf16.msra.mxu0 0
  %1549 = vmatprep.subr.bf16.mxu0 0
  %1550 = vmatpush1.bf16.msra.mxu0 0
  %1551 = vmatprep.subr.bf16.mxu0 0
  %1552 = vmatpush1.bf16.msra.mxu0 0
  %1553 = vmatprep.subr.bf16.mxu0 0
  %1554 = vmatpush1.bf16.msra.mxu0 0
  %1555 = vmatprep.subr.bf16.mxu0 0
  %1556 = vmatpush1.bf16.msra.mxu0 0
  %1557 = vmatprep.subr.bf16.mxu0 0
  %1558 = vmatpush1.bf16.msra.mxu0 0
  %1559 = vmatprep.subr.bf16.mxu0 0
  %1560 = vmatpush1.bf16.msra.mxu0 0
  %1561 = vmatprep.subr.bf16.mxu0 0
  %1562 = vmatpush1.bf16.msra.mxu0 0
  %1563 = vmatprep.subr.bf16.mxu0 0
  %1564 = vmatpush1.bf16.msra.mxu0 0
  %1565 = vmatprep.subr.bf16.mxu0 0
  %1566 = vmatpush1.bf16.msra.mxu0 0
  %1567 = vmatprep.subr.bf16.mxu0 0
  %1568 = vmatpush1.bf16.msra.mxu0 0
  %1569 = vmatprep.subr.bf16.mxu0 0
  %1570 = vmatpush1.bf16.msra.mxu0 0
  %1571 = vmatprep.subr.bf16.mxu0 0
  %1572 = vmatpush1.bf16.msra.mxu0 0
  %1573 = vmatprep.subr.bf16.mxu0 0
  %1574 = vmatpush1.bf16.msra.mxu0 0
  %1575 = vmatprep.subr.bf16.mxu0 0
  %1576 = vmatpush1.bf16.msra.mxu0 0
  %1577 = vmatprep.mubr.bf16.mxu0 0
  %1578 = vmatmul.mubr.bf16.gmra.mrb[0].mxu0 %v1543
  %v1579 = vpop.f32.mrb[0].mxu0
  %v1580 = vadd.f32 0.0, %v1579
  %v1581 = vpop.f32.mrb[0].mxu0
  %v1582 = vpop.f32.mrb[0].mxu0
  %v1583 = vpop.f32.mrb[0].mxu0
  %1584 = vdwg.mxu0
  %v1585 = vadd.f32 %v72, %v1580
  %v1586 = vtanh.pop %v1585
  %v1587 = vadd.f32 %v1586, 1.0
  %v1588 = vmul.f32 %v1587, 0.5
  %v1589 = vmul.f32 %v1588, %v1261
  %1591 = vrot.lane.b32.xlu0 %v1586, 112
  %v1592 = vpop.permute.xlu0 %1591
  %v1594 = vmul.f32 %v1588, %v1592
  %1596 = vrot.lane.b32.xlu0 %v1594, 8
  %v1597 = vpop.permute.xlu0 %1596
  %v1599 = vadd.f32 %v1589, %v1597
  %v1600 = vtanh.pop %v1599
  %1602 = vrot.lane.b32.xlu0 %v1600, 16
  %v1603 = vpop.permute.xlu0 %1602
  %v1605 = vmul.f32 %v1588, %v1603
  %1607 = vrot.lane.b32.xlu0 %v1267, 104
  %v1608 = vpop.permute.xlu0 %1607
  %1611 = vrot.lane.b32.xlu0 %v1340, 112
  %v1612 = vpop.permute.xlu0 %1611
  %v1614 = vsel %vm29, %v1608, %v1612
  %v1615 = vpack.c.bf16 %v1614, %v1614
  %v1617 = vsel %vm243, %v1615, 0
  %1619 = vmatprep.subr.bf16.mxu0 0
  %1620 = vmatpush1.bf16.msra.mxu0 %v79
  %1621 = vmatprep.subr.bf16.mxu0 0
  %1622 = vmatpush1.bf16.msra.mxu0 0
  %1623 = vmatprep.subr.bf16.mxu0 0
  %1624 = vmatpush1.bf16.msra.mxu0 0
  %1625 = vmatprep.subr.bf16.mxu0 0
  %1626 = vmatpush1.bf16.msra.mxu0 0
  %1627 = vmatprep.subr.bf16.mxu0 0
  %1628 = vmatpush1.bf16.msra.mxu0 0
  %1629 = vmatprep.subr.bf16.mxu0 0
  %1630 = vmatpush1.bf16.msra.mxu0 0
  %1631 = vmatprep.subr.bf16.mxu0 0
  %1632 = vmatpush1.bf16.msra.mxu0 0
  %1633 = vmatprep.subr.bf16.mxu0 0
  %1634 = vmatpush1.bf16.msra.mxu0 0
  %1635 = vmatprep.subr.bf16.mxu0 0
  %1636 = vmatpush1.bf16.msra.mxu0 0
  %1637 = vmatprep.subr.bf16.mxu0 0
  %1638 = vmatpush1.bf16.msra.mxu0 0
  %1639 = vmatprep.subr.bf16.mxu0 0
  %1640 = vmatpush1.bf16.msra.mxu0 0
  %1641 = vmatprep.subr.bf16.mxu0 0
  %1642 = vmatpush1.bf16.msra.mxu0 0
  %1643 = vmatprep.subr.bf16.mxu0 0
  %1644 = vmatpush1.bf16.msra.mxu0 0
  %1645 = vmatprep.subr.bf16.mxu0 0
  %1646 = vmatpush1.bf16.msra.mxu0 0
  %1647 = vmatprep.subr.bf16.mxu0 0
  %1648 = vmatpush1.bf16.msra.mxu0 0
  %1649 = vmatprep.subr.bf16.mxu0 0
  %1650 = vmatpush1.bf16.msra.mxu0 0
  %1651 = vmatprep.mubr.bf16.mxu0 0
  %1652 = vmatmul.mubr.bf16.gmra.mrb[0].mxu0 %v1617
  %v1653 = vpop.f32.mrb[0].mxu0
  %v1654 = vadd.f32 %v242, %v1653
  %v1655 = vpop.f32.mrb[0].mxu0
  %v1656 = vpop.f32.mrb[0].mxu0
  %v1657 = vpop.f32.mrb[0].mxu0
  %1658 = vdwg.mxu0
  %v1659 = vtanh.pop %v1654
  %v1660 = vadd.f32 %v1659, 1.0
  %v1661 = vmul.f32 %v1660, 0.5
  %v1662 = vmul.f32 %v1661, %v1334
  %1664 = vrot.lane.b32.xlu0 %v1659, 112
  %v1665 = vpop.permute.xlu0 %1664
  %v1667 = vmul.f32 %v1661, %v1665
  %1669 = vrot.lane.b32.xlu0 %v1667, 8
  %v1670 = vpop.permute.xlu0 %1669
  %v1672 = vadd.f32 %v1662, %v1670
  %v1673 = vtanh.pop %v1672
  %1675 = vrot.lane.b32.xlu0 %v1673, 16
  %v1676 = vpop.permute.xlu0 %1675
  %v1678 = vmul.f32 %v1661, %v1676
  %1679 = vrot.lane.b32.xlu0 %v1340, 104
  %v1680 = vpop.permute.xlu0 %1679
  %1683 = vrot.lane.b32.xlu0 %v1412, 88
  %v1684 = vpop.permute.xlu0 %1683
  %v1686 = vsel %vm29, %v1680, %v1684
  %v1687 = vpack.c.bf16 %v1686, %v1686
  %v1689 = vsel %vm457, %v1687, 0
  %1691 = vmatprep.subr.bf16.mxu0 0
  %1692 = vmatpush1.bf16.msra.mxu0 %v84
  %1693 = vmatprep.subr.bf16.mxu0 0
  %1694 = vmatpush1.bf16.msra.mxu0 %v462
  %1695 = vmatprep.subr.bf16.mxu0 0
  %1696 = vmatpush1.bf16.msra.mxu0 0
  %1697 = vmatprep.subr.bf16.mxu0 0
  %1698 = vmatpush1.bf16.msra.mxu0 0
  %1699 = vmatprep.subr.bf16.mxu0 0
  %1700 = vmatpush1.bf16.msra.mxu0 0
  %1701 = vmatprep.subr.bf16.mxu0 0
  %1702 = vmatpush1.bf16.msra.mxu0 0
  %1703 = vmatprep.subr.bf16.mxu0 0
  %1704 = vmatpush1.bf16.msra.mxu0 0
  %1705 = vmatprep.subr.bf16.mxu0 0
  %1706 = vmatpush1.bf16.msra.mxu0 0
  %1707 = vmatprep.subr.bf16.mxu0 0
  %1708 = vmatpush1.bf16.msra.mxu0 0
  %1709 = vmatprep.subr.bf16.mxu0 0
  %1710 = vmatpush1.bf16.msra.mxu0 0
  %1711 = vmatprep.subr.bf16.mxu0 0
  %1712 = vmatpush1.bf16.msra.mxu0 0
  %1713 = vmatprep.subr.bf16.mxu0 0
  %1714 = vmatpush1.bf16.msra.mxu0 0
  %1715 = vmatprep.subr.bf16.mxu0 0
  %1716 = vmatpush1.bf16.msra.mxu0 0
  %1717 = vmatprep.subr.bf16.mxu0 0
  %1718 = vmatpush1.bf16.msra.mxu0 0
  %1719 = vmatprep.subr.bf16.mxu0 0
  %1720 = vmatpush1.bf16.msra.mxu0 0
  %1721 = vmatprep.subr.bf16.mxu0 0
  %1722 = vmatpush1.bf16.msra.mxu0 0
  %1723 = vmatprep.mubr.bf16.mxu0 0
  %1724 = vmatmul.mubr.bf16.gmra.mrb[0].mxu0 %v1689
  %v1725 = vpop.f32.mrb[0].mxu0
  %v1726 = vadd.f32 %v456, %v1725
  %v1727 = vpop.f32.mrb[0].mxu0
  %v1728 = vpop.f32.mrb[0].mxu0
  %v1729 = vpop.f32.mrb[0].mxu0
  %1730 = vdwg.mxu0
  %v1731 = vtanh.pop %v1726
  %v1732 = vadd.f32 %v1731, 1.0
  %v1733 = vmul.f32 %v1732, 0.5
  %v1734 = vmul.f32 %v1733, %v1406
  %1736 = vrot.lane.b32.xlu0 %v1731, 96
  %v1737 = vpop.permute.xlu0 %1736
  %v1739 = vmul.f32 %v1733, %v1737
  %1741 = vrot.lane.b32.xlu0 %v1739, 16
  %v1742 = vpop.permute.xlu0 %1741
  %v1744 = vadd.f32 %v1734, %v1742
  %v1745 = vtanh.pop %v1744
  %1747 = vrot.lane.b32.xlu0 %v1745, 32
  %v1748 = vpop.permute.xlu0 %1747
  %v1750 = vmul.f32 %v1733, %v1748
  %1751 = vrot.lane.b32.xlu0 %v1412, 80
  %v1752 = vpop.permute.xlu0 %1751
  %1755 = vrot.lane.b32.xlu0 %v1484, 96
  %v1756 = vpop.permute.xlu0 %1755
  %v1758 = vsel %vm243, %v1752, %v1756
  %v1759 = vpack.c.bf16 %v1758, %v1758
  %v1761 = vsel %vm746, %v1759, 0
  %1763 = vmatprep.subr.bf16.mxu0 0
  %1764 = vmatpush1.bf16.msra.mxu0 %v91
  %1765 = vmatprep.subr.bf16.mxu0 0
  %1766 = vmatpush1.bf16.msra.mxu0 %v92
  %1767 = vmatprep.subr.bf16.mxu0 0
  %1768 = vmatpush1.bf16.msra.mxu0 0
  %1769 = vmatprep.subr.bf16.mxu0 0
  %1770 = vmatpush1.bf16.msra.mxu0 0
  %1771 = vmatprep.subr.bf16.mxu0 0
  %1772 = vmatpush1.bf16.msra.mxu0 0
  %1773 = vmatprep.subr.bf16.mxu0 0
  %1774 = vmatpush1.bf16.msra.mxu0 0
  %1775 = vmatprep.subr.bf16.mxu0 0
  %1776 = vmatpush1.bf16.msra.mxu0 0
  %1777 = vmatprep.subr.bf16.mxu0 0
  %1778 = vmatpush1.bf16.msra.mxu0 0
  %1779 = vmatprep.subr.bf16.mxu0 0
  %1780 = vmatpush1.bf16.msra.mxu0 0
  %1781 = vmatprep.subr.bf16.mxu0 0
  %1782 = vmatpush1.bf16.msra.mxu0 0
  %1783 = vmatprep.subr.bf16.mxu0 0
  %1784 = vmatpush1.bf16.msra.mxu0 0
  %1785 = vmatprep.subr.bf16.mxu0 0
  %1786 = vmatpush1.bf16.msra.mxu0 0
  %1787 = vmatprep.subr.bf16.mxu0 0
  %1788 = vmatpush1.bf16.msra.mxu0 0
  %1789 = vmatprep.subr.bf16.mxu0 0
  %1790 = vmatpush1.bf16.msra.mxu0 0
  %1791 = vmatprep.subr.bf16.mxu0 0
  %1792 = vmatpush1.bf16.msra.mxu0 0
  %1793 = vmatprep.subr.bf16.mxu0 0
  %1794 = vmatpush1.bf16.msra.mxu0 0
  %1795 = vmatprep.mubr.bf16.mxu0 0
  %1796 = vmatmul.mubr.bf16.gmra.mrb[0].mxu0 %v1761
  %v1797 = vpop.f32.mrb[0].mxu0
  %v1798 = vadd.f32 %v745, %v1797
  %v1799 = vpop.f32.mrb[0].mxu0
  %v1800 = vpop.f32.mrb[0].mxu0
  %v1801 = vpop.f32.mrb[0].mxu0
  %1802 = vdwg.mxu0
  %v1803 = vtanh.pop %v1798
  %v1804 = vadd.f32 %v1803, 1.0
  %v1805 = vmul.f32 %v1804, 0.5
  %v1806 = vmul.f32 %v1805, %v1478
  %1808 = vrot.lane.b32.xlu0 %v1803, 96
  %v1809 = vpop.permute.xlu0 %1808
  %v1811 = vmul.f32 %v1805, %v1809
  %1813 = vrot.lane.b32.xlu0 %v1811, 16
  %v1814 = vpop.permute.xlu0 %1813
  %v1816 = vadd.f32 %v1806, %v1814
  %v1817 = vtanh.pop %v1816
  %1819 = vrot.lane.b32.xlu0 %v1817, 32
  %v1820 = vpop.permute.xlu0 %1819
  %v1822 = vmul.f32 %v1805, %v1820
  %v1823 = vpack.c.bf16 %v1822, %v1822
  %1825 = vrot.lane.b32.xlu0 %v1823, 80
  %v1826 = vpop.permute.xlu0 %1825
  %v1828 = vsel %vm243, %v1826, 0
  %1830 = vmatprep.subr.bf16.mxu0 0
  %1831 = vmatpush1.bf16.msra.mxu0 %v96
  %1832 = vmatprep.subr.bf16.mxu0 0
  %1833 = vmatpush1.bf16.msra.mxu0 0
  %1834 = vmatprep.subr.bf16.mxu0 0
  %1835 = vmatpush1.bf16.msra.mxu0 0
  %1836 = vmatprep.subr.bf16.mxu0 0
  %1837 = vmatpush1.bf16.msra.mxu0 0
  %1838 = vmatprep.subr.bf16.mxu0 0
  %1839 = vmatpush1.bf16.msra.mxu0 0
  %1840 = vmatprep.subr.bf16.mxu0 0
  %1841 = vmatpush1.bf16.msra.mxu0 0
  %1842 = vmatprep.subr.bf16.mxu0 0
  %1843 = vmatpush1.bf16.msra.mxu0 0
  %1844 = vmatprep.subr.bf16.mxu0 0
  %1845 = vmatpush1.bf16.msra.mxu0 0
  %1846 = vmatprep.subr.bf16.mxu0 0
  %1847 = vmatpush1.bf16.msra.mxu0 0
  %1848 = vmatprep.subr.bf16.mxu0 0
  %1849 = vmatpush1.bf16.msra.mxu0 0
  %1850 = vmatprep.subr.bf16.mxu0 0
  %1851 = vmatpush1.bf16.msra.mxu0 0
  %1852 = vmatprep.subr.bf16.mxu0 0
  %1853 = vmatpush1.bf16.msra.mxu0 0
  %1854 = vmatprep.subr.bf16.mxu0 0
  %1855 = vmatpush1.bf16.msra.mxu0 0
  %1856 = vmatprep.subr.bf16.mxu0 0
  %1857 = vmatpush1.bf16.msra.mxu0 0
  %1858 = vmatprep.subr.bf16.mxu0 0
  %1859 = vmatpush1.bf16.msra.mxu0 0
  %1860 = vmatprep.subr.bf16.mxu0 0
  %1861 = vmatpush1.bf16.msra.mxu0 0
  %1862 = vmatprep.mubr.bf16.mxu0 0
  %1863 = vmatmul.mubr.bf16.gmra.mrb[0].mxu0 %v1828
  %v1864 = vpop.f32.mrb[0].mxu0
  %v1865 = vadd.f32 %v814, %v1864
  %v1866 = vpop.f32.mrb[0].mxu0
  %v1867 = vpop.f32.mrb[0].mxu0
  %v1868 = vpop.f32.mrb[0].mxu0
  %1869 = vdwg.mxu0
  %1871 = vrot.lane.b32.xlu0 %v1865, 96
  %v1872 = vpop.permute.xlu0 %1871
  %vm1874 = vcmask 1048320
  %1875 = vst.msk [vmem:[%s4] sm:$0xff] %vm1874, %v1872
  %v1876 = vpack.c.bf16 %v1605, %v1605
  %1878 = vrot.lane.b32.xlu0 %v1876, 104
  %v1879 = vpop.permute.xlu0 %1878
  %v1881 = vsel %vm29, %v1879, 0
  %1883 = vmatprep.subr.bf16.mxu0 0
  %1884 = vmatpush1.bf16.msra.mxu0 %v102
  %1885 = vmatprep.subr.bf16.mxu0 0
  %1886 = vmatpush1.bf16.msra.mxu0 0
  %1887 = vmatprep.subr.bf16.mxu0 0
  %1888 = vmatpush1.bf16.msra.mxu0 0
  %1889 = vmatprep.subr.bf16.mxu0 0
  %1890 = vmatpush1.bf16.msra.mxu0 0
  %1891 = vmatprep.subr.bf16.mxu0 0
  %1892 = vmatpush1.bf16.msra.mxu0 0
  %1893 = vmatprep.subr.bf16.mxu0 0
  %1894 = vmatpush1.bf16.msra.mxu0 0
  %1895 = vmatprep.subr.bf16.mxu0 0
  %1896 = vmatpush1.bf16.msra.mxu0 0
  %1897 = vmatprep.subr.bf16.mxu0 0
  %1898 = vmatpush1.bf16.msra.mxu0 0
  %1899 = vmatprep.subr.bf16.mxu0 0
  %1900 = vmatpush1.bf16.msra.mxu0 0
  %1901 = vmatprep.subr.bf16.mxu0 0
  %1902 = vmatpush1.bf16.msra.mxu0 0
  %1903 = vmatprep.subr.bf16.mxu0 0
  %1904 = vmatpush1.bf16.msra.mxu0 0
  %1905 = vmatprep.subr.bf16.mxu0 0
  %1906 = vmatpush1.bf16.msra.mxu0 0
  %1907 = vmatprep.subr.bf16.mxu0 0
  %1908 = vmatpush1.bf16.msra.mxu0 0
  %1909 = vmatprep.subr.bf16.mxu0 0
  %1910 = vmatpush1.bf16.msra.mxu0 0
  %1911 = vmatprep.subr.bf16.mxu0 0
  %1912 = vmatpush1.bf16.msra.mxu0 0
  %1913 = vmatprep.subr.bf16.mxu0 0
  %1914 = vmatpush1.bf16.msra.mxu0 0
  %1915 = vmatprep.mubr.bf16.mxu0 0
  %1916 = vmatmul.mubr.bf16.gmra.mrb[0].mxu0 %v1881
  %v1917 = vpop.f32.mrb[0].mxu0
  %v1918 = vadd.f32 0.0, %v1917
  %v1919 = vpop.f32.mrb[0].mxu0
  %v1920 = vpop.f32.mrb[0].mxu0
  %v1921 = vpop.f32.mrb[0].mxu0
  %1922 = vdwg.mxu0
  %v1923 = vadd.f32 %v72, %v1918
  %v1924 = vtanh.pop %v1923
  %v1925 = vadd.f32 %v1924, 1.0
  %v1926 = vmul.f32 %v1925, 0.5
  %v1927 = vmul.f32 %v1926, %v1599
  %1929 = vrot.lane.b32.xlu0 %v1924, 112
  %v1930 = vpop.permute.xlu0 %1929
  %v1932 = vmul.f32 %v1926, %v1930
  %1934 = vrot.lane.b32.xlu0 %v1932, 8
  %v1935 = vpop.permute.xlu0 %1934
  %v1937 = vadd.f32 %v1927, %v1935
  %v1938 = vtanh.pop %v1937
  %1940 = vrot.lane.b32.xlu0 %v1938, 16
  %v1941 = vpop.permute.xlu0 %1940
  %v1943 = vmul.f32 %v1926, %v1941
  %1945 = vrot.lane.b32.xlu0 %v1605, 104
  %v1946 = vpop.permute.xlu0 %1945
  %1949 = vrot.lane.b32.xlu0 %v1678, 112
  %v1950 = vpop.permute.xlu0 %1949
  %v1952 = vsel %vm29, %v1946, %v1950
  %v1953 = vpack.c.bf16 %v1952, %v1952
  %v1955 = vsel %vm243, %v1953, 0
  %1957 = vmatprep.subr.bf16.mxu0 0
  %1958 = vmatpush1.bf16.msra.mxu0 %v79
  %1959 = vmatprep.subr.bf16.mxu0 0
  %1960 = vmatpush1.bf16.msra.mxu0 0
  %1961 = vmatprep.subr.bf16.mxu0 0
  %1962 = vmatpush1.bf16.msra.mxu0 0
  %1963 = vmatprep.subr.bf16.mxu0 0
  %1964 = vmatpush1.bf16.msra.mxu0 0
  %1965 = vmatprep.subr.bf16.mxu0 0
  %1966 = vmatpush1.bf16.msra.mxu0 0
  %1967 = vmatprep.subr.bf16.mxu0 0
  %1968 = vmatpush1.bf16.msra.mxu0 0
  %1969 = vmatprep.subr.bf16.mxu0 0
  %1970 = vmatpush1.bf16.msra.mxu0 0
  %1971 = vmatprep.subr.bf16.mxu0 0
  %1972 = vmatpush1.bf16.msra.mxu0 0
  %1973 = vmatprep.subr.bf16.mxu0 0
  %1974 = vmatpush1.bf16.msra.mxu0 0
  %1975 = vmatprep.subr.bf16.mxu0 0
  %1976 = vmatpush1.bf16.msra.mxu0 0
  %1977 = vmatprep.subr.bf16.mxu0 0
  %1978 = vmatpush1.bf16.msra.mxu0 0
  %1979 = vmatprep.subr.bf16.mxu0 0
  %1980 = vmatpush1.bf16.msra.mxu0 0
  %1981 = vmatprep.subr.bf16.mxu0 0
  %1982 = vmatpush1.bf16.msra.mxu0 0
  %1983 = vmatprep.subr.bf16.mxu0 0
  %1984 = vmatpush1.bf16.msra.mxu0 0
  %1985 = vmatprep.subr.bf16.mxu0 0
  %1986 = vmatpush1.bf16.msra.mxu0 0
  %1987 = vmatprep.subr.bf16.mxu0 0
  %1988 = vmatpush1.bf16.msra.mxu0 0
  %1989 = vmatprep.mubr.bf16.mxu0 0
  %1990 = vmatmul.mubr.bf16.gmra.mrb[0].mxu0 %v1955
  %v1991 = vpop.f32.mrb[0].mxu0
  %v1992 = vadd.f32 %v242, %v1991
  %v1993 = vpop.f32.mrb[0].mxu0
  %v1994 = vpop.f32.mrb[0].mxu0
  %v1995 = vpop.f32.mrb[0].mxu0
  %1996 = vdwg.mxu0
  %v1997 = vtanh.pop %v1992
  %v1998 = vadd.f32 %v1997, 1.0
  %v1999 = vmul.f32 %v1998, 0.5
  %v2000 = vmul.f32 %v1999, %v1672
  %2002 = vrot.lane.b32.xlu0 %v1997, 112
  %v2003 = vpop.permute.xlu0 %2002
  %v2005 = vmul.f32 %v1999, %v2003
  %2007 = vrot.lane.b32.xlu0 %v2005, 8
  %v2008 = vpop.permute.xlu0 %2007
  %v2010 = vadd.f32 %v2000, %v2008
  %v2011 = vtanh.pop %v2010
  %2013 = vrot.lane.b32.xlu0 %v2011, 16
  %v2014 = vpop.permute.xlu0 %2013
  %v2016 = vmul.f32 %v1999, %v2014
  %2017 = vrot.lane.b32.xlu0 %v1678, 104
  %v2018 = vpop.permute.xlu0 %2017
  %2021 = vrot.lane.b32.xlu0 %v1750, 88
  %v2022 = vpop.permute.xlu0 %2021
  %v2024 = vsel %vm29, %v2018, %v2022
  %v2025 = vpack.c.bf16 %v2024, %v2024
  %v2027 = vsel %vm457, %v2025, 0
  %2029 = vmatprep.subr.bf16.mxu0 0
  %2030 = vmatpush1.bf16.msra.mxu0 %v84
  %2031 = vmatprep.subr.bf16.mxu0 0
  %2032 = vmatpush1.bf16.msra.mxu0 %v462
  %2033 = vmatprep.subr.bf16.mxu0 0
  %2034 = vmatpush1.bf16.msra.mxu0 0
  %2035 = vmatprep.subr.bf16.mxu0 0
  %2036 = vmatpush1.bf16.msra.mxu0 0
  %2037 = vmatprep.subr.bf16.mxu0 0
  %2038 = vmatpush1.bf16.msra.mxu0 0
  %2039 = vmatprep.subr.bf16.mxu0 0
  %2040 = vmatpush1.bf16.msra.mxu0 0
  %2041 = vmatprep.subr.bf16.mxu0 0
  %2042 = vmatpush1.bf16.msra.mxu0 0
  %2043 = vmatprep.subr.bf16.mxu0 0
  %2044 = vmatpush1.bf16.msra.mxu0 0
  %2045 = vmatprep.subr.bf16.mxu0 0
  %2046 = vmatpush1.bf16.msra.mxu0 0
  %2047 = vmatprep.subr.bf16.mxu0 0
  %2048 = vmatpush1.bf16.msra.mxu0 0
  %2049 = vmatprep.subr.bf16.mxu0 0
  %2050 = vmatpush1.bf16.msra.mxu0 0
  %2051 = vmatprep.subr.bf16.mxu0 0
  %2052 = vmatpush1.bf16.msra.mxu0 0
  %2053 = vmatprep.subr.bf16.mxu0 0
  %2054 = vmatpush1.bf16.msra.mxu0 0
  %2055 = vmatprep.subr.bf16.mxu0 0
  %2056 = vmatpush1.bf16.msra.mxu0 0
  %2057 = vmatprep.subr.bf16.mxu0 0
  %2058 = vmatpush1.bf16.msra.mxu0 0
  %2059 = vmatprep.subr.bf16.mxu0 0
  %2060 = vmatpush1.bf16.msra.mxu0 0
  %2061 = vmatprep.mubr.bf16.mxu0 0
  %2062 = vmatmul.mubr.bf16.gmra.mrb[0].mxu0 %v2027
  %v2063 = vpop.f32.mrb[0].mxu0
  %v2064 = vadd.f32 %v456, %v2063
  %v2065 = vpop.f32.mrb[0].mxu0
  %v2066 = vpop.f32.mrb[0].mxu0
  %v2067 = vpop.f32.mrb[0].mxu0
  %2068 = vdwg.mxu0
  %v2069 = vtanh.pop %v2064
  %v2070 = vadd.f32 %v2069, 1.0
  %v2071 = vmul.f32 %v2070, 0.5
  %v2072 = vmul.f32 %v2071, %v1744
  %2074 = vrot.lane.b32.xlu0 %v2069, 96
  %v2075 = vpop.permute.xlu0 %2074
  %v2077 = vmul.f32 %v2071, %v2075
  %2079 = vrot.lane.b32.xlu0 %v2077, 16
  %v2080 = vpop.permute.xlu0 %2079
  %v2082 = vadd.f32 %v2072, %v2080
  %v2083 = vtanh.pop %v2082
  %2085 = vrot.lane.b32.xlu0 %v2083, 32
  %v2086 = vpop.permute.xlu0 %2085
  %v2088 = vmul.f32 %v2071, %v2086
  %2089 = vrot.lane.b32.xlu0 %v1750, 80
  %v2090 = vpop.permute.xlu0 %2089
  %2093 = vrot.lane.b32.xlu0 %v1822, 96
  %v2094 = vpop.permute.xlu0 %2093
  %v2096 = vsel %vm243, %v2090, %v2094
  %v2097 = vpack.c.bf16 %v2096, %v2096
  %v2099 = vsel %vm746, %v2097, 0
  %2101 = vmatprep.subr.bf16.mxu0 0
  %2102 = vmatpush1.bf16.msra.mxu0 %v91
  %2103 = vmatprep.subr.bf16.mxu0 0
  %2104 = vmatpush1.bf16.msra.mxu0 %v92
  %2105 = vmatprep.subr.bf16.mxu0 0
  %2106 = vmatpush1.bf16.msra.mxu0 0
  %2107 = vmatprep.subr.bf16.mxu0 0
  %2108 = vmatpush1.bf16.msra.mxu0 0
  %2109 = vmatprep.subr.bf16.mxu0 0
  %2110 = vmatpush1.bf16.msra.mxu0 0
  %2111 = vmatprep.subr.bf16.mxu0 0
  %2112 = vmatpush1.bf16.msra.mxu0 0
  %2113 = vmatprep.subr.bf16.mxu0 0
  %2114 = vmatpush1.bf16.msra.mxu0 0
  %2115 = vmatprep.subr.bf16.mxu0 0
  %2116 = vmatpush1.bf16.msra.mxu0 0
  %2117 = vmatprep.subr.bf16.mxu0 0
  %2118 = vmatpush1.bf16.msra.mxu0 0
  %2119 = vmatprep.subr.bf16.mxu0 0
  %2120 = vmatpush1.bf16.msra.mxu0 0
  %2121 = vmatprep.subr.bf16.mxu0 0
  %2122 = vmatpush1.bf16.msra.mxu0 0
  %2123 = vmatprep.subr.bf16.mxu0 0
  %2124 = vmatpush1.bf16.msra.mxu0 0
  %2125 = vmatprep.subr.bf16.mxu0 0
  %2126 = vmatpush1.bf16.msra.mxu0 0
  %2127 = vmatprep.subr.bf16.mxu0 0
  %2128 = vmatpush1.bf16.msra.mxu0 0
  %2129 = vmatprep.subr.bf16.mxu0 0
  %2130 = vmatpush1.bf16.msra.mxu0 0
  %2131 = vmatprep.subr.bf16.mxu0 0
  %2132 = vmatpush1.bf16.msra.mxu0 0
  %2133 = vmatprep.mubr.bf16.mxu0 0
  %2134 = vmatmul.mubr.bf16.gmra.mrb[0].mxu0 %v2099
  %v2135 = vpop.f32.mrb[0].mxu0
  %v2136 = vadd.f32 %v745, %v2135
  %v2137 = vpop.f32.mrb[0].mxu0
  %v2138 = vpop.f32.mrb[0].mxu0
  %v2139 = vpop.f32.mrb[0].mxu0
  %2140 = vdwg.mxu0
  %v2141 = vtanh.pop %v2136
  %v2142 = vadd.f32 %v2141, 1.0
  %v2143 = vmul.f32 %v2142, 0.5
  %v2144 = vmul.f32 %v2143, %v1816
  %2146 = vrot.lane.b32.xlu0 %v2141, 96
  %v2147 = vpop.permute.xlu0 %2146
  %v2149 = vmul.f32 %v2143, %v2147
  %2151 = vrot.lane.b32.xlu0 %v2149, 16
  %v2152 = vpop.permute.xlu0 %2151
  %v2154 = vadd.f32 %v2144, %v2152
  %v2155 = vtanh.pop %v2154
  %2157 = vrot.lane.b32.xlu0 %v2155, 32
  %v2158 = vpop.permute.xlu0 %2157
  %v2160 = vmul.f32 %v2143, %v2158
  %v2161 = vpack.c.bf16 %v2160, %v2160
  %2163 = vrot.lane.b32.xlu0 %v2161, 80
  %v2164 = vpop.permute.xlu0 %2163
  %v2166 = vsel %vm243, %v2164, 0
  %2168 = vmatprep.subr.bf16.mxu0 0
  %2169 = vmatpush1.bf16.msra.mxu0 %v96
  %2170 = vmatprep.subr.bf16.mxu0 0
  %2171 = vmatpush1.bf16.msra.mxu0 0
  %2172 = vmatprep.subr.bf16.mxu0 0
  %2173 = vmatpush1.bf16.msra.mxu0 0
  %2174 = vmatprep.subr.bf16.mxu0 0
  %2175 = vmatpush1.bf16.msra.mxu0 0
  %2176 = vmatprep.subr.bf16.mxu0 0
  %2177 = vmatpush1.bf16.msra.mxu0 0
  %2178 = vmatprep.subr.bf16.mxu0 0
  %2179 = vmatpush1.bf16.msra.mxu0 0
  %2180 = vmatprep.subr.bf16.mxu0 0
  %2181 = vmatpush1.bf16.msra.mxu0 0
  %2182 = vmatprep.subr.bf16.mxu0 0
  %2183 = vmatpush1.bf16.msra.mxu0 0
  %2184 = vmatprep.subr.bf16.mxu0 0
  %2185 = vmatpush1.bf16.msra.mxu0 0
  %2186 = vmatprep.subr.bf16.mxu0 0
  %2187 = vmatpush1.bf16.msra.mxu0 0
  %2188 = vmatprep.subr.bf16.mxu0 0
  %2189 = vmatpush1.bf16.msra.mxu0 0
  %2190 = vmatprep.subr.bf16.mxu0 0
  %2191 = vmatpush1.bf16.msra.mxu0 0
  %2192 = vmatprep.subr.bf16.mxu0 0
  %2193 = vmatpush1.bf16.msra.mxu0 0
  %2194 = vmatprep.subr.bf16.mxu0 0
  %2195 = vmatpush1.bf16.msra.mxu0 0
  %2196 = vmatprep.subr.bf16.mxu0 0
  %2197 = vmatpush1.bf16.msra.mxu0 0
  %2198 = vmatprep.subr.bf16.mxu0 0
  %2199 = vmatpush1.bf16.msra.mxu0 0
  %2200 = vmatprep.mubr.bf16.mxu0 0
  %2201 = vmatmul.mubr.bf16.gmra.mrb[0].mxu0 %v2166
  %v2202 = vpop.f32.mrb[0].mxu0
  %v2203 = vadd.f32 %v814, %v2202
  %v2204 = vpop.f32.mrb[0].mxu0
  %v2205 = vpop.f32.mrb[0].mxu0
  %v2206 = vpop.f32.mrb[0].mxu0
  %2207 = vdwg.mxu0
  %2208 = vst.msk [vmem:[%s4 + $0x8] sm:$0xff] %vm746, %v2203
  %2210 = vrot.lane.b32.xlu0 %v1943, 104
  %v2211 = vpop.permute.xlu0 %2210
  %2214 = vrot.lane.b32.xlu0 %v2016, 112
  %v2215 = vpop.permute.xlu0 %2214
  %v2217 = vsel %vm29, %v2211, %v2215
  %v2218 = vpack.c.bf16 %v2217, %v2217
  %v2220 = vsel %vm243, %v2218, 0
  %2222 = vmatprep.subr.bf16.mxu0 0
  %2223 = vmatpush1.bf16.msra.mxu0 %v79
  %2224 = vmatprep.subr.bf16.mxu0 0
  %2225 = vmatpush1.bf16.msra.mxu0 0
  %2226 = vmatprep.subr.bf16.mxu0 0
  %2227 = vmatpush1.bf16.msra.mxu0 0
  %2228 = vmatprep.subr.bf16.mxu0 0
  %2229 = vmatpush1.bf16.msra.mxu0 0
  %2230 = vmatprep.subr.bf16.mxu0 0
  %2231 = vmatpush1.bf16.msra.mxu0 0
  %2232 = vmatprep.subr.bf16.mxu0 0
  %2233 = vmatpush1.bf16.msra.mxu0 0
  %2234 = vmatprep.subr.bf16.mxu0 0
  %2235 = vmatpush1.bf16.msra.mxu0 0
  %2236 = vmatprep.subr.bf16.mxu0 0
  %2237 = vmatpush1.bf16.msra.mxu0 0
  %2238 = vmatprep.subr.bf16.mxu0 0
  %2239 = vmatpush1.bf16.msra.mxu0 0
  %2240 = vmatprep.subr.bf16.mxu0 0
  %2241 = vmatpush1.bf16.msra.mxu0 0
  %2242 = vmatprep.subr.bf16.mxu0 0
  %2243 = vmatpush1.bf16.msra.mxu0 0
  %2244 = vmatprep.subr.bf16.mxu0 0
  %2245 = vmatpush1.bf16.msra.mxu0 0
  %2246 = vmatprep.subr.bf16.mxu0 0
  %2247 = vmatpush1.bf16.msra.mxu0 0
  %2248 = vmatprep.subr.bf16.mxu0 0
  %2249 = vmatpush1.bf16.msra.mxu0 0
  %2250 = vmatprep.subr.bf16.mxu0 0
  %2251 = vmatpush1.bf16.msra.mxu0 0
  %2252 = vmatprep.subr.bf16.mxu0 0
  %2253 = vmatpush1.bf16.msra.mxu0 0
  %2254 = vmatprep.mubr.bf16.mxu0 0
  %2255 = vmatmul.mubr.bf16.gmra.mrb[0].mxu0 %v2220
  %v2256 = vpop.f32.mrb[0].mxu0
  %v2257 = vadd.f32 %v242, %v2256
  %v2258 = vpop.f32.mrb[0].mxu0
  %v2259 = vpop.f32.mrb[0].mxu0
  %v2260 = vpop.f32.mrb[0].mxu0
  %2261 = vdwg.mxu0
  %v2262 = vtanh.pop %v2257
  %v2263 = vadd.f32 %v2262, 1.0
  %v2264 = vmul.f32 %v2263, 0.5
  %v2265 = vmul.f32 %v2264, %v2010
  %2267 = vrot.lane.b32.xlu0 %v2262, 112
  %v2268 = vpop.permute.xlu0 %2267
  %v2270 = vmul.f32 %v2264, %v2268
  %2272 = vrot.lane.b32.xlu0 %v2270, 8
  %v2273 = vpop.permute.xlu0 %2272
  %v2275 = vadd.f32 %v2265, %v2273
  %v2276 = vtanh.pop %v2275
  %2278 = vrot.lane.b32.xlu0 %v2276, 16
  %v2279 = vpop.permute.xlu0 %2278
  %v2281 = vmul.f32 %v2264, %v2279
  %2282 = vrot.lane.b32.xlu0 %v2016, 104
  %v2283 = vpop.permute.xlu0 %2282
  %2286 = vrot.lane.b32.xlu0 %v2088, 88
  %v2287 = vpop.permute.xlu0 %2286
  %v2289 = vsel %vm29, %v2283, %v2287
  %v2290 = vpack.c.bf16 %v2289, %v2289
  %v2292 = vsel %vm457, %v2290, 0
  %2294 = vmatprep.subr.bf16.mxu0 0
  %2295 = vmatpush1.bf16.msra.mxu0 %v84
  %2296 = vmatprep.subr.bf16.mxu0 0
  %2297 = vmatpush1.bf16.msra.mxu0 %v462
  %2298 = vmatprep.subr.bf16.mxu0 0
  %2299 = vmatpush1.bf16.msra.mxu0 0
  %2300 = vmatprep.subr.bf16.mxu0 0
  %2301 = vmatpush1.bf16.msra.mxu0 0
  %2302 = vmatprep.subr.bf16.mxu0 0
  %2303 = vmatpush1.bf16.msra.mxu0 0
  %2304 = vmatprep.subr.bf16.mxu0 0
  %2305 = vmatpush1.bf16.msra.mxu0 0
  %2306 = vmatprep.subr.bf16.mxu0 0
  %2307 = vmatpush1.bf16.msra.mxu0 0
  %2308 = vmatprep.subr.bf16.mxu0 0
  %2309 = vmatpush1.bf16.msra.mxu0 0
  %2310 = vmatprep.subr.bf16.mxu0 0
  %2311 = vmatpush1.bf16.msra.mxu0 0
  %2312 = vmatprep.subr.bf16.mxu0 0
  %2313 = vmatpush1.bf16.msra.mxu0 0
  %2314 = vmatprep.subr.bf16.mxu0 0
  %2315 = vmatpush1.bf16.msra.mxu0 0
  %2316 = vmatprep.subr.bf16.mxu0 0
  %2317 = vmatpush1.bf16.msra.mxu0 0
  %2318 = vmatprep.subr.bf16.mxu0 0
  %2319 = vmatpush1.bf16.msra.mxu0 0
  %2320 = vmatprep.subr.bf16.mxu0 0
  %2321 = vmatpush1.bf16.msra.mxu0 0
  %2322 = vmatprep.subr.bf16.mxu0 0
  %2323 = vmatpush1.bf16.msra.mxu0 0
  %2324 = vmatprep.subr.bf16.mxu0 0
  %2325 = vmatpush1.bf16.msra.mxu0 0
  %2326 = vmatprep.mubr.bf16.mxu0 0
  %2327 = vmatmul.mubr.bf16.gmra.mrb[0].mxu0 %v2292
  %v2328 = vpop.f32.mrb[0].mxu0
  %v2329 = vadd.f32 %v456, %v2328
  %v2330 = vpop.f32.mrb[0].mxu0
  %v2331 = vpop.f32.mrb[0].mxu0
  %v2332 = vpop.f32.mrb[0].mxu0
  %2333 = vdwg.mxu0
  %v2334 = vtanh.pop %v2329
  %v2335 = vadd.f32 %v2334, 1.0
  %v2336 = vmul.f32 %v2335, 0.5
  %v2337 = vmul.f32 %v2336, %v2082
  %2339 = vrot.lane.b32.xlu0 %v2334, 96
  %v2340 = vpop.permute.xlu0 %2339
  %v2342 = vmul.f32 %v2336, %v2340
  %2344 = vrot.lane.b32.xlu0 %v2342, 16
  %v2345 = vpop.permute.xlu0 %2344
  %v2347 = vadd.f32 %v2337, %v2345
  %v2348 = vtanh.pop %v2347
  %2350 = vrot.lane.b32.xlu0 %v2348, 32
  %v2351 = vpop.permute.xlu0 %2350
  %v2353 = vmul.f32 %v2336, %v2351
  %2354 = vrot.lane.b32.xlu0 %v2088, 80
  %v2355 = vpop.permute.xlu0 %2354
  %2358 = vrot.lane.b32.xlu0 %v2160, 96
  %v2359 = vpop.permute.xlu0 %2358
  %v2361 = vsel %vm243, %v2355, %v2359
  %v2362 = vpack.c.bf16 %v2361, %v2361
  %v2364 = vsel %vm746, %v2362, 0
  %2366 = vmatprep.subr.bf16.mxu0 0
  %2367 = vmatpush1.bf16.msra.mxu0 %v91
  %2368 = vmatprep.subr.bf16.mxu0 0
  %2369 = vmatpush1.bf16.msra.mxu0 %v92
  %2370 = vmatprep.subr.bf16.mxu0 0
  %2371 = vmatpush1.bf16.msra.mxu0 0
  %2372 = vmatprep.subr.bf16.mxu0 0
  %2373 = vmatpush1.bf16.msra.mxu0 0
  %2374 = vmatprep.subr.bf16.mxu0 0
  %2375 = vmatpush1.bf16.msra.mxu0 0
  %2376 = vmatprep.subr.bf16.mxu0 0
  %2377 = vmatpush1.bf16.msra.mxu0 0
  %2378 = vmatprep.subr.bf16.mxu0 0
  %2379 = vmatpush1.bf16.msra.mxu0 0
  %2380 = vmatprep.subr.bf16.mxu0 0
  %2381 = vmatpush1.bf16.msra.mxu0 0
  %2382 = vmatprep.subr.bf16.mxu0 0
  %2383 = vmatpush1.bf16.msra.mxu0 0
  %2384 = vmatprep.subr.bf16.mxu0 0
  %2385 = vmatpush1.bf16.msra.mxu0 0
  %2386 = vmatprep.subr.bf16.mxu0 0
  %2387 = vmatpush1.bf16.msra.mxu0 0
  %2388 = vmatprep.subr.bf16.mxu0 0
  %2389 = vmatpush1.bf16.msra.mxu0 0
  %2390 = vmatprep.subr.bf16.mxu0 0
  %2391 = vmatpush1.bf16.msra.mxu0 0
  %2392 = vmatprep.subr.bf16.mxu0 0
  %2393 = vmatpush1.bf16.msra.mxu0 0
  %2394 = vmatprep.subr.bf16.mxu0 0
  %2395 = vmatpush1.bf16.msra.mxu0 0
  %2396 = vmatprep.subr.bf16.mxu0 0
  %2397 = vmatpush1.bf16.msra.mxu0 0
  %2398 = vmatprep.mubr.bf16.mxu0 0
  %2399 = vmatmul.mubr.bf16.gmra.mrb[0].mxu0 %v2364
  %v2400 = vpop.f32.mrb[0].mxu0
  %v2401 = vadd.f32 %v745, %v2400
  %v2402 = vpop.f32.mrb[0].mxu0
  %v2403 = vpop.f32.mrb[0].mxu0
  %v2404 = vpop.f32.mrb[0].mxu0
  %2405 = vdwg.mxu0
  %v2406 = vtanh.pop %v2401
  %v2407 = vadd.f32 %v2406, 1.0
  %v2408 = vmul.f32 %v2407, 0.5
  %v2409 = vmul.f32 %v2408, %v2154
  %2411 = vrot.lane.b32.xlu0 %v2406, 96
  %v2412 = vpop.permute.xlu0 %2411
  %v2414 = vmul.f32 %v2408, %v2412
  %2416 = vrot.lane.b32.xlu0 %v2414, 16
  %v2417 = vpop.permute.xlu0 %2416
  %v2419 = vadd.f32 %v2409, %v2417
  %v2420 = vtanh.pop %v2419
  %2422 = vrot.lane.b32.xlu0 %v2420, 32
  %v2423 = vpop.permute.xlu0 %2422
  %v2425 = vmul.f32 %v2408, %v2423
  %v2426 = vpack.c.bf16 %v2425, %v2425
  %2428 = vrot.lane.b32.xlu0 %v2426, 80
  %v2429 = vpop.permute.xlu0 %2428
  %v2431 = vsel %vm243, %v2429, 0
  %2433 = vmatprep.subr.bf16.mxu0 0
  %2434 = vmatpush1.bf16.msra.mxu0 %v96
  %2435 = vmatprep.subr.bf16.mxu0 0
  %2436 = vmatpush1.bf16.msra.mxu0 0
  %2437 = vmatprep.subr.bf16.mxu0 0
  %2438 = vmatpush1.bf16.msra.mxu0 0
  %2439 = vmatprep.subr.bf16.mxu0 0
  %2440 = vmatpush1.bf16.msra.mxu0 0
  %2441 = vmatprep.subr.bf16.mxu0 0
  %2442 = vmatpush1.bf16.msra.mxu0 0
  %2443 = vmatprep.subr.bf16.mxu0 0
  %2444 = vmatpush1.bf16.msra.mxu0 0
  %2445 = vmatprep.subr.bf16.mxu0 0
  %2446 = vmatpush1.bf16.msra.mxu0 0
  %2447 = vmatprep.subr.bf16.mxu0 0
  %2448 = vmatpush1.bf16.msra.mxu0 0
  %2449 = vmatprep.subr.bf16.mxu0 0
  %2450 = vmatpush1.bf16.msra.mxu0 0
  %2451 = vmatprep.subr.bf16.mxu0 0
  %2452 = vmatpush1.bf16.msra.mxu0 0
  %2453 = vmatprep.subr.bf16.mxu0 0
  %2454 = vmatpush1.bf16.msra.mxu0 0
  %2455 = vmatprep.subr.bf16.mxu0 0
  %2456 = vmatpush1.bf16.msra.mxu0 0
  %2457 = vmatprep.subr.bf16.mxu0 0
  %2458 = vmatpush1.bf16.msra.mxu0 0
  %2459 = vmatprep.subr.bf16.mxu0 0
  %2460 = vmatpush1.bf16.msra.mxu0 0
  %2461 = vmatprep.subr.bf16.mxu0 0
  %2462 = vmatpush1.bf16.msra.mxu0 0
  %2463 = vmatprep.subr.bf16.mxu0 0
  %2464 = vmatpush1.bf16.msra.mxu0 0
  %2465 = vmatprep.mubr.bf16.mxu0 0
  %2466 = vmatmul.mubr.bf16.gmra.mrb[0].mxu0 %v2431
  %v2467 = vpop.f32.mrb[0].mxu0
  %v2468 = vadd.f32 %v814, %v2467
  %v2469 = vpop.f32.mrb[0].mxu0
  %v2470 = vpop.f32.mrb[0].mxu0
  %v2471 = vpop.f32.mrb[0].mxu0
  %2472 = vdwg.mxu0
  %2474 = vrot.lane.b32.xlu0 %v2468, 32
  %v2475 = vpop.permute.xlu0 %2474
  %2477 = vst.msk [vmem:[%s4 + $0x8] sm:$0xff] %vm1198, %v2475
  %2479 = vrot.lane.b32.xlu0 %v2281, 104
  %v2480 = vpop.permute.xlu0 %2479
  %2483 = vrot.lane.b32.xlu0 %v2353, 88
  %v2484 = vpop.permute.xlu0 %2483
  %v2486 = vsel %vm29, %v2480, %v2484
  %v2487 = vpack.c.bf16 %v2486, %v2486
  %v2489 = vsel %vm457, %v2487, 0
  %2491 = vmatprep.subr.bf16.mxu0 0
  %2492 = vmatpush1.bf16.msra.mxu0 %v84
  %2493 = vmatprep.subr.bf16.mxu0 0
  %2494 = vmatpush1.bf16.msra.mxu0 %v462
  %2495 = vmatprep.subr.bf16.mxu0 0
  %2496 = vmatpush1.bf16.msra.mxu0 0
  %2497 = vmatprep.subr.bf16.mxu0 0
  %2498 = vmatpush1.bf16.msra.mxu0 0
  %2499 = vmatprep.subr.bf16.mxu0 0
  %2500 = vmatpush1.bf16.msra.mxu0 0
  %2501 = vmatprep.subr.bf16.mxu0 0
  %2502 = vmatpush1.bf16.msra.mxu0 0
  %2503 = vmatprep.subr.bf16.mxu0 0
  %2504 = vmatpush1.bf16.msra.mxu0 0
  %2505 = vmatprep.subr.bf16.mxu0 0
  %2506 = vmatpush1.bf16.msra.mxu0 0
  %2507 = vmatprep.subr.bf16.mxu0 0
  %2508 = vmatpush1.bf16.msra.mxu0 0
  %2509 = vmatprep.subr.bf16.mxu0 0
  %2510 = vmatpush1.bf16.msra.mxu0 0
  %2511 = vmatprep.subr.bf16.mxu0 0
  %2512 = vmatpush1.bf16.msra.mxu0 0
  %2513 = vmatprep.subr.bf16.mxu0 0
  %2514 = vmatpush1.bf16.msra.mxu0 0
  %2515 = vmatprep.subr.bf16.mxu0 0
  %2516 = vmatpush1.bf16.msra.mxu0 0
  %2517 = vmatprep.subr.bf16.mxu0 0
  %2518 = vmatpush1.bf16.msra.mxu0 0
  %2519 = vmatprep.subr.bf16.mxu0 0
  %2520 = vmatpush1.bf16.msra.mxu0 0
  %2521 = vmatprep.subr.bf16.mxu0 0
  %2522 = vmatpush1.bf16.msra.mxu0 0
  %2523 = vmatprep.mubr.bf16.mxu0 0
  %2524 = vmatmul.mubr.bf16.gmra.mrb[0].mxu0 %v2489
  %v2525 = vpop.f32.mrb[0].mxu0
  %v2526 = vadd.f32 %v456, %v2525
  %v2527 = vpop.f32.mrb[0].mxu0
  %v2528 = vpop.f32.mrb[0].mxu0
  %v2529 = vpop.f32.mrb[0].mxu0
  %2530 = vdwg.mxu0
  %v2531 = vtanh.pop %v2526
  %v2532 = vadd.f32 %v2531, 1.0
  %v2533 = vmul.f32 %v2532, 0.5
  %v2534 = vmul.f32 %v2533, %v2347
  %2536 = vrot.lane.b32.xlu0 %v2531, 96
  %v2537 = vpop.permute.xlu0 %2536
  %v2539 = vmul.f32 %v2533, %v2537
  %2541 = vrot.lane.b32.xlu0 %v2539, 16
  %v2542 = vpop.permute.xlu0 %2541
  %v2544 = vadd.f32 %v2534, %v2542
  %v2545 = vtanh.pop %v2544
  %2547 = vrot.lane.b32.xlu0 %v2545, 32
  %v2548 = vpop.permute.xlu0 %2547
  %v2550 = vmul.f32 %v2533, %v2548
  %2551 = vrot.lane.b32.xlu0 %v2353, 80
  %v2552 = vpop.permute.xlu0 %2551
  %2555 = vrot.lane.b32.xlu0 %v2425, 96
  %v2556 = vpop.permute.xlu0 %2555
  %v2558 = vsel %vm243, %v2552, %v2556
  %v2559 = vpack.c.bf16 %v2558, %v2558
  %v2561 = vsel %vm746, %v2559, 0
  %2563 = vmatprep.subr.bf16.mxu0 0
  %2564 = vmatpush1.bf16.msra.mxu0 %v91
  %2565 = vmatprep.subr.bf16.mxu0 0
  %2566 = vmatpush1.bf16.msra.mxu0 %v92
  %2567 = vmatprep.subr.bf16.mxu0 0
  %2568 = vmatpush1.bf16.msra.mxu0 0
  %2569 = vmatprep.subr.bf16.mxu0 0
  %2570 = vmatpush1.bf16.msra.mxu0 0
  %2571 = vmatprep.subr.bf16.mxu0 0
  %2572 = vmatpush1.bf16.msra.mxu0 0
  %2573 = vmatprep.subr.bf16.mxu0 0
  %2574 = vmatpush1.bf16.msra.mxu0 0
  %2575 = vmatprep.subr.bf16.mxu0 0
  %2576 = vmatpush1.bf16.msra.mxu0 0
  %2577 = vmatprep.subr.bf16.mxu0 0
  %2578 = vmatpush1.bf16.msra.mxu0 0
  %2579 = vmatprep.subr.bf16.mxu0 0
  %2580 = vmatpush1.bf16.msra.mxu0 0
  %2581 = vmatprep.subr.bf16.mxu0 0
  %2582 = vmatpush1.bf16.msra.mxu0 0
  %2583 = vmatprep.subr.bf16.mxu0 0
  %2584 = vmatpush1.bf16.msra.mxu0 0
  %2585 = vmatprep.subr.bf16.mxu0 0
  %2586 = vmatpush1.bf16.msra.mxu0 0
  %2587 = vmatprep.subr.bf16.mxu0 0
  %2588 = vmatpush1.bf16.msra.mxu0 0
  %2589 = vmatprep.subr.bf16.mxu0 0
  %2590 = vmatpush1.bf16.msra.mxu0 0
  %2591 = vmatprep.subr.bf16.mxu0 0
  %2592 = vmatpush1.bf16.msra.mxu0 0
  %2593 = vmatprep.subr.bf16.mxu0 0
  %2594 = vmatpush1.bf16.msra.mxu0 0
  %2595 = vmatprep.mubr.bf16.mxu0 0
  %2596 = vmatmul.mubr.bf16.gmra.mrb[0].mxu0 %v2561
  %v2597 = vpop.f32.mrb[0].mxu0
  %v2598 = vadd.f32 %v745, %v2597
  %v2599 = vpop.f32.mrb[0].mxu0
  %v2600 = vpop.f32.mrb[0].mxu0
  %v2601 = vpop.f32.mrb[0].mxu0
  %2602 = vdwg.mxu0
  %v2603 = vtanh.pop %v2598
  %v2604 = vadd.f32 %v2603, 1.0
  %v2605 = vmul.f32 %v2604, 0.5
  %v2606 = vmul.f32 %v2605, %v2419
  %2608 = vrot.lane.b32.xlu0 %v2603, 96
  %v2609 = vpop.permute.xlu0 %2608
  %v2611 = vmul.f32 %v2605, %v2609
  %2613 = vrot.lane.b32.xlu0 %v2611, 16
  %v2614 = vpop.permute.xlu0 %2613
  %v2616 = vadd.f32 %v2606, %v2614
  %v2617 = vtanh.pop %v2616
  %2619 = vrot.lane.b32.xlu0 %v2617, 32
  %v2620 = vpop.permute.xlu0 %2619
  %v2622 = vmul.f32 %v2605, %v2620
  %v2623 = vpack.c.bf16 %v2622, %v2622
  %2625 = vrot.lane.b32.xlu0 %v2623, 80
  %v2626 = vpop.permute.xlu0 %2625
  %v2628 = vsel %vm243, %v2626, 0
  %2630 = vmatprep.subr.bf16.mxu0 0
  %2631 = vmatpush1.bf16.msra.mxu0 %v96
  %2632 = vmatprep.subr.bf16.mxu0 0
  %2633 = vmatpush1.bf16.msra.mxu0 0
  %2634 = vmatprep.subr.bf16.mxu0 0
  %2635 = vmatpush1.bf16.msra.mxu0 0
  %2636 = vmatprep.subr.bf16.mxu0 0
  %2637 = vmatpush1.bf16.msra.mxu0 0
  %2638 = vmatprep.subr.bf16.mxu0 0
  %2639 = vmatpush1.bf16.msra.mxu0 0
  %2640 = vmatprep.subr.bf16.mxu0 0
  %2641 = vmatpush1.bf16.msra.mxu0 0
  %2642 = vmatprep.subr.bf16.mxu0 0
  %2643 = vmatpush1.bf16.msra.mxu0 0
  %2644 = vmatprep.subr.bf16.mxu0 0
  %2645 = vmatpush1.bf16.msra.mxu0 0
  %2646 = vmatprep.subr.bf16.mxu0 0
  %2647 = vmatpush1.bf16.msra.mxu0 0
  %2648 = vmatprep.subr.bf16.mxu0 0
  %2649 = vmatpush1.bf16.msra.mxu0 0
  %2650 = vmatprep.subr.bf16.mxu0 0
  %2651 = vmatpush1.bf16.msra.mxu0 0
  %2652 = vmatprep.subr.bf16.mxu0 0
  %2653 = vmatpush1.bf16.msra.mxu0 0
  %2654 = vmatprep.subr.bf16.mxu0 0
  %2655 = vmatpush1.bf16.msra.mxu0 0
  %2656 = vmatprep.subr.bf16.mxu0 0
  %2657 = vmatpush1.bf16.msra.mxu0 0
  %2658 = vmatprep.subr.bf16.mxu0 0
  %2659 = vmatpush1.bf16.msra.mxu0 0
  %2660 = vmatprep.subr.bf16.mxu0 0
  %2661 = vmatpush1.bf16.msra.mxu0 0
  %2662 = vmatprep.mubr.bf16.mxu0 0
  %2663 = vmatmul.mubr.bf16.gmra.mrb[0].mxu0 %v2628
  %v2664 = vpop.f32.mrb[0].mxu0
  %v2665 = vadd.f32 %v814, %v2664
  %v2666 = vpop.f32.mrb[0].mxu0
  %v2667 = vpop.f32.mrb[0].mxu0
  %v2668 = vpop.f32.mrb[0].mxu0
  %2669 = vdwg.mxu0
  %2671 = vrot.lane.b32.xlu0 %v2665, 64
  %v2672 = vpop.permute.xlu0 %2671
  %2674 = vst.msk [vmem:[%s4 + $0x8] sm:$0xff] %vm1536, %v2672
  %2676 = vrot.lane.b32.xlu0 %v2550, 80
  %v2677 = vpop.permute.xlu0 %2676
  %2680 = vrot.lane.b32.xlu0 %v2622, 96
  %v2681 = vpop.permute.xlu0 %2680
  %v2683 = vsel %vm243, %v2677, %v2681
  %v2684 = vpack.c.bf16 %v2683, %v2683
  %v2686 = vsel %vm746, %v2684, 0
  %2688 = vmatprep.subr.bf16.mxu0 0
  %2689 = vmatpush1.bf16.msra.mxu0 %v91
  %2690 = vmatprep.subr.bf16.mxu0 0
  %2691 = vmatpush1.bf16.msra.mxu0 %v92
  %2692 = vmatprep.subr.bf16.mxu0 0
  %2693 = vmatpush1.bf16.msra.mxu0 0
  %2694 = vmatprep.subr.bf16.mxu0 0
  %2695 = vmatpush1.bf16.msra.mxu0 0
  %2696 = vmatprep.subr.bf16.mxu0 0
  %2697 = vmatpush1.bf16.msra.mxu0 0
  %2698 = vmatprep.subr.bf16.mxu0 0
  %2699 = vmatpush1.bf16.msra.mxu0 0
  %2700 = vmatprep.subr.bf16.mxu0 0
  %2701 = vmatpush1.bf16.msra.mxu0 0
  %2702 = vmatprep.subr.bf16.mxu0 0
  %2703 = vmatpush1.bf16.msra.mxu0 0
  %2704 = vmatprep.subr.bf16.mxu0 0
  %2705 = vmatpush1.bf16.msra.mxu0 0
  %2706 = vmatprep.subr.bf16.mxu0 0
  %2707 = vmatpush1.bf16.msra.mxu0 0
  %2708 = vmatprep.subr.bf16.mxu0 0
  %2709 = vmatpush1.bf16.msra.mxu0 0
  %2710 = vmatprep.subr.bf16.mxu0 0
  %2711 = vmatpush1.bf16.msra.mxu0 0
  %2712 = vmatprep.subr.bf16.mxu0 0
  %2713 = vmatpush1.bf16.msra.mxu0 0
  %2714 = vmatprep.subr.bf16.mxu0 0
  %2715 = vmatpush1.bf16.msra.mxu0 0
  %2716 = vmatprep.subr.bf16.mxu0 0
  %2717 = vmatpush1.bf16.msra.mxu0 0
  %2718 = vmatprep.subr.bf16.mxu0 0
  %2719 = vmatpush1.bf16.msra.mxu0 0
  %2720 = vmatprep.mubr.bf16.mxu0 0
  %2721 = vmatmul.mubr.bf16.gmra.mrb[0].mxu0 %v2686
  %v2722 = vpop.f32.mrb[0].mxu0
  %v2723 = vadd.f32 %v745, %v2722
  %v2724 = vpop.f32.mrb[0].mxu0
  %v2725 = vpop.f32.mrb[0].mxu0
  %v2726 = vpop.f32.mrb[0].mxu0
  %2727 = vdwg.mxu0
  %v2728 = vtanh.pop %v2723
  %v2729 = vadd.f32 %v2728, 1.0
  %v2730 = vmul.f32 %v2729, 0.5
  %v2731 = vmul.f32 %v2730, %v2616
  %2733 = vrot.lane.b32.xlu0 %v2728, 96
  %v2734 = vpop.permute.xlu0 %2733
  %v2736 = vmul.f32 %v2730, %v2734
  %2738 = vrot.lane.b32.xlu0 %v2736, 16
  %v2739 = vpop.permute.xlu0 %2738
  %v2741 = vadd.f32 %v2731, %v2739
  %v2742 = vtanh.pop %v2741
  %2744 = vrot.lane.b32.xlu0 %v2742, 32
  %v2745 = vpop.permute.xlu0 %2744
  %v2747 = vmul.f32 %v2730, %v2745
  %v2748 = vpack.c.bf16 %v2747, %v2747
  %2750 = vrot.lane.b32.xlu0 %v2748, 80
  %v2751 = vpop.permute.xlu0 %2750
  %v2753 = vsel %vm243, %v2751, 0
  %2755 = vmatprep.subr.bf16.mxu0 0
  %2756 = vmatpush1.bf16.msra.mxu0 %v96
  %2757 = vmatprep.subr.bf16.mxu0 0
  %2758 = vmatpush1.bf16.msra.mxu0 0
  %2759 = vmatprep.subr.bf16.mxu0 0
  %2760 = vmatpush1.bf16.msra.mxu0 0
  %2761 = vmatprep.subr.bf16.mxu0 0
  %2762 = vmatpush1.bf16.msra.mxu0 0
  %2763 = vmatprep.subr.bf16.mxu0 0
  %2764 = vmatpush1.bf16.msra.mxu0 0
  %2765 = vmatprep.subr.bf16.mxu0 0
  %2766 = vmatpush1.bf16.msra.mxu0 0
  %2767 = vmatprep.subr.bf16.mxu0 0
  %2768 = vmatpush1.bf16.msra.mxu0 0
  %2769 = vmatprep.subr.bf16.mxu0 0
  %2770 = vmatpush1.bf16.msra.mxu0 0
  %2771 = vmatprep.subr.bf16.mxu0 0
  %2772 = vmatpush1.bf16.msra.mxu0 0
  %2773 = vmatprep.subr.bf16.mxu0 0
  %2774 = vmatpush1.bf16.msra.mxu0 0
  %2775 = vmatprep.subr.bf16.mxu0 0
  %2776 = vmatpush1.bf16.msra.mxu0 0
  %2777 = vmatprep.subr.bf16.mxu0 0
  %2778 = vmatpush1.bf16.msra.mxu0 0
  %2779 = vmatprep.subr.bf16.mxu0 0
  %2780 = vmatpush1.bf16.msra.mxu0 0
  %2781 = vmatprep.subr.bf16.mxu0 0
  %2782 = vmatpush1.bf16.msra.mxu0 0
  %2783 = vmatprep.subr.bf16.mxu0 0
  %2784 = vmatpush1.bf16.msra.mxu0 0
  %2785 = vmatprep.subr.bf16.mxu0 0
  %2786 = vmatpush1.bf16.msra.mxu0 0
  %2787 = vmatprep.mubr.bf16.mxu0 0
  %2788 = vmatmul.mubr.bf16.gmra.mrb[0].mxu0 %v2753
  %v2789 = vpop.f32.mrb[0].mxu0
  %v2790 = vadd.f32 %v814, %v2789
  %v2791 = vpop.f32.mrb[0].mxu0
  %v2792 = vpop.f32.mrb[0].mxu0
  %v2793 = vpop.f32.mrb[0].mxu0
  %2794 = vdwg.mxu0
  %2796 = vrot.lane.b32.xlu0 %v2790, 96
  %v2797 = vpop.permute.xlu0 %2796
  %2799 = vst.msk [vmem:[%s4 + $0x8] sm:$0xff] %vm1874, %v2797
  // Predicated region
  $region18: #{recurrent_decoder_forward.1} parent=0 // pred_check
    _
  $region19: #{recurrent_decoder_forward.1} parent=0 // pred_check_branch
    %2801 = sbr.rel (0) target = $region21
  $region20: #{recurrent_decoder_forward.1} parent=0 // pred_region
    _
  $region21: #{recurrent_decoder_forward.1} parent=0 // pred_fallthru
    _
  // Predicated region
  $region22: #{recurrent_decoder_forward.1} parent=0 // pred_check
    _
  $region23: #{recurrent_decoder_forward.1} parent=0 // pred_check_branch
    %2803 = sbr.rel (0) target = $region25
  $region24: #{recurrent_decoder_forward.1} parent=0 // pred_region
    _
  $region25: #{recurrent_decoder_forward.1} parent=0 // pred_fallthru
    _

</llo_original>
